<compile_context>
chip_gen: v7x
topology: tpu7x:2x2x1
jax: 0.10.0
libtpu: 0.0.40
codegen_flags: <defaults>
</compile_context>

<pallas_src>
import math
import functools

import jax
import jax.numpy as jnp
from jax.experimental import pallas as pl
from jax.experimental.pallas import tpu as pltpu

# ----------------------- small, DistilBERT-shaped config ----------------------
B = 2            # batch
S = 8            # sequence length
BS = B * S       # batch folded into sublanes
H = 64           # hidden size          (768 in real DistilBERT)
NH = 4           # attention heads      (12 in real DistilBERT)
DH = H // NH     # head dim
F = 128          # FFN intermediate     (3072 in real DistilBERT)
N_LAYERS = 2     # encoder layers       (6 in real DistilBERT)
VOCAB = 100
MAX_POS = 32
N_CLASSES = 3
C_PAD = 128      # lane-dense padded classifier output width
LN_EPS = 1e-12   # DistilBERT LayerNorm eps

# rows of the packed per-layer (1, H) vector table
_BO, _LN1G, _LN1B, _C2, _LN2G, _LN2B = range(6)


# ------------------------------- helpers (in-kernel) --------------------------
def _layernorm(x, gamma, beta):
    mu = jnp.mean(x, axis=-1, keepdims=True)
    var = jnp.mean((x - mu) ** 2, axis=-1, keepdims=True)
    return (x - mu) * jax.lax.rsqrt(var + LN_EPS) * gamma + beta


def _gelu(x):
    # TODO(synk): HF DistilBERT uses exact erf-based GELU; tanh approximation differs ~1e-3.
    c = math.sqrt(2.0 / math.pi)
    return 0.5 * x * (1.0 + jnp.tanh(c * (x + 0.044715 * x * x * x)))


# --------------------------------- fused kernel --------------------------------
def fused_kernel(x_ref, mb_ref,
                 wqkv_ref, bqkv_ref, wo_ref,
                 w1_ref, c1_ref, w2_ref, vecs_ref,
                 embln_ref, wp_ref, bp_ref, wc_ref, bc_ref,
                 o_ref):
    embln = embln_ref[...]                              # (2, H)
    x = _layernorm(x_ref[...], embln[0:1, :], embln[1:2, :])   # (BS, H)

    mask_bias = mb_ref[...]                             # (BS, BS) precomputed on host
    scale = 1.0 / math.sqrt(DH)

    # static in-kernel layer loop — all weights are VMEM-resident for the whole kernel
    for l in range(N_LAYERS):
        vecs = vecs_ref[l]                              # (6, H) packed per-layer vectors

        # ---- fused QKV projection: one wide matmul (192 output lanes) ----
        qkv = jnp.dot(x, wqkv_ref[l], preferred_element_type=jnp.float32) + bqkv_ref[l]

        # ---- per-head attention on lane slices of the fused qkv ----
        ctx_heads = []
        for h in range(NH):
            qh = qkv[:, h * DH:(h + 1) * DH]
            kh = qkv[:, H + h * DH:H + (h + 1) * DH]
            vh = qkv[:, 2 * H + h * DH:2 * H + (h + 1) * DH]
            s = jnp.dot(qh, kh.T, preferred_element_type=jnp.float32) * scale + mask_bias
            s = s - jnp.max(s, axis=-1, keepdims=True)
            p = jnp.exp(s)
            p = p / jnp.sum(p, axis=-1, keepdims=True)   # exact division (S is tiny)
            ctx_heads.append(jnp.dot(p, vh, preferred_element_type=jnp.float32))
        ctx = jnp.concatenate(ctx_heads, axis=-1)        # (BS, H)

        # ---- single output projection on the concatenated context ----
        attn = jnp.dot(ctx, wo_ref[l], preferred_element_type=jnp.float32) + vecs[_BO:_BO + 1, :]
        x1 = _layernorm(x + attn, vecs[_LN1G:_LN1G + 1, :], vecs[_LN1B:_LN1B + 1, :])

        # ---- feed-forward ----
        hh = jnp.dot(x1, w1_ref[l], preferred_element_type=jnp.float32) + c1_ref[l]
        hh = _gelu(hh)
        hh = jnp.dot(hh, w2_ref[l], preferred_element_type=jnp.float32) + vecs[_C2:_C2 + 1, :]
        x = _layernorm(x1 + hh, vecs[_LN2G:_LN2G + 1, :], vecs[_LN2B:_LN2B + 1, :])

    # ---- epilogue: CLS pool + pre_classifier + ReLU + classifier ----
    pooled = jnp.concatenate([x[b * S:b * S + 1, :] for b in range(B)], axis=0)   # (B, H)
    hc = jnp.dot(pooled, wp_ref[...], preferred_element_type=jnp.float32) + bp_ref[...]
    hc = jnp.maximum(hc, 0.0)                                                     # ReLU
    # dropout(p=0.2): inference-mode identity
    o_ref[...] = jnp.dot(hc, wc_ref[...], preferred_element_type=jnp.float32) + bc_ref[...]


# ------------------------------- pallas wrapper --------------------------------
def _full_spec(shape):
    n = len(shape)
    return pl.BlockSpec(shape, lambda i, n=n: (0,) * n)


def distilbert_sent_pallas(params, x_emb, mask_bias):
    in_specs = [
        _full_spec((BS, H)),                 # x_emb (batch folded into rows)
        _full_spec((BS, BS)),                # additive attention-mask bias
        _full_spec((N_LAYERS, H, 3 * H)),    # fused Wqkv
        _full_spec((N_LAYERS, 1, 3 * H)),    # fused bqkv
        _full_spec((N_LAYERS, H, H)),        # Wo
        _full_spec((N_LAYERS, H, F)),        # FFN W1
        _full_spec((N_LAYERS, 1, F)),        # FFN b1
        _full_spec((N_LAYERS, F, H)),        # FFN W2
        _full_spec((N_LAYERS, 6, H)),        # packed [bo, ln1_g, ln1_b, c2, ln2_g, ln2_b]
        _full_spec((2, H)),                  # embedding LN [gamma; beta]
        _full_spec((H, H)),                  # pre_classifier W
        _full_spec((1, H)),                  # pre_classifier b
        _full_spec((H, C_PAD)),              # classifier W (lane-padded)
        _full_spec((1, C_PAD)),              # classifier b (lane-padded)
    ]

    logits_pad = pl.pallas_call(
        fused_kernel,
        out_shape=jax.ShapeDtypeStruct((B, C_PAD), jnp.float32),
        grid=(1,),
        in_specs=in_specs,
        out_specs=_full_spec((B, C_PAD)),
        compiler_params=pltpu.CompilerParams(
            dimension_semantics=("arbitrary",),
            vmem_limit_bytes=32 * 1024 * 1024),
    )(x_emb, mask_bias,
      params["wqkv"], params["bqkv"], params["wo"],
      params["w1"], params["c1"], params["w2"], params["vecs_h"],
      params["emb_ln"], params["wp"], params["bp"],
      params["wc_pad"], params["bc_pad"])
    return logits_pad[:, :N_CLASSES]


# ------------------------------- parameter init --------------------------------
def init_params(key):
    std = 0.02
    ks = iter(jax.random.split(key, 16))
    nrm = lambda shp: (std * jax.random.normal(next(ks), shp)).astype(jnp.float32)

    wc = nrm((H, N_CLASSES))
    bc = jnp.zeros((1, N_CLASSES), jnp.float32)

    # packed per-layer (1, H) vectors: rows = [bo, ln1_g, ln1_b, c2, ln2_g, ln2_b]
    one_layer_vecs = jnp.concatenate([
        jnp.zeros((1, H), jnp.float32),   # bo
        jnp.ones((1, H), jnp.float32),    # ln1_g
        jnp.zeros((1, H), jnp.float32),   # ln1_b
        jnp.zeros((1, H), jnp.float32),   # c2
        jnp.ones((1, H), jnp.float32),    # ln2_g
        jnp.zeros((1, H), jnp.float32),   # ln2_b
    ], axis=0)
    vecs_h = jnp.broadcast_to(one_layer_vecs[None], (N_LAYERS, 6, H)).astype(jnp.float32)

    return {
        "tok_emb": nrm((VOCAB, H)),
        "pos_emb": nrm((MAX_POS, H)),
        "emb_ln": jnp.concatenate(
            [jnp.ones((1, H), jnp.float32), jnp.zeros((1, H), jnp.float32)], axis=0),
        # per-layer weights stacked on a leading layer axis; QKV fused into one matmul
        "wqkv": nrm((N_LAYERS, H, 3 * H)),
        "bqkv": jnp.zeros((N_LAYERS, 1, 3 * H), jnp.float32),
        "wo": nrm((N_LAYERS, H, H)),
        "w1": nrm((N_LAYERS, H, F)),
        "c1": jnp.zeros((N_LAYERS, 1, F), jnp.float32),
        "w2": nrm((N_LAYERS, F, H)),
        "vecs_h": vecs_h,
        "wp": nrm((H, H)),
        "bp": jnp.zeros((1, H), jnp.float32),
        # classifier padded to a lane-dense 128-wide output; host slices back to N_CLASSES
        "wc_pad": jnp.pad(wc, ((0, 0), (0, C_PAD - N_CLASSES))),
        "bc_pad": jnp.pad(bc, ((0, 0), (0, C_PAD - N_CLASSES))),
    }


# ----------------------------------- forward -----------------------------------
@functools.partial(jax.jit, static_argnums=())
def distilbert_sent_forward(params, input_ids, attention_mask):
    # token/positional embedding gather is glue in JAX; everything else is one Pallas kernel
    tok = jnp.take(params["tok_emb"], input_ids, axis=0)          # (B, S, H)
    pos = params["pos_emb"][:S][None, :, :]                       # (1, S, H)
    x_emb = (tok + pos).astype(jnp.float32).reshape(BS, H)        # batch folded into rows

    # block-diagonal additive mask bias: row of batch b may only attend to keys of
    # batch b whose attention_mask == 1
    m = attention_mask.astype(jnp.float32)                        # (B, S), 1 = attend
    eye = jnp.eye(B, dtype=jnp.float32)
    allow = eye[:, None, :, None] * m[None, None, :, :]           # (B, 1, B, S)
    allow = jnp.broadcast_to(allow, (B, S, B, S)).reshape(BS, BS)
    mask_bias = (1.0 - allow) * (-1e9)

    return distilbert_sent_pallas(params, x_emb, mask_bias)


# ------------------------------------ main --------------------------------------
if __name__ == "__main__":
    key = jax.random.PRNGKey(0)
    k_param, k_ids = jax.random.split(key)

    params = init_params(k_param)
    input_ids = jax.random.randint(k_ids, (B, S), 0, VOCAB, dtype=jnp.int32)
    attention_mask = jnp.ones((B, S), jnp.int32).at[1, S - 2:].set(0)  # pad last 2 of row 1

    logits = distilbert_sent_forward(params, input_ids, attention_mask)
    jax.block_until_ready(logits)
    assert logits.shape == (B, N_CLASSES) and logits.dtype == jnp.float32
    assert bool(jnp.all(jnp.isfinite(logits)))
    print("KERNEL_OK")
</pallas_src>

<mosaic_0001>
module attributes {stable_mosaic.version = 11 : i64} {
  func.func @fused_kernel(%arg0: i32, %arg1: memref<16x64xf32, #tpu.memory_space<vmem>>, %arg2: memref<16x16xf32, #tpu.memory_space<vmem>>, %arg3: memref<2x64x192xf32, #tpu.memory_space<vmem>>, %arg4: memref<2x1x192xf32, #tpu.memory_space<vmem>>, %arg5: memref<2x64x64xf32, #tpu.memory_space<vmem>>, %arg6: memref<2x64x128xf32, #tpu.memory_space<vmem>>, %arg7: memref<2x1x128xf32, #tpu.memory_space<vmem>>, %arg8: memref<2x128x64xf32, #tpu.memory_space<vmem>>, %arg9: memref<2x6x64xf32, #tpu.memory_space<vmem>>, %arg10: memref<2x64xf32, #tpu.memory_space<vmem>>, %arg11: memref<64x64xf32, #tpu.memory_space<vmem>>, %arg12: memref<1x64xf32, #tpu.memory_space<vmem>>, %arg13: memref<64x128xf32, #tpu.memory_space<vmem>>, %arg14: memref<1x128xf32, #tpu.memory_space<vmem>>, %arg15: memref<2x128xf32, #tpu.memory_space<vmem>>) attributes {dimension_semantics = [#tpu.dimension_semantics<arbitrary>], iteration_bounds = array<i64: 1>, scalar_prefetch = 0 : i64, scratch_operands = 0 : i64, tpu.core_type = #tpu.core_type<tc>, window_params = [{pipeline_mode = #tpu.pipeline_mode<synchronous>, transform_indices = @transform_0, window_bounds = array<i64: 16, 64>}, {pipeline_mode = #tpu.pipeline_mode<synchronous>, transform_indices = @transform_1, window_bounds = array<i64: 16, 16>}, {pipeline_mode = #tpu.pipeline_mode<synchronous>, transform_indices = @transform_2, window_bounds = array<i64: 2, 64, 192>}, {pipeline_mode = #tpu.pipeline_mode<synchronous>, transform_indices = @transform_3, window_bounds = array<i64: 2, 1, 192>}, {pipeline_mode = #tpu.pipeline_mode<synchronous>, transform_indices = @transform_4, window_bounds = array<i64: 2, 64, 64>}, {pipeline_mode = #tpu.pipeline_mode<synchronous>, transform_indices = @transform_5, window_bounds = array<i64: 2, 64, 128>}, {pipeline_mode = #tpu.pipeline_mode<synchronous>, transform_indices = @transform_6, window_bounds = array<i64: 2, 1, 128>}, {pipeline_mode = #tpu.pipeline_mode<synchronous>, transform_indices = @transform_7, window_bounds = array<i64: 2, 128, 64>}, {pipeline_mode = #tpu.pipeline_mode<synchronous>, transform_indices = @transform_8, window_bounds = array<i64: 2, 6, 64>}, {pipeline_mode = #tpu.pipeline_mode<synchronous>, transform_indices = @transform_9, window_bounds = array<i64: 2, 64>}, {pipeline_mode = #tpu.pipeline_mode<synchronous>, transform_indices = @transform_10, window_bounds = array<i64: 64, 64>}, {pipeline_mode = #tpu.pipeline_mode<synchronous>, transform_indices = @transform_11, window_bounds = array<i64: 1, 64>}, {pipeline_mode = #tpu.pipeline_mode<synchronous>, transform_indices = @transform_12, window_bounds = array<i64: 64, 128>}, {pipeline_mode = #tpu.pipeline_mode<synchronous>, transform_indices = @transform_13, window_bounds = array<i64: 1, 128>}, {pipeline_mode = #tpu.pipeline_mode<synchronous>, transform_indices = @transform_14, window_bounds = array<i64: 2, 128>}]} {
    %c0 = arith.constant 0 : index
    %c0_0 = arith.constant 0 : index
    %0 = vector.load %arg10[%c0, %c0_0] : memref<2x64xf32, #tpu.memory_space<vmem>>, vector<2x64xf32>
    %c0_1 = arith.constant 0 : index
    %c0_2 = arith.constant 0 : index
    %1 = vector.load %arg1[%c0_1, %c0_2] : memref<16x64xf32, #tpu.memory_space<vmem>>, vector<16x64xf32>
    %2 = vector.extract_strided_slice %0 {offsets = [0, 0], sizes = [1, 64], strides = [1, 1]} : vector<2x64xf32> to vector<1x64xf32>
    %3 = vector.extract_strided_slice %0 {offsets = [1, 0], sizes = [1, 64], strides = [1, 1]} : vector<2x64xf32> to vector<1x64xf32>
    %cst = arith.constant dense<0.000000e+00> : vector<16xf32>
    %4 = vector.multi_reduction <add>, %1, %cst [1] : vector<16x64xf32> to vector<16xf32>
    %5 = vector.shape_cast %4 : vector<16xf32> to vector<16x1xf32>
    %cst_3 = arith.constant 6.400000e+01 : f32
    %6 = vector.broadcast %cst_3 : f32 to vector<16x1xf32>
    %7 = arith.divf %5, %6 : vector<16x1xf32>
    %8 = vector.broadcast %7 : vector<16x1xf32> to vector<16x64xf32>
    %9 = arith.subf %1, %8 : vector<16x64xf32>
    %10 = arith.mulf %9, %9 : vector<16x64xf32>
    %cst_4 = arith.constant dense<0.000000e+00> : vector<16xf32>
    %11 = vector.multi_reduction <add>, %10, %cst_4 [1] : vector<16x64xf32> to vector<16xf32>
    %12 = vector.shape_cast %11 : vector<16xf32> to vector<16x1xf32>
    %cst_5 = arith.constant 6.400000e+01 : f32
    %13 = vector.broadcast %cst_5 : f32 to vector<16x1xf32>
    %14 = arith.divf %12, %13 : vector<16x1xf32>
    %15 = vector.broadcast %7 : vector<16x1xf32> to vector<16x64xf32>
    %16 = arith.subf %1, %15 : vector<16x64xf32>
    %cst_6 = arith.constant 9.99999996E-13 : f32
    %17 = vector.broadcast %cst_6 : f32 to vector<16x1xf32>
    %18 = arith.addf %14, %17 : vector<16x1xf32>
    %19 = math.rsqrt %18 : vector<16x1xf32>
    %20 = vector.broadcast %19 : vector<16x1xf32> to vector<16x64xf32>
    %21 = arith.mulf %16, %20 : vector<16x64xf32>
    %22 = vector.broadcast %2 : vector<1x64xf32> to vector<16x64xf32>
    %23 = arith.mulf %21, %22 : vector<16x64xf32>
    %24 = vector.broadcast %3 : vector<1x64xf32> to vector<16x64xf32>
    %25 = arith.addf %23, %24 : vector<16x64xf32>
    %c0_7 = arith.constant 0 : index
    %c0_8 = arith.constant 0 : index
    %26 = vector.load %arg2[%c0_7, %c0_8] : memref<16x16xf32, #tpu.memory_space<vmem>>, vector<16x16xf32>
    %c0_9 = arith.constant 0 : index
    %c0_10 = arith.constant 0 : index
    %c0_11 = arith.constant 0 : index
    %27 = vector.load %arg9[%c0_9, %c0_10, %c0_11] : memref<2x6x64xf32, #tpu.memory_space<vmem>>, vector<1x6x64xf32>
    %28 = vector.shape_cast %27 : vector<1x6x64xf32> to vector<6x64xf32>
    %c0_12 = arith.constant 0 : index
    %c0_13 = arith.constant 0 : index
    %c0_14 = arith.constant 0 : index
    %29 = vector.load %arg3[%c0_12, %c0_13, %c0_14] : memref<2x64x192xf32, #tpu.memory_space<vmem>>, vector<1x64x192xf32>
    %30 = vector.shape_cast %29 : vector<1x64x192xf32> to vector<64x192xf32>
    %cst_15 = arith.constant dense<0.000000e+00> : vector<16x192xf32>
    %31 = tpu.matmul %25, %30, %cst_15 {dimension_numbers = #tpu.dot_dimension_numbers<[1], [0], [0], [1], [0, 0, 1, 1], [], []>} : vector<16x64xf32>, vector<64x192xf32>, vector<16x192xf32> -> vector<16x192xf32>
    %c0_16 = arith.constant 0 : index
    %c0_17 = arith.constant 0 : index
    %c0_18 = arith.constant 0 : index
    %32 = vector.load %arg4[%c0_16, %c0_17, %c0_18] : memref<2x1x192xf32, #tpu.memory_space<vmem>>, vector<1x1x192xf32>
    %33 = vector.shape_cast %32 : vector<1x1x192xf32> to vector<1x192xf32>
    %34 = vector.broadcast %33 : vector<1x192xf32> to vector<16x192xf32>
    %35 = arith.addf %31, %34 : vector<16x192xf32>
    %36 = vector.extract_strided_slice %35 {offsets = [0, 0], sizes = [16, 16], strides = [1, 1]} : vector<16x192xf32> to vector<16x16xf32>
    %37 = vector.extract_strided_slice %35 {offsets = [0, 64], sizes = [16, 16], strides = [1, 1]} : vector<16x192xf32> to vector<16x16xf32>
    %38 = vector.extract_strided_slice %35 {offsets = [0, 128], sizes = [16, 16], strides = [1, 1]} : vector<16x192xf32> to vector<16x16xf32>
    %39 = tpu.transpose %37, [1, 0] : vector<16x16xf32> -> vector<16x16xf32>
    %cst_19 = arith.constant dense<0.000000e+00> : vector<16x16xf32>
    %40 = tpu.matmul %36, %39, %cst_19 {dimension_numbers = #tpu.dot_dimension_numbers<[1], [0], [0], [1], [0, 0, 1, 1], [], []>} : vector<16x16xf32>, vector<16x16xf32>, vector<16x16xf32> -> vector<16x16xf32>
    %cst_20 = arith.constant 2.500000e-01 : f32
    %41 = vector.broadcast %cst_20 : f32 to vector<16x16xf32>
    %42 = arith.mulf %40, %41 : vector<16x16xf32>
    %43 = arith.addf %42, %26 : vector<16x16xf32>
    %cst_21 = arith.constant dense<0xFF800000> : vector<16xf32>
    %44 = vector.multi_reduction <maximumf>, %43, %cst_21 [1] : vector<16x16xf32> to vector<16xf32>
    %45 = vector.shape_cast %44 : vector<16xf32> to vector<16x1xf32>
    %46 = vector.broadcast %45 : vector<16x1xf32> to vector<16x16xf32>
    %47 = arith.subf %43, %46 : vector<16x16xf32>
    %48 = math.exp %47 : vector<16x16xf32>
    %cst_22 = arith.constant dense<0.000000e+00> : vector<16xf32>
    %49 = vector.multi_reduction <add>, %48, %cst_22 [1] : vector<16x16xf32> to vector<16xf32>
    %50 = vector.shape_cast %49 : vector<16xf32> to vector<16x1xf32>
    %51 = vector.broadcast %50 : vector<16x1xf32> to vector<16x16xf32>
    %52 = arith.divf %48, %51 : vector<16x16xf32>
    %cst_23 = arith.constant dense<0.000000e+00> : vector<16x16xf32>
    %53 = tpu.matmul %52, %38, %cst_23 {dimension_numbers = #tpu.dot_dimension_numbers<[1], [0], [0], [1], [0, 0, 1, 1], [], []>} : vector<16x16xf32>, vector<16x16xf32>, vector<16x16xf32> -> vector<16x16xf32>
    %54 = vector.extract_strided_slice %35 {offsets = [0, 16], sizes = [16, 16], strides = [1, 1]} : vector<16x192xf32> to vector<16x16xf32>
    %55 = vector.extract_strided_slice %35 {offsets = [0, 80], sizes = [16, 16], strides = [1, 1]} : vector<16x192xf32> to vector<16x16xf32>
    %56 = vector.extract_strided_slice %35 {offsets = [0, 144], sizes = [16, 16], strides = [1, 1]} : vector<16x192xf32> to vector<16x16xf32>
    %57 = tpu.transpose %55, [1, 0] : vector<16x16xf32> -> vector<16x16xf32>
    %cst_24 = arith.constant dense<0.000000e+00> : vector<16x16xf32>
    %58 = tpu.matmul %54, %57, %cst_24 {dimension_numbers = #tpu.dot_dimension_numbers<[1], [0], [0], [1], [0, 0, 1, 1], [], []>} : vector<16x16xf32>, vector<16x16xf32>, vector<16x16xf32> -> vector<16x16xf32>
    %cst_25 = arith.constant 2.500000e-01 : f32
    %59 = vector.broadcast %cst_25 : f32 to vector<16x16xf32>
    %60 = arith.mulf %58, %59 : vector<16x16xf32>
    %61 = arith.addf %60, %26 : vector<16x16xf32>
    %cst_26 = arith.constant dense<0xFF800000> : vector<16xf32>
    %62 = vector.multi_reduction <maximumf>, %61, %cst_26 [1] : vector<16x16xf32> to vector<16xf32>
    %63 = vector.shape_cast %62 : vector<16xf32> to vector<16x1xf32>
    %64 = vector.broadcast %63 : vector<16x1xf32> to vector<16x16xf32>
    %65 = arith.subf %61, %64 : vector<16x16xf32>
    %66 = math.exp %65 : vector<16x16xf32>
    %cst_27 = arith.constant dense<0.000000e+00> : vector<16xf32>
    %67 = vector.multi_reduction <add>, %66, %cst_27 [1] : vector<16x16xf32> to vector<16xf32>
    %68 = vector.shape_cast %67 : vector<16xf32> to vector<16x1xf32>
    %69 = vector.broadcast %68 : vector<16x1xf32> to vector<16x16xf32>
    %70 = arith.divf %66, %69 : vector<16x16xf32>
    %cst_28 = arith.constant dense<0.000000e+00> : vector<16x16xf32>
    %71 = tpu.matmul %70, %56, %cst_28 {dimension_numbers = #tpu.dot_dimension_numbers<[1], [0], [0], [1], [0, 0, 1, 1], [], []>} : vector<16x16xf32>, vector<16x16xf32>, vector<16x16xf32> -> vector<16x16xf32>
    %72 = vector.extract_strided_slice %35 {offsets = [0, 32], sizes = [16, 16], strides = [1, 1]} : vector<16x192xf32> to vector<16x16xf32>
    %73 = vector.extract_strided_slice %35 {offsets = [0, 96], sizes = [16, 16], strides = [1, 1]} : vector<16x192xf32> to vector<16x16xf32>
    %74 = vector.extract_strided_slice %35 {offsets = [0, 160], sizes = [16, 16], strides = [1, 1]} : vector<16x192xf32> to vector<16x16xf32>
    %75 = tpu.transpose %73, [1, 0] : vector<16x16xf32> -> vector<16x16xf32>
    %cst_29 = arith.constant dense<0.000000e+00> : vector<16x16xf32>
    %76 = tpu.matmul %72, %75, %cst_29 {dimension_numbers = #tpu.dot_dimension_numbers<[1], [0], [0], [1], [0, 0, 1, 1], [], []>} : vector<16x16xf32>, vector<16x16xf32>, vector<16x16xf32> -> vector<16x16xf32>
    %cst_30 = arith.constant 2.500000e-01 : f32
    %77 = vector.broadcast %cst_30 : f32 to vector<16x16xf32>
    %78 = arith.mulf %76, %77 : vector<16x16xf32>
    %79 = arith.addf %78, %26 : vector<16x16xf32>
    %cst_31 = arith.constant dense<0xFF800000> : vector<16xf32>
    %80 = vector.multi_reduction <maximumf>, %79, %cst_31 [1] : vector<16x16xf32> to vector<16xf32>
    %81 = vector.shape_cast %80 : vector<16xf32> to vector<16x1xf32>
    %82 = vector.broadcast %81 : vector<16x1xf32> to vector<16x16xf32>
    %83 = arith.subf %79, %82 : vector<16x16xf32>
    %84 = math.exp %83 : vector<16x16xf32>
    %cst_32 = arith.constant dense<0.000000e+00> : vector<16xf32>
    %85 = vector.multi_reduction <add>, %84, %cst_32 [1] : vector<16x16xf32> to vector<16xf32>
    %86 = vector.shape_cast %85 : vector<16xf32> to vector<16x1xf32>
    %87 = vector.broadcast %86 : vector<16x1xf32> to vector<16x16xf32>
    %88 = arith.divf %84, %87 : vector<16x16xf32>
    %cst_33 = arith.constant dense<0.000000e+00> : vector<16x16xf32>
    %89 = tpu.matmul %88, %74, %cst_33 {dimension_numbers = #tpu.dot_dimension_numbers<[1], [0], [0], [1], [0, 0, 1, 1], [], []>} : vector<16x16xf32>, vector<16x16xf32>, vector<16x16xf32> -> vector<16x16xf32>
    %90 = vector.extract_strided_slice %35 {offsets = [0, 48], sizes = [16, 16], strides = [1, 1]} : vector<16x192xf32> to vector<16x16xf32>
    %91 = vector.extract_strided_slice %35 {offsets = [0, 112], sizes = [16, 16], strides = [1, 1]} : vector<16x192xf32> to vector<16x16xf32>
    %92 = vector.extract_strided_slice %35 {offsets = [0, 176], sizes = [16, 16], strides = [1, 1]} : vector<16x192xf32> to vector<16x16xf32>
    %93 = tpu.transpose %91, [1, 0] : vector<16x16xf32> -> vector<16x16xf32>
    %cst_34 = arith.constant dense<0.000000e+00> : vector<16x16xf32>
    %94 = tpu.matmul %90, %93, %cst_34 {dimension_numbers = #tpu.dot_dimension_numbers<[1], [0], [0], [1], [0, 0, 1, 1], [], []>} : vector<16x16xf32>, vector<16x16xf32>, vector<16x16xf32> -> vector<16x16xf32>
    %cst_35 = arith.constant 2.500000e-01 : f32
    %95 = vector.broadcast %cst_35 : f32 to vector<16x16xf32>
    %96 = arith.mulf %94, %95 : vector<16x16xf32>
    %97 = arith.addf %96, %26 : vector<16x16xf32>
    %cst_36 = arith.constant dense<0xFF800000> : vector<16xf32>
    %98 = vector.multi_reduction <maximumf>, %97, %cst_36 [1] : vector<16x16xf32> to vector<16xf32>
    %99 = vector.shape_cast %98 : vector<16xf32> to vector<16x1xf32>
    %100 = vector.broadcast %99 : vector<16x1xf32> to vector<16x16xf32>
    %101 = arith.subf %97, %100 : vector<16x16xf32>
    %102 = math.exp %101 : vector<16x16xf32>
    %cst_37 = arith.constant dense<0.000000e+00> : vector<16xf32>
    %103 = vector.multi_reduction <add>, %102, %cst_37 [1] : vector<16x16xf32> to vector<16xf32>
    %104 = vector.shape_cast %103 : vector<16xf32> to vector<16x1xf32>
    %105 = vector.broadcast %104 : vector<16x1xf32> to vector<16x16xf32>
    %106 = arith.divf %102, %105 : vector<16x16xf32>
    %cst_38 = arith.constant dense<0.000000e+00> : vector<16x16xf32>
    %107 = tpu.matmul %106, %92, %cst_38 {dimension_numbers = #tpu.dot_dimension_numbers<[1], [0], [0], [1], [0, 0, 1, 1], [], []>} : vector<16x16xf32>, vector<16x16xf32>, vector<16x16xf32> -> vector<16x16xf32>
    %108 = tpu.concatenate %53, %71, %89, %107 in 1 : vector<16x16xf32>, vector<16x16xf32>, vector<16x16xf32>, vector<16x16xf32> -> vector<16x64xf32>
    %c0_39 = arith.constant 0 : index
    %c0_40 = arith.constant 0 : index
    %c0_41 = arith.constant 0 : index
    %109 = vector.load %arg5[%c0_39, %c0_40, %c0_41] : memref<2x64x64xf32, #tpu.memory_space<vmem>>, vector<1x64x64xf32>
    %110 = vector.shape_cast %109 : vector<1x64x64xf32> to vector<64x64xf32>
    %cst_42 = arith.constant dense<0.000000e+00> : vector<16x64xf32>
    %111 = tpu.matmul %108, %110, %cst_42 {dimension_numbers = #tpu.dot_dimension_numbers<[1], [0], [0], [1], [0, 0, 1, 1], [], []>} : vector<16x64xf32>, vector<64x64xf32>, vector<16x64xf32> -> vector<16x64xf32>
    %112 = vector.extract_strided_slice %28 {offsets = [0, 0], sizes = [1, 64], strides = [1, 1]} : vector<6x64xf32> to vector<1x64xf32>
    %113 = vector.broadcast %112 : vector<1x64xf32> to vector<16x64xf32>
    %114 = arith.addf %111, %113 : vector<16x64xf32>
    %115 = arith.addf %25, %114 : vector<16x64xf32>
    %116 = vector.extract_strided_slice %28 {offsets = [1, 0], sizes = [1, 64], strides = [1, 1]} : vector<6x64xf32> to vector<1x64xf32>
    %117 = vector.extract_strided_slice %28 {offsets = [2, 0], sizes = [1, 64], strides = [1, 1]} : vector<6x64xf32> to vector<1x64xf32>
    %cst_43 = arith.constant dense<0.000000e+00> : vector<16xf32>
    %118 = vector.multi_reduction <add>, %115, %cst_43 [1] : vector<16x64xf32> to vector<16xf32>
    %119 = vector.shape_cast %118 : vector<16xf32> to vector<16x1xf32>
    %cst_44 = arith.constant 6.400000e+01 : f32
    %120 = vector.broadcast %cst_44 : f32 to vector<16x1xf32>
    %121 = arith.divf %119, %120 : vector<16x1xf32>
    %122 = vector.broadcast %121 : vector<16x1xf32> to vector<16x64xf32>
    %123 = arith.subf %115, %122 : vector<16x64xf32>
    %124 = arith.mulf %123, %123 : vector<16x64xf32>
    %cst_45 = arith.constant dense<0.000000e+00> : vector<16xf32>
    %125 = vector.multi_reduction <add>, %124, %cst_45 [1] : vector<16x64xf32> to vector<16xf32>
    %126 = vector.shape_cast %125 : vector<16xf32> to vector<16x1xf32>
    %cst_46 = arith.constant 6.400000e+01 : f32
    %127 = vector.broadcast %cst_46 : f32 to vector<16x1xf32>
    %128 = arith.divf %126, %127 : vector<16x1xf32>
    %129 = vector.broadcast %121 : vector<16x1xf32> to vector<16x64xf32>
    %130 = arith.subf %115, %129 : vector<16x64xf32>
    %cst_47 = arith.constant 9.99999996E-13 : f32
    %131 = vector.broadcast %cst_47 : f32 to vector<16x1xf32>
    %132 = arith.addf %128, %131 : vector<16x1xf32>
    %133 = math.rsqrt %132 : vector<16x1xf32>
    %134 = vector.broadcast %133 : vector<16x1xf32> to vector<16x64xf32>
    %135 = arith.mulf %130, %134 : vector<16x64xf32>
    %136 = vector.broadcast %116 : vector<1x64xf32> to vector<16x64xf32>
    %137 = arith.mulf %135, %136 : vector<16x64xf32>
    %138 = vector.broadcast %117 : vector<1x64xf32> to vector<16x64xf32>
    %139 = arith.addf %137, %138 : vector<16x64xf32>
    %c0_48 = arith.constant 0 : index
    %c0_49 = arith.constant 0 : index
    %c0_50 = arith.constant 0 : index
    %140 = vector.load %arg6[%c0_48, %c0_49, %c0_50] : memref<2x64x128xf32, #tpu.memory_space<vmem>>, vector<1x64x128xf32>
    %141 = vector.shape_cast %140 : vector<1x64x128xf32> to vector<64x128xf32>
    %cst_51 = arith.constant dense<0.000000e+00> : vector<16x128xf32>
    %142 = tpu.matmul %139, %141, %cst_51 {dimension_numbers = #tpu.dot_dimension_numbers<[1], [0], [0], [1], [0, 0, 1, 1], [], []>} : vector<16x64xf32>, vector<64x128xf32>, vector<16x128xf32> -> vector<16x128xf32>
    %c0_52 = arith.constant 0 : index
    %c0_53 = arith.constant 0 : index
    %c0_54 = arith.constant 0 : index
    %143 = vector.load %arg7[%c0_52, %c0_53, %c0_54] : memref<2x1x128xf32, #tpu.memory_space<vmem>>, vector<1x1x128xf32>
    %144 = vector.shape_cast %143 : vector<1x1x128xf32> to vector<1x128xf32>
    %145 = vector.broadcast %144 : vector<1x128xf32> to vector<16x128xf32>
    %146 = arith.addf %142, %145 : vector<16x128xf32>
    %cst_55 = arith.constant 5.000000e-01 : f32
    %147 = vector.broadcast %cst_55 : f32 to vector<16x128xf32>
    %148 = arith.mulf %147, %146 : vector<16x128xf32>
    %cst_56 = arith.constant 4.471500e-02 : f32
    %149 = vector.broadcast %cst_56 : f32 to vector<16x128xf32>
    %150 = arith.mulf %149, %146 : vector<16x128xf32>
    %151 = arith.mulf %150, %146 : vector<16x128xf32>
    %152 = arith.mulf %151, %146 : vector<16x128xf32>
    %153 = arith.addf %146, %152 : vector<16x128xf32>
    %cst_57 = arith.constant 0.797884583 : f32
    %154 = vector.broadcast %cst_57 : f32 to vector<16x128xf32>
    %155 = arith.mulf %154, %153 : vector<16x128xf32>
    %156 = math.tanh %155 : vector<16x128xf32>
    %cst_58 = arith.constant 1.000000e+00 : f32
    %157 = vector.broadcast %cst_58 : f32 to vector<16x128xf32>
    %158 = arith.addf %157, %156 : vector<16x128xf32>
    %159 = arith.mulf %148, %158 : vector<16x128xf32>
    %c0_59 = arith.constant 0 : index
    %c0_60 = arith.constant 0 : index
    %c0_61 = arith.constant 0 : index
    %160 = vector.load %arg8[%c0_59, %c0_60, %c0_61] : memref<2x128x64xf32, #tpu.memory_space<vmem>>, vector<1x128x64xf32>
    %161 = vector.shape_cast %160 : vector<1x128x64xf32> to vector<128x64xf32>
    %cst_62 = arith.constant dense<0.000000e+00> : vector<16x64xf32>
    %162 = tpu.matmul %159, %161, %cst_62 {dimension_numbers = #tpu.dot_dimension_numbers<[1], [0], [0], [1], [0, 0, 1, 1], [], []>} : vector<16x128xf32>, vector<128x64xf32>, vector<16x64xf32> -> vector<16x64xf32>
    %163 = vector.extract_strided_slice %28 {offsets = [3, 0], sizes = [1, 64], strides = [1, 1]} : vector<6x64xf32> to vector<1x64xf32>
    %164 = vector.broadcast %163 : vector<1x64xf32> to vector<16x64xf32>
    %165 = arith.addf %162, %164 : vector<16x64xf32>
    %166 = arith.addf %139, %165 : vector<16x64xf32>
    %167 = vector.extract_strided_slice %28 {offsets = [4, 0], sizes = [1, 64], strides = [1, 1]} : vector<6x64xf32> to vector<1x64xf32>
    %168 = vector.extract_strided_slice %28 {offsets = [5, 0], sizes = [1, 64], strides = [1, 1]} : vector<6x64xf32> to vector<1x64xf32>
    %cst_63 = arith.constant dense<0.000000e+00> : vector<16xf32>
    %169 = vector.multi_reduction <add>, %166, %cst_63 [1] : vector<16x64xf32> to vector<16xf32>
    %170 = vector.shape_cast %169 : vector<16xf32> to vector<16x1xf32>
    %cst_64 = arith.constant 6.400000e+01 : f32
    %171 = vector.broadcast %cst_64 : f32 to vector<16x1xf32>
    %172 = arith.divf %170, %171 : vector<16x1xf32>
    %173 = vector.broadcast %172 : vector<16x1xf32> to vector<16x64xf32>
    %174 = arith.subf %166, %173 : vector<16x64xf32>
    %175 = arith.mulf %174, %174 : vector<16x64xf32>
    %cst_65 = arith.constant dense<0.000000e+00> : vector<16xf32>
    %176 = vector.multi_reduction <add>, %175, %cst_65 [1] : vector<16x64xf32> to vector<16xf32>
    %177 = vector.shape_cast %176 : vector<16xf32> to vector<16x1xf32>
    %cst_66 = arith.constant 6.400000e+01 : f32
    %178 = vector.broadcast %cst_66 : f32 to vector<16x1xf32>
    %179 = arith.divf %177, %178 : vector<16x1xf32>
    %180 = vector.broadcast %172 : vector<16x1xf32> to vector<16x64xf32>
    %181 = arith.subf %166, %180 : vector<16x64xf32>
    %cst_67 = arith.constant 9.99999996E-13 : f32
    %182 = vector.broadcast %cst_67 : f32 to vector<16x1xf32>
    %183 = arith.addf %179, %182 : vector<16x1xf32>
    %184 = math.rsqrt %183 : vector<16x1xf32>
    %185 = vector.broadcast %184 : vector<16x1xf32> to vector<16x64xf32>
    %186 = arith.mulf %181, %185 : vector<16x64xf32>
    %187 = vector.broadcast %167 : vector<1x64xf32> to vector<16x64xf32>
    %188 = arith.mulf %186, %187 : vector<16x64xf32>
    %189 = vector.broadcast %168 : vector<1x64xf32> to vector<16x64xf32>
    %190 = arith.addf %188, %189 : vector<16x64xf32>
    %c1 = arith.constant 1 : index
    %c0_68 = arith.constant 0 : index
    %c0_69 = arith.constant 0 : index
    %191 = vector.load %arg9[%c1, %c0_68, %c0_69] : memref<2x6x64xf32, #tpu.memory_space<vmem>>, vector<1x6x64xf32>
    %192 = vector.shape_cast %191 : vector<1x6x64xf32> to vector<6x64xf32>
    %c1_70 = arith.constant 1 : index
    %c0_71 = arith.constant 0 : index
    %c0_72 = arith.constant 0 : index
    %193 = vector.load %arg3[%c1_70, %c0_71, %c0_72] : memref<2x64x192xf32, #tpu.memory_space<vmem>>, vector<1x64x192xf32>
    %194 = vector.shape_cast %193 : vector<1x64x192xf32> to vector<64x192xf32>
    %cst_73 = arith.constant dense<0.000000e+00> : vector<16x192xf32>
    %195 = tpu.matmul %190, %194, %cst_73 {dimension_numbers = #tpu.dot_dimension_numbers<[1], [0], [0], [1], [0, 0, 1, 1], [], []>} : vector<16x64xf32>, vector<64x192xf32>, vector<16x192xf32> -> vector<16x192xf32>
    %c1_74 = arith.constant 1 : index
    %c0_75 = arith.constant 0 : index
    %c0_76 = arith.constant 0 : index
    %196 = vector.load %arg4[%c1_74, %c0_75, %c0_76] : memref<2x1x192xf32, #tpu.memory_space<vmem>>, vector<1x1x192xf32>
    %197 = vector.shape_cast %196 : vector<1x1x192xf32> to vector<1x192xf32>
    %198 = vector.broadcast %197 : vector<1x192xf32> to vector<16x192xf32>
    %199 = arith.addf %195, %198 : vector<16x192xf32>
    %200 = vector.extract_strided_slice %199 {offsets = [0, 0], sizes = [16, 16], strides = [1, 1]} : vector<16x192xf32> to vector<16x16xf32>
    %201 = vector.extract_strided_slice %199 {offsets = [0, 64], sizes = [16, 16], strides = [1, 1]} : vector<16x192xf32> to vector<16x16xf32>
    %202 = vector.extract_strided_slice %199 {offsets = [0, 128], sizes = [16, 16], strides = [1, 1]} : vector<16x192xf32> to vector<16x16xf32>
    %203 = tpu.transpose %201, [1, 0] : vector<16x16xf32> -> vector<16x16xf32>
    %cst_77 = arith.constant dense<0.000000e+00> : vector<16x16xf32>
    %204 = tpu.matmul %200, %203, %cst_77 {dimension_numbers = #tpu.dot_dimension_numbers<[1], [0], [0], [1], [0, 0, 1, 1], [], []>} : vector<16x16xf32>, vector<16x16xf32>, vector<16x16xf32> -> vector<16x16xf32>
    %cst_78 = arith.constant 2.500000e-01 : f32
    %205 = vector.broadcast %cst_78 : f32 to vector<16x16xf32>
    %206 = arith.mulf %204, %205 : vector<16x16xf32>
    %207 = arith.addf %206, %26 : vector<16x16xf32>
    %cst_79 = arith.constant dense<0xFF800000> : vector<16xf32>
    %208 = vector.multi_reduction <maximumf>, %207, %cst_79 [1] : vector<16x16xf32> to vector<16xf32>
    %209 = vector.shape_cast %208 : vector<16xf32> to vector<16x1xf32>
    %210 = vector.broadcast %209 : vector<16x1xf32> to vector<16x16xf32>
    %211 = arith.subf %207, %210 : vector<16x16xf32>
    %212 = math.exp %211 : vector<16x16xf32>
    %cst_80 = arith.constant dense<0.000000e+00> : vector<16xf32>
    %213 = vector.multi_reduction <add>, %212, %cst_80 [1] : vector<16x16xf32> to vector<16xf32>
    %214 = vector.shape_cast %213 : vector<16xf32> to vector<16x1xf32>
    %215 = vector.broadcast %214 : vector<16x1xf32> to vector<16x16xf32>
    %216 = arith.divf %212, %215 : vector<16x16xf32>
    %cst_81 = arith.constant dense<0.000000e+00> : vector<16x16xf32>
    %217 = tpu.matmul %216, %202, %cst_81 {dimension_numbers = #tpu.dot_dimension_numbers<[1], [0], [0], [1], [0, 0, 1, 1], [], []>} : vector<16x16xf32>, vector<16x16xf32>, vector<16x16xf32> -> vector<16x16xf32>
    %218 = vector.extract_strided_slice %199 {offsets = [0, 16], sizes = [16, 16], strides = [1, 1]} : vector<16x192xf32> to vector<16x16xf32>
    %219 = vector.extract_strided_slice %199 {offsets = [0, 80], sizes = [16, 16], strides = [1, 1]} : vector<16x192xf32> to vector<16x16xf32>
    %220 = vector.extract_strided_slice %199 {offsets = [0, 144], sizes = [16, 16], strides = [1, 1]} : vector<16x192xf32> to vector<16x16xf32>
    %221 = tpu.transpose %219, [1, 0] : vector<16x16xf32> -> vector<16x16xf32>
    %cst_82 = arith.constant dense<0.000000e+00> : vector<16x16xf32>
    %222 = tpu.matmul %218, %221, %cst_82 {dimension_numbers = #tpu.dot_dimension_numbers<[1], [0], [0], [1], [0, 0, 1, 1], [], []>} : vector<16x16xf32>, vector<16x16xf32>, vector<16x16xf32> -> vector<16x16xf32>
    %cst_83 = arith.constant 2.500000e-01 : f32
    %223 = vector.broadcast %cst_83 : f32 to vector<16x16xf32>
    %224 = arith.mulf %222, %223 : vector<16x16xf32>
    %225 = arith.addf %224, %26 : vector<16x16xf32>
    %cst_84 = arith.constant dense<0xFF800000> : vector<16xf32>
    %226 = vector.multi_reduction <maximumf>, %225, %cst_84 [1] : vector<16x16xf32> to vector<16xf32>
    %227 = vector.shape_cast %226 : vector<16xf32> to vector<16x1xf32>
    %228 = vector.broadcast %227 : vector<16x1xf32> to vector<16x16xf32>
    %229 = arith.subf %225, %228 : vector<16x16xf32>
    %230 = math.exp %229 : vector<16x16xf32>
    %cst_85 = arith.constant dense<0.000000e+00> : vector<16xf32>
    %231 = vector.multi_reduction <add>, %230, %cst_85 [1] : vector<16x16xf32> to vector<16xf32>
    %232 = vector.shape_cast %231 : vector<16xf32> to vector<16x1xf32>
    %233 = vector.broadcast %232 : vector<16x1xf32> to vector<16x16xf32>
    %234 = arith.divf %230, %233 : vector<16x16xf32>
    %cst_86 = arith.constant dense<0.000000e+00> : vector<16x16xf32>
    %235 = tpu.matmul %234, %220, %cst_86 {dimension_numbers = #tpu.dot_dimension_numbers<[1], [0], [0], [1], [0, 0, 1, 1], [], []>} : vector<16x16xf32>, vector<16x16xf32>, vector<16x16xf32> -> vector<16x16xf32>
    %236 = vector.extract_strided_slice %199 {offsets = [0, 32], sizes = [16, 16], strides = [1, 1]} : vector<16x192xf32> to vector<16x16xf32>
    %237 = vector.extract_strided_slice %199 {offsets = [0, 96], sizes = [16, 16], strides = [1, 1]} : vector<16x192xf32> to vector<16x16xf32>
    %238 = vector.extract_strided_slice %199 {offsets = [0, 160], sizes = [16, 16], strides = [1, 1]} : vector<16x192xf32> to vector<16x16xf32>
    %239 = tpu.transpose %237, [1, 0] : vector<16x16xf32> -> vector<16x16xf32>
    %cst_87 = arith.constant dense<0.000000e+00> : vector<16x16xf32>
    %240 = tpu.matmul %236, %239, %cst_87 {dimension_numbers = #tpu.dot_dimension_numbers<[1], [0], [0], [1], [0, 0, 1, 1], [], []>} : vector<16x16xf32>, vector<16x16xf32>, vector<16x16xf32> -> vector<16x16xf32>
    %cst_88 = arith.constant 2.500000e-01 : f32
    %241 = vector.broadcast %cst_88 : f32 to vector<16x16xf32>
    %242 = arith.mulf %240, %241 : vector<16x16xf32>
    %243 = arith.addf %242, %26 : vector<16x16xf32>
    %cst_89 = arith.constant dense<0xFF800000> : vector<16xf32>
    %244 = vector.multi_reduction <maximumf>, %243, %cst_89 [1] : vector<16x16xf32> to vector<16xf32>
    %245 = vector.shape_cast %244 : vector<16xf32> to vector<16x1xf32>
    %246 = vector.broadcast %245 : vector<16x1xf32> to vector<16x16xf32>
    %247 = arith.subf %243, %246 : vector<16x16xf32>
    %248 = math.exp %247 : vector<16x16xf32>
    %cst_90 = arith.constant dense<0.000000e+00> : vector<16xf32>
    %249 = vector.multi_reduction <add>, %248, %cst_90 [1] : vector<16x16xf32> to vector<16xf32>
    %250 = vector.shape_cast %249 : vector<16xf32> to vector<16x1xf32>
    %251 = vector.broadcast %250 : vector<16x1xf32> to vector<16x16xf32>
    %252 = arith.divf %248, %251 : vector<16x16xf32>
    %cst_91 = arith.constant dense<0.000000e+00> : vector<16x16xf32>
    %253 = tpu.matmul %252, %238, %cst_91 {dimension_numbers = #tpu.dot_dimension_numbers<[1], [0], [0], [1], [0, 0, 1, 1], [], []>} : vector<16x16xf32>, vector<16x16xf32>, vector<16x16xf32> -> vector<16x16xf32>
    %254 = vector.extract_strided_slice %199 {offsets = [0, 48], sizes = [16, 16], strides = [1, 1]} : vector<16x192xf32> to vector<16x16xf32>
    %255 = vector.extract_strided_slice %199 {offsets = [0, 112], sizes = [16, 16], strides = [1, 1]} : vector<16x192xf32> to vector<16x16xf32>
    %256 = vector.extract_strided_slice %199 {offsets = [0, 176], sizes = [16, 16], strides = [1, 1]} : vector<16x192xf32> to vector<16x16xf32>
    %257 = tpu.transpose %255, [1, 0] : vector<16x16xf32> -> vector<16x16xf32>
    %cst_92 = arith.constant dense<0.000000e+00> : vector<16x16xf32>
    %258 = tpu.matmul %254, %257, %cst_92 {dimension_numbers = #tpu.dot_dimension_numbers<[1], [0], [0], [1], [0, 0, 1, 1], [], []>} : vector<16x16xf32>, vector<16x16xf32>, vector<16x16xf32> -> vector<16x16xf32>
    %cst_93 = arith.constant 2.500000e-01 : f32
    %259 = vector.broadcast %cst_93 : f32 to vector<16x16xf32>
    %260 = arith.mulf %258, %259 : vector<16x16xf32>
    %261 = arith.addf %260, %26 : vector<16x16xf32>
    %cst_94 = arith.constant dense<0xFF800000> : vector<16xf32>
    %262 = vector.multi_reduction <maximumf>, %261, %cst_94 [1] : vector<16x16xf32> to vector<16xf32>
    %263 = vector.shape_cast %262 : vector<16xf32> to vector<16x1xf32>
    %264 = vector.broadcast %263 : vector<16x1xf32> to vector<16x16xf32>
    %265 = arith.subf %261, %264 : vector<16x16xf32>
    %266 = math.exp %265 : vector<16x16xf32>
    %cst_95 = arith.constant dense<0.000000e+00> : vector<16xf32>
    %267 = vector.multi_reduction <add>, %266, %cst_95 [1] : vector<16x16xf32> to vector<16xf32>
    %268 = vector.shape_cast %267 : vector<16xf32> to vector<16x1xf32>
    %269 = vector.broadcast %268 : vector<16x1xf32> to vector<16x16xf32>
    %270 = arith.divf %266, %269 : vector<16x16xf32>
    %cst_96 = arith.constant dense<0.000000e+00> : vector<16x16xf32>
    %271 = tpu.matmul %270, %256, %cst_96 {dimension_numbers = #tpu.dot_dimension_numbers<[1], [0], [0], [1], [0, 0, 1, 1], [], []>} : vector<16x16xf32>, vector<16x16xf32>, vector<16x16xf32> -> vector<16x16xf32>
    %272 = tpu.concatenate %217, %235, %253, %271 in 1 : vector<16x16xf32>, vector<16x16xf32>, vector<16x16xf32>, vector<16x16xf32> -> vector<16x64xf32>
    %c1_97 = arith.constant 1 : index
    %c0_98 = arith.constant 0 : index
    %c0_99 = arith.constant 0 : index
    %273 = vector.load %arg5[%c1_97, %c0_98, %c0_99] : memref<2x64x64xf32, #tpu.memory_space<vmem>>, vector<1x64x64xf32>
    %274 = vector.shape_cast %273 : vector<1x64x64xf32> to vector<64x64xf32>
    %cst_100 = arith.constant dense<0.000000e+00> : vector<16x64xf32>
    %275 = tpu.matmul %272, %274, %cst_100 {dimension_numbers = #tpu.dot_dimension_numbers<[1], [0], [0], [1], [0, 0, 1, 1], [], []>} : vector<16x64xf32>, vector<64x64xf32>, vector<16x64xf32> -> vector<16x64xf32>
    %276 = vector.extract_strided_slice %192 {offsets = [0, 0], sizes = [1, 64], strides = [1, 1]} : vector<6x64xf32> to vector<1x64xf32>
    %277 = vector.broadcast %276 : vector<1x64xf32> to vector<16x64xf32>
    %278 = arith.addf %275, %277 : vector<16x64xf32>
    %279 = arith.addf %190, %278 : vector<16x64xf32>
    %280 = vector.extract_strided_slice %192 {offsets = [1, 0], sizes = [1, 64], strides = [1, 1]} : vector<6x64xf32> to vector<1x64xf32>
    %281 = vector.extract_strided_slice %192 {offsets = [2, 0], sizes = [1, 64], strides = [1, 1]} : vector<6x64xf32> to vector<1x64xf32>
    %cst_101 = arith.constant dense<0.000000e+00> : vector<16xf32>
    %282 = vector.multi_reduction <add>, %279, %cst_101 [1] : vector<16x64xf32> to vector<16xf32>
    %283 = vector.shape_cast %282 : vector<16xf32> to vector<16x1xf32>
    %cst_102 = arith.constant 6.400000e+01 : f32
    %284 = vector.broadcast %cst_102 : f32 to vector<16x1xf32>
    %285 = arith.divf %283, %284 : vector<16x1xf32>
    %286 = vector.broadcast %285 : vector<16x1xf32> to vector<16x64xf32>
    %287 = arith.subf %279, %286 : vector<16x64xf32>
    %288 = arith.mulf %287, %287 : vector<16x64xf32>
    %cst_103 = arith.constant dense<0.000000e+00> : vector<16xf32>
    %289 = vector.multi_reduction <add>, %288, %cst_103 [1] : vector<16x64xf32> to vector<16xf32>
    %290 = vector.shape_cast %289 : vector<16xf32> to vector<16x1xf32>
    %cst_104 = arith.constant 6.400000e+01 : f32
    %291 = vector.broadcast %cst_104 : f32 to vector<16x1xf32>
    %292 = arith.divf %290, %291 : vector<16x1xf32>
    %293 = vector.broadcast %285 : vector<16x1xf32> to vector<16x64xf32>
    %294 = arith.subf %279, %293 : vector<16x64xf32>
    %cst_105 = arith.constant 9.99999996E-13 : f32
    %295 = vector.broadcast %cst_105 : f32 to vector<16x1xf32>
    %296 = arith.addf %292, %295 : vector<16x1xf32>
    %297 = math.rsqrt %296 : vector<16x1xf32>
    %298 = vector.broadcast %297 : vector<16x1xf32> to vector<16x64xf32>
    %299 = arith.mulf %294, %298 : vector<16x64xf32>
    %300 = vector.broadcast %280 : vector<1x64xf32> to vector<16x64xf32>
    %301 = arith.mulf %299, %300 : vector<16x64xf32>
    %302 = vector.broadcast %281 : vector<1x64xf32> to vector<16x64xf32>
    %303 = arith.addf %301, %302 : vector<16x64xf32>
    %c1_106 = arith.constant 1 : index
    %c0_107 = arith.constant 0 : index
    %c0_108 = arith.constant 0 : index
    %304 = vector.load %arg6[%c1_106, %c0_107, %c0_108] : memref<2x64x128xf32, #tpu.memory_space<vmem>>, vector<1x64x128xf32>
    %305 = vector.shape_cast %304 : vector<1x64x128xf32> to vector<64x128xf32>
    %cst_109 = arith.constant dense<0.000000e+00> : vector<16x128xf32>
    %306 = tpu.matmul %303, %305, %cst_109 {dimension_numbers = #tpu.dot_dimension_numbers<[1], [0], [0], [1], [0, 0, 1, 1], [], []>} : vector<16x64xf32>, vector<64x128xf32>, vector<16x128xf32> -> vector<16x128xf32>
    %c1_110 = arith.constant 1 : index
    %c0_111 = arith.constant 0 : index
    %c0_112 = arith.constant 0 : index
    %307 = vector.load %arg7[%c1_110, %c0_111, %c0_112] : memref<2x1x128xf32, #tpu.memory_space<vmem>>, vector<1x1x128xf32>
    %308 = vector.shape_cast %307 : vector<1x1x128xf32> to vector<1x128xf32>
    %309 = vector.broadcast %308 : vector<1x128xf32> to vector<16x128xf32>
    %310 = arith.addf %306, %309 : vector<16x128xf32>
    %cst_113 = arith.constant 5.000000e-01 : f32
    %311 = vector.broadcast %cst_113 : f32 to vector<16x128xf32>
    %312 = arith.mulf %311, %310 : vector<16x128xf32>
    %cst_114 = arith.constant 4.471500e-02 : f32
    %313 = vector.broadcast %cst_114 : f32 to vector<16x128xf32>
    %314 = arith.mulf %313, %310 : vector<16x128xf32>
    %315 = arith.mulf %314, %310 : vector<16x128xf32>
    %316 = arith.mulf %315, %310 : vector<16x128xf32>
    %317 = arith.addf %310, %316 : vector<16x128xf32>
    %cst_115 = arith.constant 0.797884583 : f32
    %318 = vector.broadcast %cst_115 : f32 to vector<16x128xf32>
    %319 = arith.mulf %318, %317 : vector<16x128xf32>
    %320 = math.tanh %319 : vector<16x128xf32>
    %cst_116 = arith.constant 1.000000e+00 : f32
    %321 = vector.broadcast %cst_116 : f32 to vector<16x128xf32>
    %322 = arith.addf %321, %320 : vector<16x128xf32>
    %323 = arith.mulf %312, %322 : vector<16x128xf32>
    %c1_117 = arith.constant 1 : index
    %c0_118 = arith.constant 0 : index
    %c0_119 = arith.constant 0 : index
    %324 = vector.load %arg8[%c1_117, %c0_118, %c0_119] : memref<2x128x64xf32, #tpu.memory_space<vmem>>, vector<1x128x64xf32>
    %325 = vector.shape_cast %324 : vector<1x128x64xf32> to vector<128x64xf32>
    %cst_120 = arith.constant dense<0.000000e+00> : vector<16x64xf32>
    %326 = tpu.matmul %323, %325, %cst_120 {dimension_numbers = #tpu.dot_dimension_numbers<[1], [0], [0], [1], [0, 0, 1, 1], [], []>} : vector<16x128xf32>, vector<128x64xf32>, vector<16x64xf32> -> vector<16x64xf32>
    %327 = vector.extract_strided_slice %192 {offsets = [3, 0], sizes = [1, 64], strides = [1, 1]} : vector<6x64xf32> to vector<1x64xf32>
    %328 = vector.broadcast %327 : vector<1x64xf32> to vector<16x64xf32>
    %329 = arith.addf %326, %328 : vector<16x64xf32>
    %330 = arith.addf %303, %329 : vector<16x64xf32>
    %331 = vector.extract_strided_slice %192 {offsets = [4, 0], sizes = [1, 64], strides = [1, 1]} : vector<6x64xf32> to vector<1x64xf32>
    %332 = vector.extract_strided_slice %192 {offsets = [5, 0], sizes = [1, 64], strides = [1, 1]} : vector<6x64xf32> to vector<1x64xf32>
    %cst_121 = arith.constant dense<0.000000e+00> : vector<16xf32>
    %333 = vector.multi_reduction <add>, %330, %cst_121 [1] : vector<16x64xf32> to vector<16xf32>
    %334 = vector.shape_cast %333 : vector<16xf32> to vector<16x1xf32>
    %cst_122 = arith.constant 6.400000e+01 : f32
    %335 = vector.broadcast %cst_122 : f32 to vector<16x1xf32>
    %336 = arith.divf %334, %335 : vector<16x1xf32>
    %337 = vector.broadcast %336 : vector<16x1xf32> to vector<16x64xf32>
    %338 = arith.subf %330, %337 : vector<16x64xf32>
    %339 = arith.mulf %338, %338 : vector<16x64xf32>
    %cst_123 = arith.constant dense<0.000000e+00> : vector<16xf32>
    %340 = vector.multi_reduction <add>, %339, %cst_123 [1] : vector<16x64xf32> to vector<16xf32>
    %341 = vector.shape_cast %340 : vector<16xf32> to vector<16x1xf32>
    %cst_124 = arith.constant 6.400000e+01 : f32
    %342 = vector.broadcast %cst_124 : f32 to vector<16x1xf32>
    %343 = arith.divf %341, %342 : vector<16x1xf32>
    %344 = vector.broadcast %336 : vector<16x1xf32> to vector<16x64xf32>
    %345 = arith.subf %330, %344 : vector<16x64xf32>
    %cst_125 = arith.constant 9.99999996E-13 : f32
    %346 = vector.broadcast %cst_125 : f32 to vector<16x1xf32>
    %347 = arith.addf %343, %346 : vector<16x1xf32>
    %348 = math.rsqrt %347 : vector<16x1xf32>
    %349 = vector.broadcast %348 : vector<16x1xf32> to vector<16x64xf32>
    %350 = arith.mulf %345, %349 : vector<16x64xf32>
    %351 = vector.broadcast %331 : vector<1x64xf32> to vector<16x64xf32>
    %352 = arith.mulf %350, %351 : vector<16x64xf32>
    %353 = vector.broadcast %332 : vector<1x64xf32> to vector<16x64xf32>
    %354 = arith.addf %352, %353 : vector<16x64xf32>
    %355 = vector.extract_strided_slice %354 {offsets = [0, 0], sizes = [1, 64], strides = [1, 1]} : vector<16x64xf32> to vector<1x64xf32>
    %356 = vector.extract_strided_slice %354 {offsets = [8, 0], sizes = [1, 64], strides = [1, 1]} : vector<16x64xf32> to vector<1x64xf32>
    %357 = tpu.concatenate %355, %356 in 0 : vector<1x64xf32>, vector<1x64xf32> -> vector<2x64xf32>
    %c0_126 = arith.constant 0 : index
    %c0_127 = arith.constant 0 : index
    %358 = vector.load %arg11[%c0_126, %c0_127] : memref<64x64xf32, #tpu.memory_space<vmem>>, vector<64x64xf32>
    %cst_128 = arith.constant dense<0.000000e+00> : vector<2x64xf32>
    %359 = tpu.matmul %357, %358, %cst_128 {dimension_numbers = #tpu.dot_dimension_numbers<[1], [0], [0], [1], [0, 0, 1, 1], [], []>} : vector<2x64xf32>, vector<64x64xf32>, vector<2x64xf32> -> vector<2x64xf32>
    %c0_129 = arith.constant 0 : index
    %c0_130 = arith.constant 0 : index
    %360 = vector.load %arg12[%c0_129, %c0_130] : memref<1x64xf32, #tpu.memory_space<vmem>>, vector<1x64xf32>
    %361 = vector.broadcast %360 : vector<1x64xf32> to vector<2x64xf32>
    %362 = arith.addf %359, %361 : vector<2x64xf32>
    %cst_131 = arith.constant 0.000000e+00 : f32
    %363 = vector.broadcast %cst_131 : f32 to vector<2x64xf32>
    %364 = arith.maximumf %362, %363 : vector<2x64xf32>
    %c0_132 = arith.constant 0 : index
    %c0_133 = arith.constant 0 : index
    %365 = vector.load %arg13[%c0_132, %c0_133] : memref<64x128xf32, #tpu.memory_space<vmem>>, vector<64x128xf32>
    %cst_134 = arith.constant dense<0.000000e+00> : vector<2x128xf32>
    %366 = tpu.matmul %364, %365, %cst_134 {dimension_numbers = #tpu.dot_dimension_numbers<[1], [0], [0], [1], [0, 0, 1, 1], [], []>} : vector<2x64xf32>, vector<64x128xf32>, vector<2x128xf32> -> vector<2x128xf32>
    %c0_135 = arith.constant 0 : index
    %c0_136 = arith.constant 0 : index
    %367 = vector.load %arg14[%c0_135, %c0_136] : memref<1x128xf32, #tpu.memory_space<vmem>>, vector<1x128xf32>
    %368 = vector.broadcast %367 : vector<1x128xf32> to vector<2x128xf32>
    %369 = arith.addf %366, %368 : vector<2x128xf32>
    %c0_137 = arith.constant 0 : index
    %c0_138 = arith.constant 0 : index
    %370 = vector.load %arg15[%c0_137, %c0_138] : memref<2x128xf32, #tpu.memory_space<vmem>>, vector<2x128xf32>
    tpu.vector_store %arg15[%c0_137, %c0_138], %369 {strides = array<i32>} : memref<2x128xf32, #tpu.memory_space<vmem>>, vector<2x128xf32>,
    return
  }
  func.func @transform_0(%arg0: i32) -> (i32, i32) {
    %c0_i32 = arith.constant 0 : i32
    %c0_i32_0 = arith.constant 0 : i32
    %c0_i32_1 = arith.constant 0 : i32
    return %c0_i32, %c0_i32_0 : i32, i32
  }
  func.func @transform_1(%arg0: i32) -> (i32, i32) {
    %c0_i32 = arith.constant 0 : i32
    %c0_i32_0 = arith.constant 0 : i32
    %c0_i32_1 = arith.constant 0 : i32
    return %c0_i32, %c0_i32_0 : i32, i32
  }
  func.func @transform_2(%arg0: i32) -> (i32, i32, i32) {
    %c0_i32 = arith.constant 0 : i32
    %c0_i32_0 = arith.constant 0 : i32
    %c0_i32_1 = arith.constant 0 : i32
    %c0_i32_2 = arith.constant 0 : i32
    return %c0_i32, %c0_i32_0, %c0_i32_1 : i32, i32, i32
  }
  func.func @transform_3(%arg0: i32) -> (i32, i32, i32) {
    %c0_i32 = arith.constant 0 : i32
    %c0_i32_0 = arith.constant 0 : i32
    %c0_i32_1 = arith.constant 0 : i32
    %c0_i32_2 = arith.constant 0 : i32
    return %c0_i32, %c0_i32_0, %c0_i32_1 : i32, i32, i32
  }
  func.func @transform_4(%arg0: i32) -> (i32, i32, i32) {
    %c0_i32 = arith.constant 0 : i32
    %c0_i32_0 = arith.constant 0 : i32
    %c0_i32_1 = arith.constant 0 : i32
    %c0_i32_2 = arith.constant 0 : i32
    return %c0_i32, %c0_i32_0, %c0_i32_1 : i32, i32, i32
  }
  func.func @transform_5(%arg0: i32) -> (i32, i32, i32) {
    %c0_i32 = arith.constant 0 : i32
    %c0_i32_0 = arith.constant 0 : i32
    %c0_i32_1 = arith.constant 0 : i32
    %c0_i32_2 = arith.constant 0 : i32
    return %c0_i32, %c0_i32_0, %c0_i32_1 : i32, i32, i32
  }
  func.func @transform_6(%arg0: i32) -> (i32, i32, i32) {
    %c0_i32 = arith.constant 0 : i32
    %c0_i32_0 = arith.constant 0 : i32
    %c0_i32_1 = arith.constant 0 : i32
    %c0_i32_2 = arith.constant 0 : i32
    return %c0_i32, %c0_i32_0, %c0_i32_1 : i32, i32, i32
  }
  func.func @transform_7(%arg0: i32) -> (i32, i32, i32) {
    %c0_i32 = arith.constant 0 : i32
    %c0_i32_0 = arith.constant 0 : i32
    %c0_i32_1 = arith.constant 0 : i32
    %c0_i32_2 = arith.constant 0 : i32
    return %c0_i32, %c0_i32_0, %c0_i32_1 : i32, i32, i32
  }
  func.func @transform_8(%arg0: i32) -> (i32, i32, i32) {
    %c0_i32 = arith.constant 0 : i32
    %c0_i32_0 = arith.constant 0 : i32
    %c0_i32_1 = arith.constant 0 : i32
    %c0_i32_2 = arith.constant 0 : i32
    return %c0_i32, %c0_i32_0, %c0_i32_1 : i32, i32, i32
  }
  func.func @transform_9(%arg0: i32) -> (i32, i32) {
    %c0_i32 = arith.constant 0 : i32
    %c0_i32_0 = arith.constant 0 : i32
    %c0_i32_1 = arith.constant 0 : i32
    return %c0_i32, %c0_i32_0 : i32, i32
  }
  func.func @transform_10(%arg0: i32) -> (i32, i32) {
    %c0_i32 = arith.constant 0 : i32
    %c0_i32_0 = arith.constant 0 : i32
    %c0_i32_1 = arith.constant 0 : i32
    return %c0_i32, %c0_i32_0 : i32, i32
  }
  func.func @transform_11(%arg0: i32) -> (i32, i32) {
    %c0_i32 = arith.constant 0 : i32
    %c0_i32_0 = arith.constant 0 : i32
    %c0_i32_1 = arith.constant 0 : i32
    return %c0_i32, %c0_i32_0 : i32, i32
  }
  func.func @transform_12(%arg0: i32) -> (i32, i32) {
    %c0_i32 = arith.constant 0 : i32
    %c0_i32_0 = arith.constant 0 : i32
    %c0_i32_1 = arith.constant 0 : i32
    return %c0_i32, %c0_i32_0 : i32, i32
  }
  func.func @transform_13(%arg0: i32) -> (i32, i32) {
    %c0_i32 = arith.constant 0 : i32
    %c0_i32_0 = arith.constant 0 : i32
    %c0_i32_1 = arith.constant 0 : i32
    return %c0_i32, %c0_i32_0 : i32, i32
  }
  func.func @transform_14(%arg0: i32) -> (i32, i32) {
    %c0_i32 = arith.constant 0 : i32
    %c0_i32_0 = arith.constant 0 : i32
    %c0_i32_1 = arith.constant 0 : i32
    return %c0_i32, %c0_i32_0 : i32, i32
  }
}

</mosaic_0001>

<llo_original>
// kernel: distilbert_sent_forward.1
$region0: #{distilbert_sent_forward.1}
  #allocation0 [shape = 'u32[]', space=smem, size = 0x4, offset = 0x4, fixed_abs, tag = 'smem constant byte address 0x4 - core index']
  #allocation1 [shape = 'u32[144,128]{1,0:T(1,128)}', space=vmem, size = 0x12000, scoped, tag = 'internal scratch']
  %s0 = inlined_call_operand.vmem [shape: f32[16,64], index: 0, kind: input, shape index: {}]
  %s1 = inlined_call_operand.vmem [shape: f32[16,16], index: 1, kind: input, shape index: {}]
  %s2 = inlined_call_operand.vmem [shape: f32[2,64,192], index: 2, kind: input, shape index: {}]
  %s3 = inlined_call_operand.vmem [shape: f32[2,1,192], index: 3, kind: input, shape index: {}]
  %s4 = inlined_call_operand.vmem [shape: f32[2,64,64], index: 4, kind: input, shape index: {}]
  %s5 = inlined_call_operand.vmem [shape: f32[2,64,128], index: 5, kind: input, shape index: {}]
  %s6 = inlined_call_operand.vmem [shape: f32[2,1,128], index: 6, kind: input, shape index: {}]
  %s7 = inlined_call_operand.vmem [shape: f32[2,128,64], index: 7, kind: input, shape index: {}]
  %s8 = inlined_call_operand.vmem [shape: f32[2,6,64], index: 8, kind: input, shape index: {}]
  %s9 = inlined_call_operand.vmem [shape: f32[2,64], index: 9, kind: input, shape index: {}]
  %s10 = inlined_call_operand.vmem [shape: f32[64,64], index: 10, kind: input, shape index: {}]
  %s11 = inlined_call_operand.vmem [shape: f32[1,64], index: 11, kind: input, shape index: {}]
  %s12 = inlined_call_operand.vmem [shape: f32[64,128], index: 12, kind: input, shape index: {}]
  %s13 = inlined_call_operand.vmem [shape: f32[1,128], index: 13, kind: input, shape index: {}]
  %s14 = inlined_call_operand.hbm [shape: f32[2,128], index: 14, kind: output, shape index: {}]
  %s15 = sld [smem:[#allocation0]]
  $region66: #{distilbert_sent_forward.1} parent=0
    _
  %s17 = ssub.s32 1, %s15
  %s18 = scalar_select 0, %s17, %s15
  $region1: #{distilbert_sent_forward.1} parent=0
    #allocation2 [shape = 'u8[1024]{0}', space=vmem, size = 0x400, scoped, tag = 'output window, operand 0, single buffered']
    #allocation3 [shape = 's32[1]{0}', space=sflag, size = 0x4, scoped, tag = 'scoped memory for distilbert_sent_forward.1']
    %19 = vsyncpa [#allocation3], 0
    // Predicated region
    $region2: #{distilbert_sent_forward.1} parent=1 // pred_check
      _
    $region3: #{distilbert_sent_forward.1} parent=1 // pred_check_branch
      %21 = sbr.rel (0) target = $region5
    $region4: #{distilbert_sent_forward.1} parent=1 // pred_region
      _
    $region5: #{distilbert_sent_forward.1} parent=1 // pred_fallthru
      _
    // Predicated region
    $region6: #{distilbert_sent_forward.1} parent=1 // pred_check
      _
    $region7: #{distilbert_sent_forward.1} parent=1 // pred_check_branch
      %23 = sbr.rel (0) target = $region9
    $region8: #{distilbert_sent_forward.1} parent=1 // pred_region
      _
    $region9: #{distilbert_sent_forward.1} parent=1 // pred_fallthru
      _
    // Predicated region
    $region10: #{distilbert_sent_forward.1} parent=1 // pred_check
      _
    $region11: #{distilbert_sent_forward.1} parent=1 // pred_check_branch
      %25 = sbr.rel (0) target = $region13
    $region12: #{distilbert_sent_forward.1} parent=1 // pred_region
      _
    $region13: #{distilbert_sent_forward.1} parent=1 // pred_fallthru
      _
    // Predicated region
    $region14: #{distilbert_sent_forward.1} parent=1 // pred_check
      _
    $region15: #{distilbert_sent_forward.1} parent=1 // pred_check_branch
      %27 = sbr.rel (0) target = $region17
    $region16: #{distilbert_sent_forward.1} parent=1 // pred_region
      _
    $region17: #{distilbert_sent_forward.1} parent=1 // pred_fallthru
      _
    // Predicated region
    $region18: #{distilbert_sent_forward.1} parent=1 // pred_check
      _
    $region19: #{distilbert_sent_forward.1} parent=1 // pred_check_branch
      %29 = sbr.rel (0) target = $region21
    $region20: #{distilbert_sent_forward.1} parent=1 // pred_region
      _
    $region21: #{distilbert_sent_forward.1} parent=1 // pred_fallthru
      _
    // Predicated region
    $region22: #{distilbert_sent_forward.1} parent=1 // pred_check
      _
    $region23: #{distilbert_sent_forward.1} parent=1 // pred_check_branch
      %31 = sbr.rel (0) target = $region25
    $region24: #{distilbert_sent_forward.1} parent=1 // pred_region
      _
    $region25: #{distilbert_sent_forward.1} parent=1 // pred_fallthru
      _
    // Predicated region
    $region26: #{distilbert_sent_forward.1} parent=1 // pred_check
      _
    $region27: #{distilbert_sent_forward.1} parent=1 // pred_check_branch
      %33 = sbr.rel (0) target = $region29
    $region28: #{distilbert_sent_forward.1} parent=1 // pred_region
      _
    $region29: #{distilbert_sent_forward.1} parent=1 // pred_fallthru
      _
    // Predicated region
    $region30: #{distilbert_sent_forward.1} parent=1 // pred_check
      _
    $region31: #{distilbert_sent_forward.1} parent=1 // pred_check_branch
      %35 = sbr.rel (0) target = $region33
    $region32: #{distilbert_sent_forward.1} parent=1 // pred_region
      _
    $region33: #{distilbert_sent_forward.1} parent=1 // pred_fallthru
      _
    // Predicated region
    $region34: #{distilbert_sent_forward.1} parent=1 // pred_check
      _
    $region35: #{distilbert_sent_forward.1} parent=1 // pred_check_branch
      %37 = sbr.rel (0) target = $region37
    $region36: #{distilbert_sent_forward.1} parent=1 // pred_region
      _
    $region37: #{distilbert_sent_forward.1} parent=1 // pred_fallthru
      _
    // Predicated region
    $region38: #{distilbert_sent_forward.1} parent=1 // pred_check
      _
    $region39: #{distilbert_sent_forward.1} parent=1 // pred_check_branch
      %39 = sbr.rel (0) target = $region41
    $region40: #{distilbert_sent_forward.1} parent=1 // pred_region
      _
    $region41: #{distilbert_sent_forward.1} parent=1 // pred_fallthru
      _
    // Predicated region
    $region42: #{distilbert_sent_forward.1} parent=1 // pred_check
      _
    $region43: #{distilbert_sent_forward.1} parent=1 // pred_check_branch
      %41 = sbr.rel (0) target = $region45
    $region44: #{distilbert_sent_forward.1} parent=1 // pred_region
      _
    $region45: #{distilbert_sent_forward.1} parent=1 // pred_fallthru
      _
    // Predicated region
    $region46: #{distilbert_sent_forward.1} parent=1 // pred_check
      _
    $region47: #{distilbert_sent_forward.1} parent=1 // pred_check_branch
      %43 = sbr.rel (0) target = $region49
    $region48: #{distilbert_sent_forward.1} parent=1 // pred_region
      _
    $region49: #{distilbert_sent_forward.1} parent=1 // pred_fallthru
      _
    // Predicated region
    $region50: #{distilbert_sent_forward.1} parent=1 // pred_check
      _
    $region51: #{distilbert_sent_forward.1} parent=1 // pred_check_branch
      %45 = sbr.rel (0) target = $region53
    $region52: #{distilbert_sent_forward.1} parent=1 // pred_region
      _
    $region53: #{distilbert_sent_forward.1} parent=1 // pred_fallthru
      _
    // Predicated region
    $region54: #{distilbert_sent_forward.1} parent=1 // pred_check
      _
    $region55: #{distilbert_sent_forward.1} parent=1 // pred_check_branch
      %47 = sbr.rel (0) target = $region57
    $region56: #{distilbert_sent_forward.1} parent=1 // pred_region
      _
    $region57: #{distilbert_sent_forward.1} parent=1 // pred_fallthru
      _
    %v48 = vld [vmem:[%s9] sm:$0x3]
    %v49 = vld [vmem:[%s0] sm:$0xff]
    %v50 = vld [vmem:[%s0 + $0x8] sm:$0xff]
    %vm51 = vcmask 523264
    %v52 = vsel %vm51, %v49, 0.0
    %53 = vadd.xlane.f32.xlu0 %v52
    %v54 = vpop.xlane.xlu0 %53
    %v55 = vsel %vm51, %v50, 0.0
    %56 = vadd.xlane.f32.xlu0 %v55
    %v57 = vpop.xlane.xlu0 %56
    %v58 = vrcp.pop 64.0
    %v59 = vmul.f32 %v54, %v58
    %v60 = vmul.f32 %v57, %v58
    %v61 = vsub.f32 %v49, %v59
    %v62 = vsub.f32 %v50, %v60
    %v63 = vmul.f32 %v61, %v61
    %v64 = vmul.f32 %v62, %v62
    %v65 = vsel %vm51, %v63, 0.0
    %66 = vadd.xlane.f32.xlu0 %v65
    %v67 = vpop.xlane.xlu0 %66
    %v68 = vsel %vm51, %v64, 0.0
    %69 = vadd.xlane.f32.xlu0 %v68
    %v70 = vpop.xlane.xlu0 %69
    %v71 = vmul.f32 %v67, %v58
    %v72 = vmul.f32 %v70, %v58
    %v73 = vadd.f32 %v71, 1e-12
    %v74 = vadd.f32 %v72, 1e-12
    %v75 = vrsqrt.pop %v73
    %v76 = vrsqrt.pop %v74
    %v77 = vmul.f32 %v61, %v75
    %v78 = vmul.f32 %v62, %v76
    %v79 = vlaneseq
    %v80 = vshrl.u32 %v79, 7
    %v81 = vsub.s32 0, %v80
    %v82 = vrot.slane %v48, %v81
    %v83 = vmul.f32 %v77, %v82
    %v84 = vmul.f32 %v78, %v82
    %v85 = vlaneseq
    %v86 = vshrl.u32 %v85, 7
    %v87 = vsub.s32 1, %v86
    %v88 = vrot.slane %v48, %v87
    %v89 = vadd.f32 %v83, %v88
    %v90 = vadd.f32 %v84, %v88
    %v91 = vld [vmem:[%s1] sm:$0xff]
    %v92 = vld [vmem:[%s1 + $0x8] sm:$0xff]
    %v93 = vld [vmem:[%s8] sm:$0x3f]
    %v94 = vld [vmem:[%s2] sm:$0xff]
    %v95 = vld [vmem:[%s2 + $0x8] sm:$0xff]
    %v96 = vld [vmem:[%s2 + $0x10] sm:$0xff]
    %v97 = vld [vmem:[%s2 + $0x18] sm:$0xff]
    %v98 = vld [vmem:[%s2 + $0x20] sm:$0xff]
    %v99 = vld [vmem:[%s2 + $0x28] sm:$0xff]
    %v100 = vld [vmem:[%s2 + $0x30] sm:$0xff]
    %v101 = vld [vmem:[%s2 + $0x38] sm:$0xff]
    %v102 = vld [vmem:[%s2 + $0x40] sm:$0xff]
    %v103 = vld [vmem:[%s2 + $0x48] sm:$0xff]
    %v104 = vld [vmem:[%s2 + $0x50] sm:$0xff]
    %v105 = vld [vmem:[%s2 + $0x58] sm:$0xff]
    %v106 = vld [vmem:[%s2 + $0x60] sm:$0xff]
    %v107 = vld [vmem:[%s2 + $0x68] sm:$0xff]
    %v108 = vld [vmem:[%s2 + $0x70] sm:$0xff]
    %v109 = vld [vmem:[%s2 + $0x78] sm:$0xff]
    %v110 = vld [vmem:[%s3] sm:$0x3]
    %v112 = vlaneseq
    %v113 = vshrl.u32 %v112, 7
    %v114 = vsub.s32 0, %v113
    %v115 = vrot.slane %v110, %v114
    %v116 = vlaneseq
    %v117 = vshrl.u32 %v116, 7
    %v118 = vsub.s32 1, %v117
    %v119 = vrot.slane %v110, %v118
    %v123 = vsel %vm51, %v89, 0
    %v126 = vsel %vm51, %v90, 0
    %128 = vmatprep.subr.mxu0 %v95
    %129 = vmatpush1.msra.mxu0 %v94
    %130 = vmatprep.subr.mxu0 %v97
    %131 = vmatpush1.msra.mxu0 %v96
    %132 = vmatprep.subr.mxu0 %v99
    %133 = vmatpush1.msra.mxu0 %v98
    %134 = vmatprep.subr.mxu0 %v101
    %135 = vmatpush1.msra.mxu0 %v100
    %136 = vmatprep.subr.mxu0 %v103
    %137 = vmatpush1.msra.mxu0 %v102
    %138 = vmatprep.subr.mxu0 %v105
    %139 = vmatpush1.msra.mxu0 %v104
    %140 = vmatprep.subr.mxu0 %v107
    %141 = vmatpush1.msra.mxu0 %v106
    %142 = vmatprep.subr.mxu0 %v109
    %143 = vmatpush1.msra.mxu0 %v108
    %144 = vmatprep.subr.mxu0 0.0
    %145 = vmatpush1.msra.mxu0 0.0
    %146 = vmatprep.subr.mxu0 0.0
    %147 = vmatpush1.msra.mxu0 0.0
    %148 = vmatprep.subr.mxu0 0.0
    %149 = vmatpush1.msra.mxu0 0.0
    %150 = vmatprep.subr.mxu0 0.0
    %151 = vmatpush1.msra.mxu0 0.0
    %152 = vmatprep.subr.mxu0 0.0
    %153 = vmatpush1.msra.mxu0 0.0
    %154 = vmatprep.subr.mxu0 0.0
    %155 = vmatpush1.msra.mxu0 0.0
    %156 = vmatprep.subr.mxu0 0.0
    %157 = vmatpush1.msra.mxu0 0.0
    %158 = vmatprep.subr.mxu0 0.0
    %159 = vmatpush1.msra.mxu0 0.0
    %160 = vmatprep.subr.mxu0 0.0
    %161 = vmatpush1.msra.mxu0 0.0
    %162 = vmatprep.subr.mxu0 0.0
    %163 = vmatpush1.msra.mxu0 0.0
    %164 = vmatprep.subr.mxu0 0.0
    %165 = vmatpush1.msra.mxu0 0.0
    %166 = vmatprep.subr.mxu0 0.0
    %167 = vmatpush1.msra.mxu0 0.0
    %168 = vmatprep.subr.mxu0 0.0
    %169 = vmatpush1.msra.mxu0 0.0
    %170 = vmatprep.subr.mxu0 0.0
    %171 = vmatpush1.msra.mxu0 0.0
    %172 = vmatprep.subr.mxu0 0.0
    %173 = vmatpush1.msra.mxu0 0.0
    %174 = vmatprep.subr.mxu0 0.0
    %175 = vmatpush1.msra.mxu0 0.0
    %176 = vmatprep.subr.mxu0 0.0
    %177 = vmatpush1.msra.mxu0 0.0
    %178 = vmatprep.subr.mxu0 0.0
    %179 = vmatpush1.msra.mxu0 0.0
    %180 = vmatprep.subr.mxu0 0.0
    %181 = vmatpush1.msra.mxu0 0.0
    %182 = vmatprep.subr.mxu0 0.0
    %183 = vmatpush1.msra.mxu0 0.0
    %184 = vmatprep.subr.mxu0 0.0
    %185 = vmatpush1.msra.mxu0 0.0
    %186 = vmatprep.subr.mxu0 0.0
    %187 = vmatpush1.msra.mxu0 0.0
    %188 = vmatprep.subr.mxu0 0.0
    %189 = vmatpush1.msra.mxu0 0.0
    %190 = vmatprep.subr.mxu0 0.0
    %191 = vmatpush1.msra.mxu0 0.0
    %192 = vmatprep.mubr.f32.mxu0 0.0
    %193 = vmatmul.mubr.f32.gmra.mrb[0].mxu0 %v123
    %v194 = vpop.f32.mrb[0].mxu0
    %v195 = vadd.f32 %v115, %v194
    %v196 = vpop.f32.mrb[0].mxu0
    %v197 = vadd.f32 %v119, %v196
    %198 = vmatprep.mubr.f32.mxu0 0.0
    %199 = vmatmul.mubr.f32.gmra.mrb[0].mxu0 %v126
    %v200 = vpop.f32.mrb[0].mxu0
    %v201 = vadd.f32 %v115, %v200
    %v202 = vpop.f32.mrb[0].mxu0
    %v203 = vadd.f32 %v119, %v202
    %204 = vdwg.mxu0
    %207 = vrot.lane.b32.xlu0 %v195, 64
    %v208 = vpop.permute.xlu0 %207
    %209 = vrot.lane.b32.xlu0 %v201, 64
    %v210 = vpop.permute.xlu0 %209
    %vm211 = vcmask 130048
    %v212 = vsel %vm211, %v195, 0
    %v214 = vsel %vm211, %v201, 0
    %v216 = vsel %vm211, %v208, 0
    %v218 = vsel %vm211, %v210, 0
    %220 = vmatprep.subr.mxu0 0.0
    %221 = vmatpush1.xpose.msra.mxu0 %v216
    %222 = vmatprep.subr.mxu0 0.0
    %223 = vmatpush1.xpose.msra.mxu0 %v218
    %224 = vmatprep.subr.mxu0 0.0
    %225 = vmatpush1.xpose.msra.mxu0 0.0
    %226 = vmatprep.subr.mxu0 0.0
    %227 = vmatpush1.xpose.msra.mxu0 0.0
    %228 = vmatprep.subr.mxu0 0.0
    %229 = vmatpush1.xpose.msra.mxu0 0.0
    %230 = vmatprep.subr.mxu0 0.0
    %231 = vmatpush1.xpose.msra.mxu0 0.0
    %232 = vmatprep.subr.mxu0 0.0
    %233 = vmatpush1.xpose.msra.mxu0 0.0
    %234 = vmatprep.subr.mxu0 0.0
    %235 = vmatpush1.xpose.msra.mxu0 0.0
    %236 = vmatprep.subr.mxu0 0.0
    %237 = vmatpush1.xpose.msra.mxu0 0.0
    %238 = vmatprep.subr.mxu0 0.0
    %239 = vmatpush1.xpose.msra.mxu0 0.0
    %240 = vmatprep.subr.mxu0 0.0
    %241 = vmatpush1.xpose.msra.mxu0 0.0
    %242 = vmatprep.subr.mxu0 0.0
    %243 = vmatpush1.xpose.msra.mxu0 0.0
    %244 = vmatprep.subr.mxu0 0.0
    %245 = vmatpush1.xpose.msra.mxu0 0.0
    %246 = vmatprep.subr.mxu0 0.0
    %247 = vmatpush1.xpose.msra.mxu0 0.0
    %248 = vmatprep.subr.mxu0 0.0
    %249 = vmatpush1.xpose.msra.mxu0 0.0
    %250 = vmatprep.subr.mxu0 0.0
    %251 = vmatpush1.xpose.msra.mxu0 0.0
    %252 = vmatprep.subr.mxu0 0.0
    %253 = vmatpush1.xpose.msra.mxu0 0.0
    %254 = vmatprep.subr.mxu0 0.0
    %255 = vmatpush1.xpose.msra.mxu0 0.0
    %256 = vmatprep.subr.mxu0 0.0
    %257 = vmatpush1.xpose.msra.mxu0 0.0
    %258 = vmatprep.subr.mxu0 0.0
    %259 = vmatpush1.xpose.msra.mxu0 0.0
    %260 = vmatprep.subr.mxu0 0.0
    %261 = vmatpush1.xpose.msra.mxu0 0.0
    %262 = vmatprep.subr.mxu0 0.0
    %263 = vmatpush1.xpose.msra.mxu0 0.0
    %264 = vmatprep.subr.mxu0 0.0
    %265 = vmatpush1.xpose.msra.mxu0 0.0
    %266 = vmatprep.subr.mxu0 0.0
    %267 = vmatpush1.xpose.msra.mxu0 0.0
    %268 = vmatprep.subr.mxu0 0.0
    %269 = vmatpush1.xpose.msra.mxu0 0.0
    %270 = vmatprep.subr.mxu0 0.0
    %271 = vmatpush1.xpose.msra.mxu0 0.0
    %272 = vmatprep.subr.mxu0 0.0
    %273 = vmatpush1.xpose.msra.mxu0 0.0
    %274 = vmatprep.subr.mxu0 0.0
    %275 = vmatpush1.xpose.msra.mxu0 0.0
    %276 = vmatprep.subr.mxu0 0.0
    %277 = vmatpush1.xpose.msra.mxu0 0.0
    %278 = vmatprep.subr.mxu0 0.0
    %279 = vmatpush1.xpose.msra.mxu0 0.0
    %280 = vmatprep.subr.mxu0 0.0
    %281 = vmatpush1.xpose.msra.mxu0 0.0
    %282 = vmatprep.subr.mxu0 0.0
    %283 = vmatpush1.xpose.msra.mxu0 0.0
    %284 = vmatprep.mubr.f32.mxu0 0.0
    %285 = vmatmul.mubr.f32.gmra.mrb[0].mxu0 %v212
    %v286 = vpop.f32.mrb[0].mxu0
    %v287 = vadd.f32 0.0, %v286
    %v288 = vpop.f32.mrb[0].mxu0
    %289 = vmatprep.mubr.f32.mxu0 0.0
    %290 = vmatmul.mubr.f32.gmra.mrb[0].mxu0 %v214
    %v291 = vpop.f32.mrb[0].mxu0
    %v292 = vadd.f32 0.0, %v291
    %v293 = vpop.f32.mrb[0].mxu0
    %294 = vdwg.mxu0
    %v295 = vmul.f32 %v287, 0.25
    %v296 = vmul.f32 %v292, 0.25
    %v297 = vadd.f32 %v295, %v91
    %v298 = vadd.f32 %v296, %v92
    %v299 = vsel %vm211, %v297, -inf
    %300 = vmax.xlane.f32.xlu0 %v299
    %v301 = vpop.xlane.xlu0 %300
    %v302 = vsel %vm211, %v298, -inf
    %303 = vmax.xlane.f32.xlu0 %v302
    %v304 = vpop.xlane.xlu0 %303
    %v305 = vsub.f32 %v297, %v301
    %v306 = vsub.f32 %v298, %v304
    %v307 = vmul.f32 %v305, 1.442695
    %v308 = vpow.pop %v307
    %v309 = vmul.f32 %v306, 1.442695
    %v310 = vpow.pop %v309
    %v311 = vsel %vm211, %v308, 0.0
    %312 = vadd.xlane.f32.xlu0 %v311
    %v313 = vpop.xlane.xlu0 %312
    %v314 = vsel %vm211, %v310, 0.0
    %315 = vadd.xlane.f32.xlu0 %v314
    %v316 = vpop.xlane.xlu0 %315
    %v317 = vrcp.pop %v313
    %v318 = vmul.f32 %v308, %v317
    %v319 = vrcp.pop %v316
    %v320 = vmul.f32 %v310, %v319
    %v322 = vsel %vm211, %v318, 0
    %v325 = vsel %vm211, %v320, 0
    %327 = vmatprep.subr.mxu0 0.0
    %328 = vmatpush1.msra.mxu0 %v197
    %329 = vmatprep.subr.mxu0 0.0
    %330 = vmatpush1.msra.mxu0 %v203
    %331 = vmatprep.subr.mxu0 0.0
    %332 = vmatpush1.msra.mxu0 0.0
    %333 = vmatprep.subr.mxu0 0.0
    %334 = vmatpush1.msra.mxu0 0.0
    %335 = vmatprep.subr.mxu0 0.0
    %336 = vmatpush1.msra.mxu0 0.0
    %337 = vmatprep.subr.mxu0 0.0
    %338 = vmatpush1.msra.mxu0 0.0
    %339 = vmatprep.subr.mxu0 0.0
    %340 = vmatpush1.msra.mxu0 0.0
    %341 = vmatprep.subr.mxu0 0.0
    %342 = vmatpush1.msra.mxu0 0.0
    %343 = vmatprep.subr.mxu0 0.0
    %344 = vmatpush1.msra.mxu0 0.0
    %345 = vmatprep.subr.mxu0 0.0
    %346 = vmatpush1.msra.mxu0 0.0
    %347 = vmatprep.subr.mxu0 0.0
    %348 = vmatpush1.msra.mxu0 0.0
    %349 = vmatprep.subr.mxu0 0.0
    %350 = vmatpush1.msra.mxu0 0.0
    %351 = vmatprep.subr.mxu0 0.0
    %352 = vmatpush1.msra.mxu0 0.0
    %353 = vmatprep.subr.mxu0 0.0
    %354 = vmatpush1.msra.mxu0 0.0
    %355 = vmatprep.subr.mxu0 0.0
    %356 = vmatpush1.msra.mxu0 0.0
    %357 = vmatprep.subr.mxu0 0.0
    %358 = vmatpush1.msra.mxu0 0.0
    %359 = vmatprep.subr.mxu0 0.0
    %360 = vmatpush1.msra.mxu0 0.0
    %361 = vmatprep.subr.mxu0 0.0
    %362 = vmatpush1.msra.mxu0 0.0
    %363 = vmatprep.subr.mxu0 0.0
    %364 = vmatpush1.msra.mxu0 0.0
    %365 = vmatprep.subr.mxu0 0.0
    %366 = vmatpush1.msra.mxu0 0.0
    %367 = vmatprep.subr.mxu0 0.0
    %368 = vmatpush1.msra.mxu0 0.0
    %369 = vmatprep.subr.mxu0 0.0
    %370 = vmatpush1.msra.mxu0 0.0
    %371 = vmatprep.subr.mxu0 0.0
    %372 = vmatpush1.msra.mxu0 0.0
    %373 = vmatprep.subr.mxu0 0.0
    %374 = vmatpush1.msra.mxu0 0.0
    %375 = vmatprep.subr.mxu0 0.0
    %376 = vmatpush1.msra.mxu0 0.0
    %377 = vmatprep.subr.mxu0 0.0
    %378 = vmatpush1.msra.mxu0 0.0
    %379 = vmatprep.subr.mxu0 0.0
    %380 = vmatpush1.msra.mxu0 0.0
    %381 = vmatprep.subr.mxu0 0.0
    %382 = vmatpush1.msra.mxu0 0.0
    %383 = vmatprep.subr.mxu0 0.0
    %384 = vmatpush1.msra.mxu0 0.0
    %385 = vmatprep.subr.mxu0 0.0
    %386 = vmatpush1.msra.mxu0 0.0
    %387 = vmatprep.subr.mxu0 0.0
    %388 = vmatpush1.msra.mxu0 0.0
    %389 = vmatprep.subr.mxu0 0.0
    %390 = vmatpush1.msra.mxu0 0.0
    %391 = vmatprep.mubr.f32.mxu0 0.0
    %392 = vmatmul.mubr.f32.gmra.mrb[0].mxu0 %v322
    %v393 = vpop.f32.mrb[0].mxu0
    %v394 = vadd.f32 0.0, %v393
    %v395 = vpop.f32.mrb[0].mxu0
    %396 = vmatprep.mubr.f32.mxu0 0.0
    %397 = vmatmul.mubr.f32.gmra.mrb[0].mxu0 %v325
    %v398 = vpop.f32.mrb[0].mxu0
    %v399 = vadd.f32 0.0, %v398
    %v400 = vpop.f32.mrb[0].mxu0
    %401 = vdwg.mxu0
    %402 = vrot.lane.b32.xlu0 %v195, 112
    %v403 = vpop.permute.xlu0 %402
    %404 = vrot.lane.b32.xlu0 %v201, 112
    %v405 = vpop.permute.xlu0 %404
    %406 = vrot.lane.b32.xlu0 %v195, 48
    %v407 = vpop.permute.xlu0 %406
    %408 = vrot.lane.b32.xlu0 %v201, 48
    %v409 = vpop.permute.xlu0 %408
    %v410 = vsel %vm211, %v403, 0
    %v412 = vsel %vm211, %v405, 0
    %v414 = vsel %vm211, %v407, 0
    %v416 = vsel %vm211, %v409, 0
    %418 = vmatprep.subr.mxu0 0.0
    %419 = vmatpush1.xpose.msra.mxu0 %v414
    %420 = vmatprep.subr.mxu0 0.0
    %421 = vmatpush1.xpose.msra.mxu0 %v416
    %422 = vmatprep.subr.mxu0 0.0
    %423 = vmatpush1.xpose.msra.mxu0 0.0
    %424 = vmatprep.subr.mxu0 0.0
    %425 = vmatpush1.xpose.msra.mxu0 0.0
    %426 = vmatprep.subr.mxu0 0.0
    %427 = vmatpush1.xpose.msra.mxu0 0.0
    %428 = vmatprep.subr.mxu0 0.0
    %429 = vmatpush1.xpose.msra.mxu0 0.0
    %430 = vmatprep.subr.mxu0 0.0
    %431 = vmatpush1.xpose.msra.mxu0 0.0
    %432 = vmatprep.subr.mxu0 0.0
    %433 = vmatpush1.xpose.msra.mxu0 0.0
    %434 = vmatprep.subr.mxu0 0.0
    %435 = vmatpush1.xpose.msra.mxu0 0.0
    %436 = vmatprep.subr.mxu0 0.0
    %437 = vmatpush1.xpose.msra.mxu0 0.0
    %438 = vmatprep.subr.mxu0 0.0
    %439 = vmatpush1.xpose.msra.mxu0 0.0
    %440 = vmatprep.subr.mxu0 0.0
    %441 = vmatpush1.xpose.msra.mxu0 0.0
    %442 = vmatprep.subr.mxu0 0.0
    %443 = vmatpush1.xpose.msra.mxu0 0.0
    %444 = vmatprep.subr.mxu0 0.0
    %445 = vmatpush1.xpose.msra.mxu0 0.0
    %446 = vmatprep.subr.mxu0 0.0
    %447 = vmatpush1.xpose.msra.mxu0 0.0
    %448 = vmatprep.subr.mxu0 0.0
    %449 = vmatpush1.xpose.msra.mxu0 0.0
    %450 = vmatprep.subr.mxu0 0.0
    %451 = vmatpush1.xpose.msra.mxu0 0.0
    %452 = vmatprep.subr.mxu0 0.0
    %453 = vmatpush1.xpose.msra.mxu0 0.0
    %454 = vmatprep.subr.mxu0 0.0
    %455 = vmatpush1.xpose.msra.mxu0 0.0
    %456 = vmatprep.subr.mxu0 0.0
    %457 = vmatpush1.xpose.msra.mxu0 0.0
    %458 = vmatprep.subr.mxu0 0.0
    %459 = vmatpush1.xpose.msra.mxu0 0.0
    %460 = vmatprep.subr.mxu0 0.0
    %461 = vmatpush1.xpose.msra.mxu0 0.0
    %462 = vmatprep.subr.mxu0 0.0
    %463 = vmatpush1.xpose.msra.mxu0 0.0
    %464 = vmatprep.subr.mxu0 0.0
    %465 = vmatpush1.xpose.msra.mxu0 0.0
    %466 = vmatprep.subr.mxu0 0.0
    %467 = vmatpush1.xpose.msra.mxu0 0.0
    %468 = vmatprep.subr.mxu0 0.0
    %469 = vmatpush1.xpose.msra.mxu0 0.0
    %470 = vmatprep.subr.mxu0 0.0
    %471 = vmatpush1.xpose.msra.mxu0 0.0
    %472 = vmatprep.subr.mxu0 0.0
    %473 = vmatpush1.xpose.msra.mxu0 0.0
    %474 = vmatprep.subr.mxu0 0.0
    %475 = vmatpush1.xpose.msra.mxu0 0.0
    %476 = vmatprep.subr.mxu0 0.0
    %477 = vmatpush1.xpose.msra.mxu0 0.0
    %478 = vmatprep.subr.mxu0 0.0
    %479 = vmatpush1.xpose.msra.mxu0 0.0
    %480 = vmatprep.subr.mxu0 0.0
    %481 = vmatpush1.xpose.msra.mxu0 0.0
    %482 = vmatprep.mubr.f32.mxu0 0.0
    %483 = vmatmul.mubr.f32.gmra.mrb[0].mxu0 %v410
    %v484 = vpop.f32.mrb[0].mxu0
    %v485 = vadd.f32 0.0, %v484
    %v486 = vpop.f32.mrb[0].mxu0
    %487 = vmatprep.mubr.f32.mxu0 0.0
    %488 = vmatmul.mubr.f32.gmra.mrb[0].mxu0 %v412
    %v489 = vpop.f32.mrb[0].mxu0
    %v490 = vadd.f32 0.0, %v489
    %v491 = vpop.f32.mrb[0].mxu0
    %492 = vdwg.mxu0
    %v493 = vmul.f32 %v485, 0.25
    %v494 = vmul.f32 %v490, 0.25
    %v495 = vadd.f32 %v493, %v91
    %v496 = vadd.f32 %v494, %v92
    %v497 = vsel %vm211, %v495, -inf
    %498 = vmax.xlane.f32.xlu0 %v497
    %v499 = vpop.xlane.xlu0 %498
    %v500 = vsel %vm211, %v496, -inf
    %501 = vmax.xlane.f32.xlu0 %v500
    %v502 = vpop.xlane.xlu0 %501
    %v503 = vsub.f32 %v495, %v499
    %v504 = vsub.f32 %v496, %v502
    %v505 = vmul.f32 %v503, 1.442695
    %v506 = vpow.pop %v505
    %v507 = vmul.f32 %v504, 1.442695
    %v508 = vpow.pop %v507
    %v509 = vsel %vm211, %v506, 0.0
    %510 = vadd.xlane.f32.xlu0 %v509
    %v511 = vpop.xlane.xlu0 %510
    %v512 = vsel %vm211, %v508, 0.0
    %513 = vadd.xlane.f32.xlu0 %v512
    %v514 = vpop.xlane.xlu0 %513
    %v515 = vrcp.pop %v511
    %v516 = vmul.f32 %v506, %v515
    %v517 = vrcp.pop %v514
    %v518 = vmul.f32 %v508, %v517
    %521 = vrot.lane.b32.xlu0 %v197, 112
    %v522 = vpop.permute.xlu0 %521
    %523 = vrot.lane.b32.xlu0 %v203, 112
    %v524 = vpop.permute.xlu0 %523
    %v528 = vsel %vm211, %v516, 0
    %v531 = vsel %vm211, %v518, 0
    %533 = vmatprep.subr.mxu0 0.0
    %534 = vmatpush1.msra.mxu0 %v522
    %535 = vmatprep.subr.mxu0 0.0
    %536 = vmatpush1.msra.mxu0 %v524
    %537 = vmatprep.subr.mxu0 0.0
    %538 = vmatpush1.msra.mxu0 0.0
    %539 = vmatprep.subr.mxu0 0.0
    %540 = vmatpush1.msra.mxu0 0.0
    %541 = vmatprep.subr.mxu0 0.0
    %542 = vmatpush1.msra.mxu0 0.0
    %543 = vmatprep.subr.mxu0 0.0
    %544 = vmatpush1.msra.mxu0 0.0
    %545 = vmatprep.subr.mxu0 0.0
    %546 = vmatpush1.msra.mxu0 0.0
    %547 = vmatprep.subr.mxu0 0.0
    %548 = vmatpush1.msra.mxu0 0.0
    %549 = vmatprep.subr.mxu0 0.0
    %550 = vmatpush1.msra.mxu0 0.0
    %551 = vmatprep.subr.mxu0 0.0
    %552 = vmatpush1.msra.mxu0 0.0
    %553 = vmatprep.subr.mxu0 0.0
    %554 = vmatpush1.msra.mxu0 0.0
    %555 = vmatprep.subr.mxu0 0.0
    %556 = vmatpush1.msra.mxu0 0.0
    %557 = vmatprep.subr.mxu0 0.0
    %558 = vmatpush1.msra.mxu0 0.0
    %559 = vmatprep.subr.mxu0 0.0
    %560 = vmatpush1.msra.mxu0 0.0
    %561 = vmatprep.subr.mxu0 0.0
    %562 = vmatpush1.msra.mxu0 0.0
    %563 = vmatprep.subr.mxu0 0.0
    %564 = vmatpush1.msra.mxu0 0.0
    %565 = vmatprep.subr.mxu0 0.0
    %566 = vmatpush1.msra.mxu0 0.0
    %567 = vmatprep.subr.mxu0 0.0
    %568 = vmatpush1.msra.mxu0 0.0
    %569 = vmatprep.subr.mxu0 0.0
    %570 = vmatpush1.msra.mxu0 0.0
    %571 = vmatprep.subr.mxu0 0.0
    %572 = vmatpush1.msra.mxu0 0.0
    %573 = vmatprep.subr.mxu0 0.0
    %574 = vmatpush1.msra.mxu0 0.0
    %575 = vmatprep.subr.mxu0 0.0
    %576 = vmatpush1.msra.mxu0 0.0
    %577 = vmatprep.subr.mxu0 0.0
    %578 = vmatpush1.msra.mxu0 0.0
    %579 = vmatprep.subr.mxu0 0.0
    %580 = vmatpush1.msra.mxu0 0.0
    %581 = vmatprep.subr.mxu0 0.0
    %582 = vmatpush1.msra.mxu0 0.0
    %583 = vmatprep.subr.mxu0 0.0
    %584 = vmatpush1.msra.mxu0 0.0
    %585 = vmatprep.subr.mxu0 0.0
    %586 = vmatpush1.msra.mxu0 0.0
    %587 = vmatprep.subr.mxu0 0.0
    %588 = vmatpush1.msra.mxu0 0.0
    %589 = vmatprep.subr.mxu0 0.0
    %590 = vmatpush1.msra.mxu0 0.0
    %591 = vmatprep.subr.mxu0 0.0
    %592 = vmatpush1.msra.mxu0 0.0
    %593 = vmatprep.subr.mxu0 0.0
    %594 = vmatpush1.msra.mxu0 0.0
    %595 = vmatprep.subr.mxu0 0.0
    %596 = vmatpush1.msra.mxu0 0.0
    %597 = vmatprep.mubr.f32.mxu0 0.0
    %598 = vmatmul.mubr.f32.gmra.mrb[0].mxu0 %v528
    %v599 = vpop.f32.mrb[0].mxu0
    %v600 = vadd.f32 0.0, %v599
    %v601 = vpop.f32.mrb[0].mxu0
    %602 = vmatprep.mubr.f32.mxu0 0.0
    %603 = vmatmul.mubr.f32.gmra.mrb[0].mxu0 %v531
    %v604 = vpop.f32.mrb[0].mxu0
    %v605 = vadd.f32 0.0, %v604
    %v606 = vpop.f32.mrb[0].mxu0
    %607 = vdwg.mxu0
    %608 = vrot.lane.b32.xlu0 %v195, 96
    %v609 = vpop.permute.xlu0 %608
    %610 = vrot.lane.b32.xlu0 %v201, 96
    %v611 = vpop.permute.xlu0 %610
    %612 = vrot.lane.b32.xlu0 %v195, 32
    %v613 = vpop.permute.xlu0 %612
    %614 = vrot.lane.b32.xlu0 %v201, 32
    %v615 = vpop.permute.xlu0 %614
    %v616 = vsel %vm211, %v609, 0
    %v618 = vsel %vm211, %v611, 0
    %v620 = vsel %vm211, %v613, 0
    %v622 = vsel %vm211, %v615, 0
    %624 = vmatprep.subr.mxu0 0.0
    %625 = vmatpush1.xpose.msra.mxu0 %v620
    %626 = vmatprep.subr.mxu0 0.0
    %627 = vmatpush1.xpose.msra.mxu0 %v622
    %628 = vmatprep.subr.mxu0 0.0
    %629 = vmatpush1.xpose.msra.mxu0 0.0
    %630 = vmatprep.subr.mxu0 0.0
    %631 = vmatpush1.xpose.msra.mxu0 0.0
    %632 = vmatprep.subr.mxu0 0.0
    %633 = vmatpush1.xpose.msra.mxu0 0.0
    %634 = vmatprep.subr.mxu0 0.0
    %635 = vmatpush1.xpose.msra.mxu0 0.0
    %636 = vmatprep.subr.mxu0 0.0
    %637 = vmatpush1.xpose.msra.mxu0 0.0
    %638 = vmatprep.subr.mxu0 0.0
    %639 = vmatpush1.xpose.msra.mxu0 0.0
    %640 = vmatprep.subr.mxu0 0.0
    %641 = vmatpush1.xpose.msra.mxu0 0.0
    %642 = vmatprep.subr.mxu0 0.0
    %643 = vmatpush1.xpose.msra.mxu0 0.0
    %644 = vmatprep.subr.mxu0 0.0
    %645 = vmatpush1.xpose.msra.mxu0 0.0
    %646 = vmatprep.subr.mxu0 0.0
    %647 = vmatpush1.xpose.msra.mxu0 0.0
    %648 = vmatprep.subr.mxu0 0.0
    %649 = vmatpush1.xpose.msra.mxu0 0.0
    %650 = vmatprep.subr.mxu0 0.0
    %651 = vmatpush1.xpose.msra.mxu0 0.0
    %652 = vmatprep.subr.mxu0 0.0
    %653 = vmatpush1.xpose.msra.mxu0 0.0
    %654 = vmatprep.subr.mxu0 0.0
    %655 = vmatpush1.xpose.msra.mxu0 0.0
    %656 = vmatprep.subr.mxu0 0.0
    %657 = vmatpush1.xpose.msra.mxu0 0.0
    %658 = vmatprep.subr.mxu0 0.0
    %659 = vmatpush1.xpose.msra.mxu0 0.0
    %660 = vmatprep.subr.mxu0 0.0
    %661 = vmatpush1.xpose.msra.mxu0 0.0
    %662 = vmatprep.subr.mxu0 0.0
    %663 = vmatpush1.xpose.msra.mxu0 0.0
    %664 = vmatprep.subr.mxu0 0.0
    %665 = vmatpush1.xpose.msra.mxu0 0.0
    %666 = vmatprep.subr.mxu0 0.0
    %667 = vmatpush1.xpose.msra.mxu0 0.0
    %668 = vmatprep.subr.mxu0 0.0
    %669 = vmatpush1.xpose.msra.mxu0 0.0
    %670 = vmatprep.subr.mxu0 0.0
    %671 = vmatpush1.xpose.msra.mxu0 0.0
    %672 = vmatprep.subr.mxu0 0.0
    %673 = vmatpush1.xpose.msra.mxu0 0.0
    %674 = vmatprep.subr.mxu0 0.0
    %675 = vmatpush1.xpose.msra.mxu0 0.0
    %676 = vmatprep.subr.mxu0 0.0
    %677 = vmatpush1.xpose.msra.mxu0 0.0
    %678 = vmatprep.subr.mxu0 0.0
    %679 = vmatpush1.xpose.msra.mxu0 0.0
    %680 = vmatprep.subr.mxu0 0.0
    %681 = vmatpush1.xpose.msra.mxu0 0.0
    %682 = vmatprep.subr.mxu0 0.0
    %683 = vmatpush1.xpose.msra.mxu0 0.0
    %684 = vmatprep.subr.mxu0 0.0
    %685 = vmatpush1.xpose.msra.mxu0 0.0
    %686 = vmatprep.subr.mxu0 0.0
    %687 = vmatpush1.xpose.msra.mxu0 0.0
    %688 = vmatprep.mubr.f32.mxu0 0.0
    %689 = vmatmul.mubr.f32.gmra.mrb[0].mxu0 %v616
    %v690 = vpop.f32.mrb[0].mxu0
    %v691 = vadd.f32 0.0, %v690
    %v692 = vpop.f32.mrb[0].mxu0
    %693 = vmatprep.mubr.f32.mxu0 0.0
    %694 = vmatmul.mubr.f32.gmra.mrb[0].mxu0 %v618
    %v695 = vpop.f32.mrb[0].mxu0
    %v696 = vadd.f32 0.0, %v695
    %v697 = vpop.f32.mrb[0].mxu0
    %698 = vdwg.mxu0
    %v699 = vmul.f32 %v691, 0.25
    %v700 = vmul.f32 %v696, 0.25
    %v701 = vadd.f32 %v699, %v91
    %v702 = vadd.f32 %v700, %v92
    %v703 = vsel %vm211, %v701, -inf
    %704 = vmax.xlane.f32.xlu0 %v703
    %v705 = vpop.xlane.xlu0 %704
    %v706 = vsel %vm211, %v702, -inf
    %707 = vmax.xlane.f32.xlu0 %v706
    %v708 = vpop.xlane.xlu0 %707
    %v709 = vsub.f32 %v701, %v705
    %v710 = vsub.f32 %v702, %v708
    %v711 = vmul.f32 %v709, 1.442695
    %v712 = vpow.pop %v711
    %v713 = vmul.f32 %v710, 1.442695
    %v714 = vpow.pop %v713
    %v715 = vsel %vm211, %v712, 0.0
    %716 = vadd.xlane.f32.xlu0 %v715
    %v717 = vpop.xlane.xlu0 %716
    %v718 = vsel %vm211, %v714, 0.0
    %719 = vadd.xlane.f32.xlu0 %v718
    %v720 = vpop.xlane.xlu0 %719
    %v721 = vrcp.pop %v717
    %v722 = vmul.f32 %v712, %v721
    %v723 = vrcp.pop %v720
    %v724 = vmul.f32 %v714, %v723
    %725 = vrot.lane.b32.xlu0 %v197, 96
    %v726 = vpop.permute.xlu0 %725
    %727 = vrot.lane.b32.xlu0 %v203, 96
    %v728 = vpop.permute.xlu0 %727
    %v732 = vsel %vm211, %v722, 0
    %v735 = vsel %vm211, %v724, 0
    %737 = vmatprep.subr.mxu0 0.0
    %738 = vmatpush1.msra.mxu0 %v726
    %739 = vmatprep.subr.mxu0 0.0
    %740 = vmatpush1.msra.mxu0 %v728
    %741 = vmatprep.subr.mxu0 0.0
    %742 = vmatpush1.msra.mxu0 0.0
    %743 = vmatprep.subr.mxu0 0.0
    %744 = vmatpush1.msra.mxu0 0.0
    %745 = vmatprep.subr.mxu0 0.0
    %746 = vmatpush1.msra.mxu0 0.0
    %747 = vmatprep.subr.mxu0 0.0
    %748 = vmatpush1.msra.mxu0 0.0
    %749 = vmatprep.subr.mxu0 0.0
    %750 = vmatpush1.msra.mxu0 0.0
    %751 = vmatprep.subr.mxu0 0.0
    %752 = vmatpush1.msra.mxu0 0.0
    %753 = vmatprep.subr.mxu0 0.0
    %754 = vmatpush1.msra.mxu0 0.0
    %755 = vmatprep.subr.mxu0 0.0
    %756 = vmatpush1.msra.mxu0 0.0
    %757 = vmatprep.subr.mxu0 0.0
    %758 = vmatpush1.msra.mxu0 0.0
    %759 = vmatprep.subr.mxu0 0.0
    %760 = vmatpush1.msra.mxu0 0.0
    %761 = vmatprep.subr.mxu0 0.0
    %762 = vmatpush1.msra.mxu0 0.0
    %763 = vmatprep.subr.mxu0 0.0
    %764 = vmatpush1.msra.mxu0 0.0
    %765 = vmatprep.subr.mxu0 0.0
    %766 = vmatpush1.msra.mxu0 0.0
    %767 = vmatprep.subr.mxu0 0.0
    %768 = vmatpush1.msra.mxu0 0.0
    %769 = vmatprep.subr.mxu0 0.0
    %770 = vmatpush1.msra.mxu0 0.0
    %771 = vmatprep.subr.mxu0 0.0
    %772 = vmatpush1.msra.mxu0 0.0
    %773 = vmatprep.subr.mxu0 0.0
    %774 = vmatpush1.msra.mxu0 0.0
    %775 = vmatprep.subr.mxu0 0.0
    %776 = vmatpush1.msra.mxu0 0.0
    %777 = vmatprep.subr.mxu0 0.0
    %778 = vmatpush1.msra.mxu0 0.0
    %779 = vmatprep.subr.mxu0 0.0
    %780 = vmatpush1.msra.mxu0 0.0
    %781 = vmatprep.subr.mxu0 0.0
    %782 = vmatpush1.msra.mxu0 0.0
    %783 = vmatprep.subr.mxu0 0.0
    %784 = vmatpush1.msra.mxu0 0.0
    %785 = vmatprep.subr.mxu0 0.0
    %786 = vmatpush1.msra.mxu0 0.0
    %787 = vmatprep.subr.mxu0 0.0
    %788 = vmatpush1.msra.mxu0 0.0
    %789 = vmatprep.subr.mxu0 0.0
    %790 = vmatpush1.msra.mxu0 0.0
    %791 = vmatprep.subr.mxu0 0.0
    %792 = vmatpush1.msra.mxu0 0.0
    %793 = vmatprep.subr.mxu0 0.0
    %794 = vmatpush1.msra.mxu0 0.0
    %795 = vmatprep.subr.mxu0 0.0
    %796 = vmatpush1.msra.mxu0 0.0
    %797 = vmatprep.subr.mxu0 0.0
    %798 = vmatpush1.msra.mxu0 0.0
    %799 = vmatprep.subr.mxu0 0.0
    %800 = vmatpush1.msra.mxu0 0.0
    %801 = vmatprep.mubr.f32.mxu0 0.0
    %802 = vmatmul.mubr.f32.gmra.mrb[0].mxu0 %v732
    %v803 = vpop.f32.mrb[0].mxu0
    %v804 = vadd.f32 0.0, %v803
    %v805 = vpop.f32.mrb[0].mxu0
    %806 = vmatprep.mubr.f32.mxu0 0.0
    %807 = vmatmul.mubr.f32.gmra.mrb[0].mxu0 %v735
    %v808 = vpop.f32.mrb[0].mxu0
    %v809 = vadd.f32 0.0, %v808
    %v810 = vpop.f32.mrb[0].mxu0
    %811 = vdwg.mxu0
    %812 = vrot.lane.b32.xlu0 %v195, 80
    %v813 = vpop.permute.xlu0 %812
    %814 = vrot.lane.b32.xlu0 %v201, 80
    %v815 = vpop.permute.xlu0 %814
    %816 = vrot.lane.b32.xlu0 %v195, 16
    %v817 = vpop.permute.xlu0 %816
    %818 = vrot.lane.b32.xlu0 %v201, 16
    %v819 = vpop.permute.xlu0 %818
    %v820 = vsel %vm211, %v813, 0
    %v822 = vsel %vm211, %v815, 0
    %v824 = vsel %vm211, %v817, 0
    %v826 = vsel %vm211, %v819, 0
    %828 = vmatprep.subr.mxu0 0.0
    %829 = vmatpush1.xpose.msra.mxu0 %v824
    %830 = vmatprep.subr.mxu0 0.0
    %831 = vmatpush1.xpose.msra.mxu0 %v826
    %832 = vmatprep.subr.mxu0 0.0
    %833 = vmatpush1.xpose.msra.mxu0 0.0
    %834 = vmatprep.subr.mxu0 0.0
    %835 = vmatpush1.xpose.msra.mxu0 0.0
    %836 = vmatprep.subr.mxu0 0.0
    %837 = vmatpush1.xpose.msra.mxu0 0.0
    %838 = vmatprep.subr.mxu0 0.0
    %839 = vmatpush1.xpose.msra.mxu0 0.0
    %840 = vmatprep.subr.mxu0 0.0
    %841 = vmatpush1.xpose.msra.mxu0 0.0
    %842 = vmatprep.subr.mxu0 0.0
    %843 = vmatpush1.xpose.msra.mxu0 0.0
    %844 = vmatprep.subr.mxu0 0.0
    %845 = vmatpush1.xpose.msra.mxu0 0.0
    %846 = vmatprep.subr.mxu0 0.0
    %847 = vmatpush1.xpose.msra.mxu0 0.0
    %848 = vmatprep.subr.mxu0 0.0
    %849 = vmatpush1.xpose.msra.mxu0 0.0
    %850 = vmatprep.subr.mxu0 0.0
    %851 = vmatpush1.xpose.msra.mxu0 0.0
    %852 = vmatprep.subr.mxu0 0.0
    %853 = vmatpush1.xpose.msra.mxu0 0.0
    %854 = vmatprep.subr.mxu0 0.0
    %855 = vmatpush1.xpose.msra.mxu0 0.0
    %856 = vmatprep.subr.mxu0 0.0
    %857 = vmatpush1.xpose.msra.mxu0 0.0
    %858 = vmatprep.subr.mxu0 0.0
    %859 = vmatpush1.xpose.msra.mxu0 0.0
    %860 = vmatprep.subr.mxu0 0.0
    %861 = vmatpush1.xpose.msra.mxu0 0.0
    %862 = vmatprep.subr.mxu0 0.0
    %863 = vmatpush1.xpose.msra.mxu0 0.0
    %864 = vmatprep.subr.mxu0 0.0
    %865 = vmatpush1.xpose.msra.mxu0 0.0
    %866 = vmatprep.subr.mxu0 0.0
    %867 = vmatpush1.xpose.msra.mxu0 0.0
    %868 = vmatprep.subr.mxu0 0.0
    %869 = vmatpush1.xpose.msra.mxu0 0.0
    %870 = vmatprep.subr.mxu0 0.0
    %871 = vmatpush1.xpose.msra.mxu0 0.0
    %872 = vmatprep.subr.mxu0 0.0
    %873 = vmatpush1.xpose.msra.mxu0 0.0
    %874 = vmatprep.subr.mxu0 0.0
    %875 = vmatpush1.xpose.msra.mxu0 0.0
    %876 = vmatprep.subr.mxu0 0.0
    %877 = vmatpush1.xpose.msra.mxu0 0.0
    %878 = vmatprep.subr.mxu0 0.0
    %879 = vmatpush1.xpose.msra.mxu0 0.0
    %880 = vmatprep.subr.mxu0 0.0
    %881 = vmatpush1.xpose.msra.mxu0 0.0
    %882 = vmatprep.subr.mxu0 0.0
    %883 = vmatpush1.xpose.msra.mxu0 0.0
    %884 = vmatprep.subr.mxu0 0.0
    %885 = vmatpush1.xpose.msra.mxu0 0.0
    %886 = vmatprep.subr.mxu0 0.0
    %887 = vmatpush1.xpose.msra.mxu0 0.0
    %888 = vmatprep.subr.mxu0 0.0
    %889 = vmatpush1.xpose.msra.mxu0 0.0
    %890 = vmatprep.subr.mxu0 0.0
    %891 = vmatpush1.xpose.msra.mxu0 0.0
    %892 = vmatprep.mubr.f32.mxu0 0.0
    %893 = vmatmul.mubr.f32.gmra.mrb[0].mxu0 %v820
    %v894 = vpop.f32.mrb[0].mxu0
    %v895 = vadd.f32 0.0, %v894
    %v896 = vpop.f32.mrb[0].mxu0
    %897 = vmatprep.mubr.f32.mxu0 0.0
    %898 = vmatmul.mubr.f32.gmra.mrb[0].mxu0 %v822
    %v899 = vpop.f32.mrb[0].mxu0
    %v900 = vadd.f32 0.0, %v899
    %v901 = vpop.f32.mrb[0].mxu0
    %902 = vdwg.mxu0
    %v903 = vmul.f32 %v895, 0.25
    %v904 = vmul.f32 %v900, 0.25
    %v905 = vadd.f32 %v903, %v91
    %v906 = vadd.f32 %v904, %v92
    %v907 = vsel %vm211, %v905, -inf
    %908 = vmax.xlane.f32.xlu0 %v907
    %v909 = vpop.xlane.xlu0 %908
    %v910 = vsel %vm211, %v906, -inf
    %911 = vmax.xlane.f32.xlu0 %v910
    %v912 = vpop.xlane.xlu0 %911
    %v913 = vsub.f32 %v905, %v909
    %v914 = vsub.f32 %v906, %v912
    %v915 = vmul.f32 %v913, 1.442695
    %v916 = vpow.pop %v915
    %v917 = vmul.f32 %v914, 1.442695
    %v918 = vpow.pop %v917
    %v919 = vsel %vm211, %v916, 0.0
    %920 = vadd.xlane.f32.xlu0 %v919
    %v921 = vpop.xlane.xlu0 %920
    %v922 = vsel %vm211, %v918, 0.0
    %923 = vadd.xlane.f32.xlu0 %v922
    %v924 = vpop.xlane.xlu0 %923
    %v925 = vrcp.pop %v921
    %v926 = vmul.f32 %v916, %v925
    %v927 = vrcp.pop %v924
    %v928 = vmul.f32 %v918, %v927
    %929 = vrot.lane.b32.xlu0 %v197, 80
    %v930 = vpop.permute.xlu0 %929
    %931 = vrot.lane.b32.xlu0 %v203, 80
    %v932 = vpop.permute.xlu0 %931
    %v936 = vsel %vm211, %v926, 0
    %v939 = vsel %vm211, %v928, 0
    %941 = vmatprep.subr.mxu0 0.0
    %942 = vmatpush1.msra.mxu0 %v930
    %943 = vmatprep.subr.mxu0 0.0
    %944 = vmatpush1.msra.mxu0 %v932
    %945 = vmatprep.subr.mxu0 0.0
    %946 = vmatpush1.msra.mxu0 0.0
    %947 = vmatprep.subr.mxu0 0.0
    %948 = vmatpush1.msra.mxu0 0.0
    %949 = vmatprep.subr.mxu0 0.0
    %950 = vmatpush1.msra.mxu0 0.0
    %951 = vmatprep.subr.mxu0 0.0
    %952 = vmatpush1.msra.mxu0 0.0
    %953 = vmatprep.subr.mxu0 0.0
    %954 = vmatpush1.msra.mxu0 0.0
    %955 = vmatprep.subr.mxu0 0.0
    %956 = vmatpush1.msra.mxu0 0.0
    %957 = vmatprep.subr.mxu0 0.0
    %958 = vmatpush1.msra.mxu0 0.0
    %959 = vmatprep.subr.mxu0 0.0
    %960 = vmatpush1.msra.mxu0 0.0
    %961 = vmatprep.subr.mxu0 0.0
    %962 = vmatpush1.msra.mxu0 0.0
    %963 = vmatprep.subr.mxu0 0.0
    %964 = vmatpush1.msra.mxu0 0.0
    %965 = vmatprep.subr.mxu0 0.0
    %966 = vmatpush1.msra.mxu0 0.0
    %967 = vmatprep.subr.mxu0 0.0
    %968 = vmatpush1.msra.mxu0 0.0
    %969 = vmatprep.subr.mxu0 0.0
    %970 = vmatpush1.msra.mxu0 0.0
    %971 = vmatprep.subr.mxu0 0.0
    %972 = vmatpush1.msra.mxu0 0.0
    %973 = vmatprep.subr.mxu0 0.0
    %974 = vmatpush1.msra.mxu0 0.0
    %975 = vmatprep.subr.mxu0 0.0
    %976 = vmatpush1.msra.mxu0 0.0
    %977 = vmatprep.subr.mxu0 0.0
    %978 = vmatpush1.msra.mxu0 0.0
    %979 = vmatprep.subr.mxu0 0.0
    %980 = vmatpush1.msra.mxu0 0.0
    %981 = vmatprep.subr.mxu0 0.0
    %982 = vmatpush1.msra.mxu0 0.0
    %983 = vmatprep.subr.mxu0 0.0
    %984 = vmatpush1.msra.mxu0 0.0
    %985 = vmatprep.subr.mxu0 0.0
    %986 = vmatpush1.msra.mxu0 0.0
    %987 = vmatprep.subr.mxu0 0.0
    %988 = vmatpush1.msra.mxu0 0.0
    %989 = vmatprep.subr.mxu0 0.0
    %990 = vmatpush1.msra.mxu0 0.0
    %991 = vmatprep.subr.mxu0 0.0
    %992 = vmatpush1.msra.mxu0 0.0
    %993 = vmatprep.subr.mxu0 0.0
    %994 = vmatpush1.msra.mxu0 0.0
    %995 = vmatprep.subr.mxu0 0.0
    %996 = vmatpush1.msra.mxu0 0.0
    %997 = vmatprep.subr.mxu0 0.0
    %998 = vmatpush1.msra.mxu0 0.0
    %999 = vmatprep.subr.mxu0 0.0
    %1000 = vmatpush1.msra.mxu0 0.0
    %1001 = vmatprep.subr.mxu0 0.0
    %1002 = vmatpush1.msra.mxu0 0.0
    %1003 = vmatprep.subr.mxu0 0.0
    %1004 = vmatpush1.msra.mxu0 0.0
    %1005 = vmatprep.mubr.f32.mxu0 0.0
    %1006 = vmatmul.mubr.f32.gmra.mrb[0].mxu0 %v936
    %v1007 = vpop.f32.mrb[0].mxu0
    %v1008 = vadd.f32 0.0, %v1007
    %v1009 = vpop.f32.mrb[0].mxu0
    %1010 = vmatprep.mubr.f32.mxu0 0.0
    %1011 = vmatmul.mubr.f32.gmra.mrb[0].mxu0 %v939
    %v1012 = vpop.f32.mrb[0].mxu0
    %v1013 = vadd.f32 0.0, %v1012
    %v1014 = vpop.f32.mrb[0].mxu0
    %1015 = vdwg.mxu0
    %1018 = vrot.lane.b32.xlu0 %v600, 16
    %v1019 = vpop.permute.xlu0 %1018
    %1020 = vrot.lane.b32.xlu0 %v605, 16
    %v1021 = vpop.permute.xlu0 %1020
    %1026 = vrot.lane.b32.xlu0 %v804, 32
    %v1027 = vpop.permute.xlu0 %1026
    %1028 = vrot.lane.b32.xlu0 %v809, 32
    %v1029 = vpop.permute.xlu0 %1028
    %1034 = vrot.lane.b32.xlu0 %v1008, 48
    %v1035 = vpop.permute.xlu0 %1034
    %1036 = vrot.lane.b32.xlu0 %v1013, 48
    %v1037 = vpop.permute.xlu0 %1036
    %v1040 = vsel %vm211, %v394, %v1019
    %v1041 = vsel %vm211, %v399, %v1021
    %vm1042 = vcmask 261120
    %v1043 = vsel %vm1042, %v1040, %v1027
    %v1044 = vsel %vm1042, %v1041, %v1029
    %vm1045 = vcmask 392192
    %v1046 = vsel %vm1045, %v1043, %v1035
    %v1047 = vsel %vm1045, %v1044, %v1037
    %v1048 = vld [vmem:[%s4] sm:$0xff]
    %v1049 = vld [vmem:[%s4 + $0x8] sm:$0xff]
    %v1050 = vld [vmem:[%s4 + $0x10] sm:$0xff]
    %v1051 = vld [vmem:[%s4 + $0x18] sm:$0xff]
    %v1052 = vld [vmem:[%s4 + $0x20] sm:$0xff]
    %v1053 = vld [vmem:[%s4 + $0x28] sm:$0xff]
    %v1054 = vld [vmem:[%s4 + $0x30] sm:$0xff]
    %v1055 = vld [vmem:[%s4 + $0x38] sm:$0xff]
    %v1056 = vlaneseq
    %v1057 = vshrl.u32 %v1056, 7
    %v1058 = vsub.s32 0, %v1057
    %v1059 = vrot.slane %v93, %v1058
    %v1061 = vsel %vm51, %v1046, 0
    %v1064 = vsel %vm51, %v1047, 0
    %1066 = vmatprep.subr.mxu0 0.0
    %1067 = vmatpush1.msra.mxu0 %v1048
    %1068 = vmatprep.subr.mxu0 0.0
    %1069 = vmatpush1.msra.mxu0 %v1049
    %1070 = vmatprep.subr.mxu0 0.0
    %1071 = vmatpush1.msra.mxu0 %v1050
    %1072 = vmatprep.subr.mxu0 0.0
    %1073 = vmatpush1.msra.mxu0 %v1051
    %1074 = vmatprep.subr.mxu0 0.0
    %1075 = vmatpush1.msra.mxu0 %v1052
    %1076 = vmatprep.subr.mxu0 0.0
    %1077 = vmatpush1.msra.mxu0 %v1053
    %1078 = vmatprep.subr.mxu0 0.0
    %1079 = vmatpush1.msra.mxu0 %v1054
    %1080 = vmatprep.subr.mxu0 0.0
    %1081 = vmatpush1.msra.mxu0 %v1055
    %1082 = vmatprep.subr.mxu0 0.0
    %1083 = vmatpush1.msra.mxu0 0.0
    %1084 = vmatprep.subr.mxu0 0.0
    %1085 = vmatpush1.msra.mxu0 0.0
    %1086 = vmatprep.subr.mxu0 0.0
    %1087 = vmatpush1.msra.mxu0 0.0
    %1088 = vmatprep.subr.mxu0 0.0
    %1089 = vmatpush1.msra.mxu0 0.0
    %1090 = vmatprep.subr.mxu0 0.0
    %1091 = vmatpush1.msra.mxu0 0.0
    %1092 = vmatprep.subr.mxu0 0.0
    %1093 = vmatpush1.msra.mxu0 0.0
    %1094 = vmatprep.subr.mxu0 0.0
    %1095 = vmatpush1.msra.mxu0 0.0
    %1096 = vmatprep.subr.mxu0 0.0
    %1097 = vmatpush1.msra.mxu0 0.0
    %1098 = vmatprep.subr.mxu0 0.0
    %1099 = vmatpush1.msra.mxu0 0.0
    %1100 = vmatprep.subr.mxu0 0.0
    %1101 = vmatpush1.msra.mxu0 0.0
    %1102 = vmatprep.subr.mxu0 0.0
    %1103 = vmatpush1.msra.mxu0 0.0
    %1104 = vmatprep.subr.mxu0 0.0
    %1105 = vmatpush1.msra.mxu0 0.0
    %1106 = vmatprep.subr.mxu0 0.0
    %1107 = vmatpush1.msra.mxu0 0.0
    %1108 = vmatprep.subr.mxu0 0.0
    %1109 = vmatpush1.msra.mxu0 0.0
    %1110 = vmatprep.subr.mxu0 0.0
    %1111 = vmatpush1.msra.mxu0 0.0
    %1112 = vmatprep.subr.mxu0 0.0
    %1113 = vmatpush1.msra.mxu0 0.0
    %1114 = vmatprep.subr.mxu0 0.0
    %1115 = vmatpush1.msra.mxu0 0.0
    %1116 = vmatprep.subr.mxu0 0.0
    %1117 = vmatpush1.msra.mxu0 0.0
    %1118 = vmatprep.subr.mxu0 0.0
    %1119 = vmatpush1.msra.mxu0 0.0
    %1120 = vmatprep.subr.mxu0 0.0
    %1121 = vmatpush1.msra.mxu0 0.0
    %1122 = vmatprep.subr.mxu0 0.0
    %1123 = vmatpush1.msra.mxu0 0.0
    %1124 = vmatprep.subr.mxu0 0.0
    %1125 = vmatpush1.msra.mxu0 0.0
    %1126 = vmatprep.subr.mxu0 0.0
    %1127 = vmatpush1.msra.mxu0 0.0
    %1128 = vmatprep.subr.mxu0 0.0
    %1129 = vmatpush1.msra.mxu0 0.0
    %1130 = vmatprep.mubr.f32.mxu0 0.0
    %1131 = vmatmul.mubr.f32.gmra.mrb[0].mxu0 %v1061
    %v1132 = vpop.f32.mrb[0].mxu0
    %v1133 = vadd.f32 %v1059, %v1132
    %v1134 = vpop.f32.mrb[0].mxu0
    %1135 = vmatprep.mubr.f32.mxu0 0.0
    %1136 = vmatmul.mubr.f32.gmra.mrb[0].mxu0 %v1064
    %v1137 = vpop.f32.mrb[0].mxu0
    %v1138 = vadd.f32 %v1059, %v1137
    %v1139 = vpop.f32.mrb[0].mxu0
    %1140 = vdwg.mxu0
    %v1141 = vadd.f32 %v89, %v1133
    %v1142 = vadd.f32 %v90, %v1138
    %v1143 = vsel %vm51, %v1141, 0.0
    %1144 = vadd.xlane.f32.xlu0 %v1143
    %v1145 = vpop.xlane.xlu0 %1144
    %v1146 = vsel %vm51, %v1142, 0.0
    %1147 = vadd.xlane.f32.xlu0 %v1146
    %v1148 = vpop.xlane.xlu0 %1147
    %v1149 = vmul.f32 %v1145, %v58
    %v1150 = vmul.f32 %v1148, %v58
    %v1151 = vsub.f32 %v1141, %v1149
    %v1152 = vsub.f32 %v1142, %v1150
    %v1153 = vmul.f32 %v1151, %v1151
    %v1154 = vmul.f32 %v1152, %v1152
    %v1155 = vsel %vm51, %v1153, 0.0
    %1156 = vadd.xlane.f32.xlu0 %v1155
    %v1157 = vpop.xlane.xlu0 %1156
    %v1158 = vsel %vm51, %v1154, 0.0
    %1159 = vadd.xlane.f32.xlu0 %v1158
    %v1160 = vpop.xlane.xlu0 %1159
    %v1161 = vmul.f32 %v1157, %v58
    %v1162 = vmul.f32 %v1160, %v58
    %v1163 = vadd.f32 %v1161, 1e-12
    %v1164 = vadd.f32 %v1162, 1e-12
    %v1165 = vrsqrt.pop %v1163
    %v1166 = vrsqrt.pop %v1164
    %v1167 = vmul.f32 %v1151, %v1165
    %v1168 = vmul.f32 %v1152, %v1166
    %v1169 = vlaneseq
    %v1170 = vshrl.u32 %v1169, 7
    %v1171 = vsub.s32 1, %v1170
    %v1172 = vrot.slane %v93, %v1171
    %v1173 = vmul.f32 %v1167, %v1172
    %v1174 = vmul.f32 %v1168, %v1172
    %v1175 = vlaneseq
    %v1176 = vshrl.u32 %v1175, 7
    %v1177 = vsub.s32 2, %v1176
    %v1178 = vrot.slane %v93, %v1177
    %v1179 = vadd.f32 %v1173, %v1178
    %v1180 = vadd.f32 %v1174, %v1178
    %v1181 = vld [vmem:[%s5] sm:$0xff]
    %v1182 = vld [vmem:[%s5 + $0x8] sm:$0xff]
    %v1183 = vld [vmem:[%s5 + $0x10] sm:$0xff]
    %v1184 = vld [vmem:[%s5 + $0x18] sm:$0xff]
    %v1185 = vld [vmem:[%s5 + $0x20] sm:$0xff]
    %v1186 = vld [vmem:[%s5 + $0x28] sm:$0xff]
    %v1187 = vld [vmem:[%s5 + $0x30] sm:$0xff]
    %v1188 = vld [vmem:[%s5 + $0x38] sm:$0xff]
    %v1189 = vld [vmem:[%s6] sm:$0x1]
    %v1191 = vlaneseq
    %v1192 = vshrl.u32 %v1191, 7
    %v1193 = vsub.s32 0, %v1192
    %v1194 = vrot.slane %v1189, %v1193
    %v1197 = vsel %vm51, %v1179, 0
    %v1200 = vsel %vm51, %v1180, 0
    %1202 = vmatprep.subr.mxu0 0.0
    %1203 = vmatpush1.msra.mxu0 %v1181
    %1204 = vmatprep.subr.mxu0 0.0
    %1205 = vmatpush1.msra.mxu0 %v1182
    %1206 = vmatprep.subr.mxu0 0.0
    %1207 = vmatpush1.msra.mxu0 %v1183
    %1208 = vmatprep.subr.mxu0 0.0
    %1209 = vmatpush1.msra.mxu0 %v1184
    %1210 = vmatprep.subr.mxu0 0.0
    %1211 = vmatpush1.msra.mxu0 %v1185
    %1212 = vmatprep.subr.mxu0 0.0
    %1213 = vmatpush1.msra.mxu0 %v1186
    %1214 = vmatprep.subr.mxu0 0.0
    %1215 = vmatpush1.msra.mxu0 %v1187
    %1216 = vmatprep.subr.mxu0 0.0
    %1217 = vmatpush1.msra.mxu0 %v1188
    %1218 = vmatprep.subr.mxu0 0.0
    %1219 = vmatpush1.msra.mxu0 0.0
    %1220 = vmatprep.subr.mxu0 0.0
    %1221 = vmatpush1.msra.mxu0 0.0
    %1222 = vmatprep.subr.mxu0 0.0
    %1223 = vmatpush1.msra.mxu0 0.0
    %1224 = vmatprep.subr.mxu0 0.0
    %1225 = vmatpush1.msra.mxu0 0.0
    %1226 = vmatprep.subr.mxu0 0.0
    %1227 = vmatpush1.msra.mxu0 0.0
    %1228 = vmatprep.subr.mxu0 0.0
    %1229 = vmatpush1.msra.mxu0 0.0
    %1230 = vmatprep.subr.mxu0 0.0
    %1231 = vmatpush1.msra.mxu0 0.0
    %1232 = vmatprep.subr.mxu0 0.0
    %1233 = vmatpush1.msra.mxu0 0.0
    %1234 = vmatprep.subr.mxu0 0.0
    %1235 = vmatpush1.msra.mxu0 0.0
    %1236 = vmatprep.subr.mxu0 0.0
    %1237 = vmatpush1.msra.mxu0 0.0
    %1238 = vmatprep.subr.mxu0 0.0
    %1239 = vmatpush1.msra.mxu0 0.0
    %1240 = vmatprep.subr.mxu0 0.0
    %1241 = vmatpush1.msra.mxu0 0.0
    %1242 = vmatprep.subr.mxu0 0.0
    %1243 = vmatpush1.msra.mxu0 0.0
    %1244 = vmatprep.subr.mxu0 0.0
    %1245 = vmatpush1.msra.mxu0 0.0
    %1246 = vmatprep.subr.mxu0 0.0
    %1247 = vmatpush1.msra.mxu0 0.0
    %1248 = vmatprep.subr.mxu0 0.0
    %1249 = vmatpush1.msra.mxu0 0.0
    %1250 = vmatprep.subr.mxu0 0.0
    %1251 = vmatpush1.msra.mxu0 0.0
    %1252 = vmatprep.subr.mxu0 0.0
    %1253 = vmatpush1.msra.mxu0 0.0
    %1254 = vmatprep.subr.mxu0 0.0
    %1255 = vmatpush1.msra.mxu0 0.0
    %1256 = vmatprep.subr.mxu0 0.0
    %1257 = vmatpush1.msra.mxu0 0.0
    %1258 = vmatprep.subr.mxu0 0.0
    %1259 = vmatpush1.msra.mxu0 0.0
    %1260 = vmatprep.subr.mxu0 0.0
    %1261 = vmatpush1.msra.mxu0 0.0
    %1262 = vmatprep.subr.mxu0 0.0
    %1263 = vmatpush1.msra.mxu0 0.0
    %1264 = vmatprep.subr.mxu0 0.0
    %1265 = vmatpush1.msra.mxu0 0.0
    %1266 = vmatprep.mubr.f32.mxu0 0.0
    %1267 = vmatmul.mubr.f32.gmra.mrb[0].mxu0 %v1197
    %v1268 = vpop.f32.mrb[0].mxu0
    %v1269 = vadd.f32 %v1194, %v1268
    %v1270 = vpop.f32.mrb[0].mxu0
    %1271 = vmatprep.mubr.f32.mxu0 0.0
    %1272 = vmatmul.mubr.f32.gmra.mrb[0].mxu0 %v1200
    %v1273 = vpop.f32.mrb[0].mxu0
    %v1274 = vadd.f32 %v1194, %v1273
    %v1275 = vpop.f32.mrb[0].mxu0
    %1276 = vdwg.mxu0
    %v1277 = vmul.f32 %v1269, 0.5
    %v1278 = vmul.f32 %v1274, 0.5
    %v1279 = vmul.f32 %v1269, 0.044715
    %v1280 = vmul.f32 %v1274, 0.044715
    %v1281 = vmul.f32 %v1279, %v1269
    %v1282 = vmul.f32 %v1280, %v1274
    %v1283 = vmul.f32 %v1281, %v1269
    %v1284 = vmul.f32 %v1282, %v1274
    %v1285 = vadd.f32 %v1269, %v1283
    %v1286 = vadd.f32 %v1274, %v1284
    %v1287 = vmul.f32 %v1285, 0.7978846
    %v1288 = vmul.f32 %v1286, 0.7978846
    %v1289 = vtanh.pop %v1287
    %v1290 = vtanh.pop %v1288
    %v1291 = vadd.f32 %v1289, 1.0
    %v1292 = vadd.f32 %v1290, 1.0
    %v1293 = vmul.f32 %v1277, %v1291
    %v1294 = vmul.f32 %v1278, %v1292
    %v1295 = vld [vmem:[%s7] sm:$0xff]
    %v1296 = vld [vmem:[%s7 + $0x8] sm:$0xff]
    %v1297 = vld [vmem:[%s7 + $0x10] sm:$0xff]
    %v1298 = vld [vmem:[%s7 + $0x18] sm:$0xff]
    %v1299 = vld [vmem:[%s7 + $0x20] sm:$0xff]
    %v1300 = vld [vmem:[%s7 + $0x28] sm:$0xff]
    %v1301 = vld [vmem:[%s7 + $0x30] sm:$0xff]
    %v1302 = vld [vmem:[%s7 + $0x38] sm:$0xff]
    %v1303 = vld [vmem:[%s7 + $0x40] sm:$0xff]
    %v1304 = vld [vmem:[%s7 + $0x48] sm:$0xff]
    %v1305 = vld [vmem:[%s7 + $0x50] sm:$0xff]
    %v1306 = vld [vmem:[%s7 + $0x58] sm:$0xff]
    %v1307 = vld [vmem:[%s7 + $0x60] sm:$0xff]
    %v1308 = vld [vmem:[%s7 + $0x68] sm:$0xff]
    %v1309 = vld [vmem:[%s7 + $0x70] sm:$0xff]
    %v1310 = vld [vmem:[%s7 + $0x78] sm:$0xff]
    %v1311 = vlaneseq
    %v1312 = vshrl.u32 %v1311, 7
    %v1313 = vsub.s32 3, %v1312
    %v1314 = vrot.slane %v93, %v1313
    %1315 = vmatprep.subr.mxu0 0.0
    %1316 = vmatpush1.msra.mxu0 %v1295
    %1317 = vmatprep.subr.mxu0 0.0
    %1318 = vmatpush1.msra.mxu0 %v1296
    %1319 = vmatprep.subr.mxu0 0.0
    %1320 = vmatpush1.msra.mxu0 %v1297
    %1321 = vmatprep.subr.mxu0 0.0
    %1322 = vmatpush1.msra.mxu0 %v1298
    %1323 = vmatprep.subr.mxu0 0.0
    %1324 = vmatpush1.msra.mxu0 %v1299
    %1325 = vmatprep.subr.mxu0 0.0
    %1326 = vmatpush1.msra.mxu0 %v1300
    %1327 = vmatprep.subr.mxu0 0.0
    %1328 = vmatpush1.msra.mxu0 %v1301
    %1329 = vmatprep.subr.mxu0 0.0
    %1330 = vmatpush1.msra.mxu0 %v1302
    %1331 = vmatprep.subr.mxu0 0.0
    %1332 = vmatpush1.msra.mxu0 %v1303
    %1333 = vmatprep.subr.mxu0 0.0
    %1334 = vmatpush1.msra.mxu0 %v1304
    %1335 = vmatprep.subr.mxu0 0.0
    %1336 = vmatpush1.msra.mxu0 %v1305
    %1337 = vmatprep.subr.mxu0 0.0
    %1338 = vmatpush1.msra.mxu0 %v1306
    %1339 = vmatprep.subr.mxu0 0.0
    %1340 = vmatpush1.msra.mxu0 %v1307
    %1341 = vmatprep.subr.mxu0 0.0
    %1342 = vmatpush1.msra.mxu0 %v1308
    %1343 = vmatprep.subr.mxu0 0.0
    %1344 = vmatpush1.msra.mxu0 %v1309
    %1345 = vmatprep.subr.mxu0 0.0
    %1346 = vmatpush1.msra.mxu0 %v1310
    %1347 = vmatprep.subr.mxu0 0.0
    %1348 = vmatpush1.msra.mxu0 0.0
    %1349 = vmatprep.subr.mxu0 0.0
    %1350 = vmatpush1.msra.mxu0 0.0
    %1351 = vmatprep.subr.mxu0 0.0
    %1352 = vmatpush1.msra.mxu0 0.0
    %1353 = vmatprep.subr.mxu0 0.0
    %1354 = vmatpush1.msra.mxu0 0.0
    %1355 = vmatprep.subr.mxu0 0.0
    %1356 = vmatpush1.msra.mxu0 0.0
    %1357 = vmatprep.subr.mxu0 0.0
    %1358 = vmatpush1.msra.mxu0 0.0
    %1359 = vmatprep.subr.mxu0 0.0
    %1360 = vmatpush1.msra.mxu0 0.0
    %1361 = vmatprep.subr.mxu0 0.0
    %1362 = vmatpush1.msra.mxu0 0.0
    %1363 = vmatprep.subr.mxu0 0.0
    %1364 = vmatpush1.msra.mxu0 0.0
    %1365 = vmatprep.subr.mxu0 0.0
    %1366 = vmatpush1.msra.mxu0 0.0
    %1367 = vmatprep.subr.mxu0 0.0
    %1368 = vmatpush1.msra.mxu0 0.0
    %1369 = vmatprep.subr.mxu0 0.0
    %1370 = vmatpush1.msra.mxu0 0.0
    %1371 = vmatprep.subr.mxu0 0.0
    %1372 = vmatpush1.msra.mxu0 0.0
    %1373 = vmatprep.subr.mxu0 0.0
    %1374 = vmatpush1.msra.mxu0 0.0
    %1375 = vmatprep.subr.mxu0 0.0
    %1376 = vmatpush1.msra.mxu0 0.0
    %1377 = vmatprep.subr.mxu0 0.0
    %1378 = vmatpush1.msra.mxu0 0.0
    %1379 = vmatprep.mubr.f32.mxu0 0.0
    %1380 = vmatmul.mubr.f32.gmra.mrb[0].mxu0 %v1293
    %v1381 = vpop.f32.mrb[0].mxu0
    %v1382 = vadd.f32 %v1314, %v1381
    %v1383 = vpop.f32.mrb[0].mxu0
    %1384 = vmatprep.mubr.f32.mxu0 0.0
    %1385 = vmatmul.mubr.f32.gmra.mrb[0].mxu0 %v1294
    %v1386 = vpop.f32.mrb[0].mxu0
    %v1387 = vadd.f32 %v1314, %v1386
    %v1388 = vpop.f32.mrb[0].mxu0
    %1389 = vdwg.mxu0
    %v1390 = vadd.f32 %v1179, %v1382
    %v1391 = vadd.f32 %v1180, %v1387
    %v1392 = vsel %vm51, %v1390, 0.0
    %1393 = vadd.xlane.f32.xlu0 %v1392
    %v1394 = vpop.xlane.xlu0 %1393
    %v1395 = vsel %vm51, %v1391, 0.0
    %1396 = vadd.xlane.f32.xlu0 %v1395
    %v1397 = vpop.xlane.xlu0 %1396
    %v1398 = vmul.f32 %v1394, %v58
    %v1399 = vmul.f32 %v1397, %v58
    %v1400 = vsub.f32 %v1390, %v1398
    %v1401 = vsub.f32 %v1391, %v1399
    %v1402 = vmul.f32 %v1400, %v1400
    %v1403 = vmul.f32 %v1401, %v1401
    %v1404 = vsel %vm51, %v1402, 0.0
    %1405 = vadd.xlane.f32.xlu0 %v1404
    %v1406 = vpop.xlane.xlu0 %1405
    %v1407 = vsel %vm51, %v1403, 0.0
    %1408 = vadd.xlane.f32.xlu0 %v1407
    %v1409 = vpop.xlane.xlu0 %1408
    %v1410 = vmul.f32 %v1406, %v58
    %v1411 = vmul.f32 %v1409, %v58
    %v1412 = vadd.f32 %v1410, 1e-12
    %v1413 = vadd.f32 %v1411, 1e-12
    %v1414 = vrsqrt.pop %v1412
    %v1415 = vrsqrt.pop %v1413
    %v1416 = vmul.f32 %v1400, %v1414
    %v1417 = vmul.f32 %v1401, %v1415
    %v1418 = vlaneseq
    %v1419 = vshrl.u32 %v1418, 7
    %v1420 = vsub.s32 4, %v1419
    %v1421 = vrot.slane %v93, %v1420
    %v1422 = vmul.f32 %v1416, %v1421
    %v1423 = vmul.f32 %v1417, %v1421
    %v1424 = vlaneseq
    %v1425 = vshrl.u32 %v1424, 7
    %v1426 = vsub.s32 5, %v1425
    %v1427 = vrot.slane %v93, %v1426
    %v1428 = vadd.f32 %v1422, %v1427
    %v1429 = vadd.f32 %v1423, %v1427
    %s1430 = scalar_lea.vmem %s8, 8
    %v1431 = vld [vmem:[%s1430] sm:$0x3f]
    %s1432 = scalar_lea.vmem %s2, 128
    %v1433 = vld [vmem:[%s1432] sm:$0xff]
    %v1434 = vld [vmem:[%s1432 + $0x8] sm:$0xff]
    %v1435 = vld [vmem:[%s1432 + $0x10] sm:$0xff]
    %v1436 = vld [vmem:[%s1432 + $0x18] sm:$0xff]
    %v1437 = vld [vmem:[%s1432 + $0x20] sm:$0xff]
    %v1438 = vld [vmem:[%s1432 + $0x28] sm:$0xff]
    %v1439 = vld [vmem:[%s1432 + $0x30] sm:$0xff]
    %v1440 = vld [vmem:[%s1432 + $0x38] sm:$0xff]
    %v1441 = vld [vmem:[%s1432 + $0x40] sm:$0xff]
    %v1442 = vld [vmem:[%s1432 + $0x48] sm:$0xff]
    %v1443 = vld [vmem:[%s1432 + $0x50] sm:$0xff]
    %v1444 = vld [vmem:[%s1432 + $0x58] sm:$0xff]
    %v1445 = vld [vmem:[%s1432 + $0x60] sm:$0xff]
    %v1446 = vld [vmem:[%s1432 + $0x68] sm:$0xff]
    %v1447 = vld [vmem:[%s1432 + $0x70] sm:$0xff]
    %v1448 = vld [vmem:[%s1432 + $0x78] sm:$0xff]
    %s1449 = scalar_lea.vmem %s3, 2
    %v1450 = vld [vmem:[%s1449] sm:$0x3]
    %v1452 = vlaneseq
    %v1453 = vshrl.u32 %v1452, 7
    %v1454 = vsub.s32 0, %v1453
    %v1455 = vrot.slane %v1450, %v1454
    %v1456 = vlaneseq
    %v1457 = vshrl.u32 %v1456, 7
    %v1458 = vsub.s32 1, %v1457
    %v1459 = vrot.slane %v1450, %v1458
    %v1463 = vsel %vm51, %v1428, 0
    %v1466 = vsel %vm51, %v1429, 0
    %1468 = vmatprep.subr.mxu0 %v1434
    %1469 = vmatpush1.msra.mxu0 %v1433
    %1470 = vmatprep.subr.mxu0 %v1436
    %1471 = vmatpush1.msra.mxu0 %v1435
    %1472 = vmatprep.subr.mxu0 %v1438
    %1473 = vmatpush1.msra.mxu0 %v1437
    %1474 = vmatprep.subr.mxu0 %v1440
    %1475 = vmatpush1.msra.mxu0 %v1439
    %1476 = vmatprep.subr.mxu0 %v1442
    %1477 = vmatpush1.msra.mxu0 %v1441
    %1478 = vmatprep.subr.mxu0 %v1444
    %1479 = vmatpush1.msra.mxu0 %v1443
    %1480 = vmatprep.subr.mxu0 %v1446
    %1481 = vmatpush1.msra.mxu0 %v1445
    %1482 = vmatprep.subr.mxu0 %v1448
    %1483 = vmatpush1.msra.mxu0 %v1447
    %1484 = vmatprep.subr.mxu0 0.0
    %1485 = vmatpush1.msra.mxu0 0.0
    %1486 = vmatprep.subr.mxu0 0.0
    %1487 = vmatpush1.msra.mxu0 0.0
    %1488 = vmatprep.subr.mxu0 0.0
    %1489 = vmatpush1.msra.mxu0 0.0
    %1490 = vmatprep.subr.mxu0 0.0
    %1491 = vmatpush1.msra.mxu0 0.0
    %1492 = vmatprep.subr.mxu0 0.0
    %1493 = vmatpush1.msra.mxu0 0.0
    %1494 = vmatprep.subr.mxu0 0.0
    %1495 = vmatpush1.msra.mxu0 0.0
    %1496 = vmatprep.subr.mxu0 0.0
    %1497 = vmatpush1.msra.mxu0 0.0
    %1498 = vmatprep.subr.mxu0 0.0
    %1499 = vmatpush1.msra.mxu0 0.0
    %1500 = vmatprep.subr.mxu0 0.0
    %1501 = vmatpush1.msra.mxu0 0.0
    %1502 = vmatprep.subr.mxu0 0.0
    %1503 = vmatpush1.msra.mxu0 0.0
    %1504 = vmatprep.subr.mxu0 0.0
    %1505 = vmatpush1.msra.mxu0 0.0
    %1506 = vmatprep.subr.mxu0 0.0
    %1507 = vmatpush1.msra.mxu0 0.0
    %1508 = vmatprep.subr.mxu0 0.0
    %1509 = vmatpush1.msra.mxu0 0.0
    %1510 = vmatprep.subr.mxu0 0.0
    %1511 = vmatpush1.msra.mxu0 0.0
    %1512 = vmatprep.subr.mxu0 0.0
    %1513 = vmatpush1.msra.mxu0 0.0
    %1514 = vmatprep.subr.mxu0 0.0
    %1515 = vmatpush1.msra.mxu0 0.0
    %1516 = vmatprep.subr.mxu0 0.0
    %1517 = vmatpush1.msra.mxu0 0.0
    %1518 = vmatprep.subr.mxu0 0.0
    %1519 = vmatpush1.msra.mxu0 0.0
    %1520 = vmatprep.subr.mxu0 0.0
    %1521 = vmatpush1.msra.mxu0 0.0
    %1522 = vmatprep.subr.mxu0 0.0
    %1523 = vmatpush1.msra.mxu0 0.0
    %1524 = vmatprep.subr.mxu0 0.0
    %1525 = vmatpush1.msra.mxu0 0.0
    %1526 = vmatprep.subr.mxu0 0.0
    %1527 = vmatpush1.msra.mxu0 0.0
    %1528 = vmatprep.subr.mxu0 0.0
    %1529 = vmatpush1.msra.mxu0 0.0
    %1530 = vmatprep.subr.mxu0 0.0
    %1531 = vmatpush1.msra.mxu0 0.0
    %1532 = vmatprep.mubr.f32.mxu0 0.0
    %1533 = vmatmul.mubr.f32.gmra.mrb[0].mxu0 %v1463
    %v1534 = vpop.f32.mrb[0].mxu0
    %v1535 = vadd.f32 %v1455, %v1534
    %v1536 = vpop.f32.mrb[0].mxu0
    %v1537 = vadd.f32 %v1459, %v1536
    %1538 = vmatprep.mubr.f32.mxu0 0.0
    %1539 = vmatmul.mubr.f32.gmra.mrb[0].mxu0 %v1466
    %v1540 = vpop.f32.mrb[0].mxu0
    %v1541 = vadd.f32 %v1455, %v1540
    %v1542 = vpop.f32.mrb[0].mxu0
    %v1543 = vadd.f32 %v1459, %v1542
    %1544 = vdwg.mxu0
    %1547 = vrot.lane.b32.xlu0 %v1535, 64
    %v1548 = vpop.permute.xlu0 %1547
    %1549 = vrot.lane.b32.xlu0 %v1541, 64
    %v1550 = vpop.permute.xlu0 %1549
    %v1551 = vsel %vm211, %v1535, 0
    %v1553 = vsel %vm211, %v1541, 0
    %v1555 = vsel %vm211, %v1548, 0
    %v1557 = vsel %vm211, %v1550, 0
    %1559 = vmatprep.subr.mxu0 0.0
    %1560 = vmatpush1.xpose.msra.mxu0 %v1555
    %1561 = vmatprep.subr.mxu0 0.0
    %1562 = vmatpush1.xpose.msra.mxu0 %v1557
    %1563 = vmatprep.subr.mxu0 0.0
    %1564 = vmatpush1.xpose.msra.mxu0 0.0
    %1565 = vmatprep.subr.mxu0 0.0
    %1566 = vmatpush1.xpose.msra.mxu0 0.0
    %1567 = vmatprep.subr.mxu0 0.0
    %1568 = vmatpush1.xpose.msra.mxu0 0.0
    %1569 = vmatprep.subr.mxu0 0.0
    %1570 = vmatpush1.xpose.msra.mxu0 0.0
    %1571 = vmatprep.subr.mxu0 0.0
    %1572 = vmatpush1.xpose.msra.mxu0 0.0
    %1573 = vmatprep.subr.mxu0 0.0
    %1574 = vmatpush1.xpose.msra.mxu0 0.0
    %1575 = vmatprep.subr.mxu0 0.0
    %1576 = vmatpush1.xpose.msra.mxu0 0.0
    %1577 = vmatprep.subr.mxu0 0.0
    %1578 = vmatpush1.xpose.msra.mxu0 0.0
    %1579 = vmatprep.subr.mxu0 0.0
    %1580 = vmatpush1.xpose.msra.mxu0 0.0
    %1581 = vmatprep.subr.mxu0 0.0
    %1582 = vmatpush1.xpose.msra.mxu0 0.0
    %1583 = vmatprep.subr.mxu0 0.0
    %1584 = vmatpush1.xpose.msra.mxu0 0.0
    %1585 = vmatprep.subr.mxu0 0.0
    %1586 = vmatpush1.xpose.msra.mxu0 0.0
    %1587 = vmatprep.subr.mxu0 0.0
    %1588 = vmatpush1.xpose.msra.mxu0 0.0
    %1589 = vmatprep.subr.mxu0 0.0
    %1590 = vmatpush1.xpose.msra.mxu0 0.0
    %1591 = vmatprep.subr.mxu0 0.0
    %1592 = vmatpush1.xpose.msra.mxu0 0.0
    %1593 = vmatprep.subr.mxu0 0.0
    %1594 = vmatpush1.xpose.msra.mxu0 0.0
    %1595 = vmatprep.subr.mxu0 0.0
    %1596 = vmatpush1.xpose.msra.mxu0 0.0
    %1597 = vmatprep.subr.mxu0 0.0
    %1598 = vmatpush1.xpose.msra.mxu0 0.0
    %1599 = vmatprep.subr.mxu0 0.0
    %1600 = vmatpush1.xpose.msra.mxu0 0.0
    %1601 = vmatprep.subr.mxu0 0.0
    %1602 = vmatpush1.xpose.msra.mxu0 0.0
    %1603 = vmatprep.subr.mxu0 0.0
    %1604 = vmatpush1.xpose.msra.mxu0 0.0
    %1605 = vmatprep.subr.mxu0 0.0
    %1606 = vmatpush1.xpose.msra.mxu0 0.0
    %1607 = vmatprep.subr.mxu0 0.0
    %1608 = vmatpush1.xpose.msra.mxu0 0.0
    %1609 = vmatprep.subr.mxu0 0.0
    %1610 = vmatpush1.xpose.msra.mxu0 0.0
    %1611 = vmatprep.subr.mxu0 0.0
    %1612 = vmatpush1.xpose.msra.mxu0 0.0
    %1613 = vmatprep.subr.mxu0 0.0
    %1614 = vmatpush1.xpose.msra.mxu0 0.0
    %1615 = vmatprep.subr.mxu0 0.0
    %1616 = vmatpush1.xpose.msra.mxu0 0.0
    %1617 = vmatprep.subr.mxu0 0.0
    %1618 = vmatpush1.xpose.msra.mxu0 0.0
    %1619 = vmatprep.subr.mxu0 0.0
    %1620 = vmatpush1.xpose.msra.mxu0 0.0
    %1621 = vmatprep.subr.mxu0 0.0
    %1622 = vmatpush1.xpose.msra.mxu0 0.0
    %1623 = vmatprep.mubr.f32.mxu0 0.0
    %1624 = vmatmul.mubr.f32.gmra.mrb[0].mxu0 %v1551
    %v1625 = vpop.f32.mrb[0].mxu0
    %v1626 = vadd.f32 0.0, %v1625
    %v1627 = vpop.f32.mrb[0].mxu0
    %1628 = vmatprep.mubr.f32.mxu0 0.0
    %1629 = vmatmul.mubr.f32.gmra.mrb[0].mxu0 %v1553
    %v1630 = vpop.f32.mrb[0].mxu0
    %v1631 = vadd.f32 0.0, %v1630
    %v1632 = vpop.f32.mrb[0].mxu0
    %1633 = vdwg.mxu0
    %v1634 = vmul.f32 %v1626, 0.25
    %v1635 = vmul.f32 %v1631, 0.25
    %v1636 = vadd.f32 %v1634, %v91
    %v1637 = vadd.f32 %v1635, %v92
    %v1638 = vsel %vm211, %v1636, -inf
    %1639 = vmax.xlane.f32.xlu0 %v1638
    %v1640 = vpop.xlane.xlu0 %1639
    %v1641 = vsel %vm211, %v1637, -inf
    %1642 = vmax.xlane.f32.xlu0 %v1641
    %v1643 = vpop.xlane.xlu0 %1642
    %v1644 = vsub.f32 %v1636, %v1640
    %v1645 = vsub.f32 %v1637, %v1643
    %v1646 = vmul.f32 %v1644, 1.442695
    %v1647 = vpow.pop %v1646
    %v1648 = vmul.f32 %v1645, 1.442695
    %v1649 = vpow.pop %v1648
    %v1650 = vsel %vm211, %v1647, 0.0
    %1651 = vadd.xlane.f32.xlu0 %v1650
    %v1652 = vpop.xlane.xlu0 %1651
    %v1653 = vsel %vm211, %v1649, 0.0
    %1654 = vadd.xlane.f32.xlu0 %v1653
    %v1655 = vpop.xlane.xlu0 %1654
    %v1656 = vrcp.pop %v1652
    %v1657 = vmul.f32 %v1647, %v1656
    %v1658 = vrcp.pop %v1655
    %v1659 = vmul.f32 %v1649, %v1658
    %v1661 = vsel %vm211, %v1657, 0
    %v1664 = vsel %vm211, %v1659, 0
    %1666 = vmatprep.subr.mxu0 0.0
    %1667 = vmatpush1.msra.mxu0 %v1537
    %1668 = vmatprep.subr.mxu0 0.0
    %1669 = vmatpush1.msra.mxu0 %v1543
    %1670 = vmatprep.subr.mxu0 0.0
    %1671 = vmatpush1.msra.mxu0 0.0
    %1672 = vmatprep.subr.mxu0 0.0
    %1673 = vmatpush1.msra.mxu0 0.0
    %1674 = vmatprep.subr.mxu0 0.0
    %1675 = vmatpush1.msra.mxu0 0.0
    %1676 = vmatprep.subr.mxu0 0.0
    %1677 = vmatpush1.msra.mxu0 0.0
    %1678 = vmatprep.subr.mxu0 0.0
    %1679 = vmatpush1.msra.mxu0 0.0
    %1680 = vmatprep.subr.mxu0 0.0
    %1681 = vmatpush1.msra.mxu0 0.0
    %1682 = vmatprep.subr.mxu0 0.0
    %1683 = vmatpush1.msra.mxu0 0.0
    %1684 = vmatprep.subr.mxu0 0.0
    %1685 = vmatpush1.msra.mxu0 0.0
    %1686 = vmatprep.subr.mxu0 0.0
    %1687 = vmatpush1.msra.mxu0 0.0
    %1688 = vmatprep.subr.mxu0 0.0
    %1689 = vmatpush1.msra.mxu0 0.0
    %1690 = vmatprep.subr.mxu0 0.0
    %1691 = vmatpush1.msra.mxu0 0.0
    %1692 = vmatprep.subr.mxu0 0.0
    %1693 = vmatpush1.msra.mxu0 0.0
    %1694 = vmatprep.subr.mxu0 0.0
    %1695 = vmatpush1.msra.mxu0 0.0
    %1696 = vmatprep.subr.mxu0 0.0
    %1697 = vmatpush1.msra.mxu0 0.0
    %1698 = vmatprep.subr.mxu0 0.0
    %1699 = vmatpush1.msra.mxu0 0.0
    %1700 = vmatprep.subr.mxu0 0.0
    %1701 = vmatpush1.msra.mxu0 0.0
    %1702 = vmatprep.subr.mxu0 0.0
    %1703 = vmatpush1.msra.mxu0 0.0
    %1704 = vmatprep.subr.mxu0 0.0
    %1705 = vmatpush1.msra.mxu0 0.0
    %1706 = vmatprep.subr.mxu0 0.0
    %1707 = vmatpush1.msra.mxu0 0.0
    %1708 = vmatprep.subr.mxu0 0.0
    %1709 = vmatpush1.msra.mxu0 0.0
    %1710 = vmatprep.subr.mxu0 0.0
    %1711 = vmatpush1.msra.mxu0 0.0
    %1712 = vmatprep.subr.mxu0 0.0
    %1713 = vmatpush1.msra.mxu0 0.0
    %1714 = vmatprep.subr.mxu0 0.0
    %1715 = vmatpush1.msra.mxu0 0.0
    %1716 = vmatprep.subr.mxu0 0.0
    %1717 = vmatpush1.msra.mxu0 0.0
    %1718 = vmatprep.subr.mxu0 0.0
    %1719 = vmatpush1.msra.mxu0 0.0
    %1720 = vmatprep.subr.mxu0 0.0
    %1721 = vmatpush1.msra.mxu0 0.0
    %1722 = vmatprep.subr.mxu0 0.0
    %1723 = vmatpush1.msra.mxu0 0.0
    %1724 = vmatprep.subr.mxu0 0.0
    %1725 = vmatpush1.msra.mxu0 0.0
    %1726 = vmatprep.subr.mxu0 0.0
    %1727 = vmatpush1.msra.mxu0 0.0
    %1728 = vmatprep.subr.mxu0 0.0
    %1729 = vmatpush1.msra.mxu0 0.0
    %1730 = vmatprep.mubr.f32.mxu0 0.0
    %1731 = vmatmul.mubr.f32.gmra.mrb[0].mxu0 %v1661
    %v1732 = vpop.f32.mrb[0].mxu0
    %v1733 = vadd.f32 0.0, %v1732
    %v1734 = vpop.f32.mrb[0].mxu0
    %1735 = vmatprep.mubr.f32.mxu0 0.0
    %1736 = vmatmul.mubr.f32.gmra.mrb[0].mxu0 %v1664
    %v1737 = vpop.f32.mrb[0].mxu0
    %v1738 = vadd.f32 0.0, %v1737
    %v1739 = vpop.f32.mrb[0].mxu0
    %1740 = vdwg.mxu0
    %1741 = vrot.lane.b32.xlu0 %v1535, 112
    %v1742 = vpop.permute.xlu0 %1741
    %1743 = vrot.lane.b32.xlu0 %v1541, 112
    %v1744 = vpop.permute.xlu0 %1743
    %1745 = vrot.lane.b32.xlu0 %v1535, 48
    %v1746 = vpop.permute.xlu0 %1745
    %1747 = vrot.lane.b32.xlu0 %v1541, 48
    %v1748 = vpop.permute.xlu0 %1747
    %v1749 = vsel %vm211, %v1742, 0
    %v1751 = vsel %vm211, %v1744, 0
    %v1753 = vsel %vm211, %v1746, 0
    %v1755 = vsel %vm211, %v1748, 0
    %1757 = vmatprep.subr.mxu0 0.0
    %1758 = vmatpush1.xpose.msra.mxu0 %v1753
    %1759 = vmatprep.subr.mxu0 0.0
    %1760 = vmatpush1.xpose.msra.mxu0 %v1755
    %1761 = vmatprep.subr.mxu0 0.0
    %1762 = vmatpush1.xpose.msra.mxu0 0.0
    %1763 = vmatprep.subr.mxu0 0.0
    %1764 = vmatpush1.xpose.msra.mxu0 0.0
    %1765 = vmatprep.subr.mxu0 0.0
    %1766 = vmatpush1.xpose.msra.mxu0 0.0
    %1767 = vmatprep.subr.mxu0 0.0
    %1768 = vmatpush1.xpose.msra.mxu0 0.0
    %1769 = vmatprep.subr.mxu0 0.0
    %1770 = vmatpush1.xpose.msra.mxu0 0.0
    %1771 = vmatprep.subr.mxu0 0.0
    %1772 = vmatpush1.xpose.msra.mxu0 0.0
    %1773 = vmatprep.subr.mxu0 0.0
    %1774 = vmatpush1.xpose.msra.mxu0 0.0
    %1775 = vmatprep.subr.mxu0 0.0
    %1776 = vmatpush1.xpose.msra.mxu0 0.0
    %1777 = vmatprep.subr.mxu0 0.0
    %1778 = vmatpush1.xpose.msra.mxu0 0.0
    %1779 = vmatprep.subr.mxu0 0.0
    %1780 = vmatpush1.xpose.msra.mxu0 0.0
    %1781 = vmatprep.subr.mxu0 0.0
    %1782 = vmatpush1.xpose.msra.mxu0 0.0
    %1783 = vmatprep.subr.mxu0 0.0
    %1784 = vmatpush1.xpose.msra.mxu0 0.0
    %1785 = vmatprep.subr.mxu0 0.0
    %1786 = vmatpush1.xpose.msra.mxu0 0.0
    %1787 = vmatprep.subr.mxu0 0.0
    %1788 = vmatpush1.xpose.msra.mxu0 0.0
    %1789 = vmatprep.subr.mxu0 0.0
    %1790 = vmatpush1.xpose.msra.mxu0 0.0
    %1791 = vmatprep.subr.mxu0 0.0
    %1792 = vmatpush1.xpose.msra.mxu0 0.0
    %1793 = vmatprep.subr.mxu0 0.0
    %1794 = vmatpush1.xpose.msra.mxu0 0.0
    %1795 = vmatprep.subr.mxu0 0.0
    %1796 = vmatpush1.xpose.msra.mxu0 0.0
    %1797 = vmatprep.subr.mxu0 0.0
    %1798 = vmatpush1.xpose.msra.mxu0 0.0
    %1799 = vmatprep.subr.mxu0 0.0
    %1800 = vmatpush1.xpose.msra.mxu0 0.0
    %1801 = vmatprep.subr.mxu0 0.0
    %1802 = vmatpush1.xpose.msra.mxu0 0.0
    %1803 = vmatprep.subr.mxu0 0.0
    %1804 = vmatpush1.xpose.msra.mxu0 0.0
    %1805 = vmatprep.subr.mxu0 0.0
    %1806 = vmatpush1.xpose.msra.mxu0 0.0
    %1807 = vmatprep.subr.mxu0 0.0
    %1808 = vmatpush1.xpose.msra.mxu0 0.0
    %1809 = vmatprep.subr.mxu0 0.0
    %1810 = vmatpush1.xpose.msra.mxu0 0.0
    %1811 = vmatprep.subr.mxu0 0.0
    %1812 = vmatpush1.xpose.msra.mxu0 0.0
    %1813 = vmatprep.subr.mxu0 0.0
    %1814 = vmatpush1.xpose.msra.mxu0 0.0
    %1815 = vmatprep.subr.mxu0 0.0
    %1816 = vmatpush1.xpose.msra.mxu0 0.0
    %1817 = vmatprep.subr.mxu0 0.0
    %1818 = vmatpush1.xpose.msra.mxu0 0.0
    %1819 = vmatprep.subr.mxu0 0.0
    %1820 = vmatpush1.xpose.msra.mxu0 0.0
    %1821 = vmatprep.mubr.f32.mxu0 0.0
    %1822 = vmatmul.mubr.f32.gmra.mrb[0].mxu0 %v1749
    %v1823 = vpop.f32.mrb[0].mxu0
    %v1824 = vadd.f32 0.0, %v1823
    %v1825 = vpop.f32.mrb[0].mxu0
    %1826 = vmatprep.mubr.f32.mxu0 0.0
    %1827 = vmatmul.mubr.f32.gmra.mrb[0].mxu0 %v1751
    %v1828 = vpop.f32.mrb[0].mxu0
    %v1829 = vadd.f32 0.0, %v1828
    %v1830 = vpop.f32.mrb[0].mxu0
    %1831 = vdwg.mxu0
    %v1832 = vmul.f32 %v1824, 0.25
    %v1833 = vmul.f32 %v1829, 0.25
    %v1834 = vadd.f32 %v1832, %v91
    %v1835 = vadd.f32 %v1833, %v92
    %v1836 = vsel %vm211, %v1834, -inf
    %1837 = vmax.xlane.f32.xlu0 %v1836
    %v1838 = vpop.xlane.xlu0 %1837
    %v1839 = vsel %vm211, %v1835, -inf
    %1840 = vmax.xlane.f32.xlu0 %v1839
    %v1841 = vpop.xlane.xlu0 %1840
    %v1842 = vsub.f32 %v1834, %v1838
    %v1843 = vsub.f32 %v1835, %v1841
    %v1844 = vmul.f32 %v1842, 1.442695
    %v1845 = vpow.pop %v1844
    %v1846 = vmul.f32 %v1843, 1.442695
    %v1847 = vpow.pop %v1846
    %v1848 = vsel %vm211, %v1845, 0.0
    %1849 = vadd.xlane.f32.xlu0 %v1848
    %v1850 = vpop.xlane.xlu0 %1849
    %v1851 = vsel %vm211, %v1847, 0.0
    %1852 = vadd.xlane.f32.xlu0 %v1851
    %v1853 = vpop.xlane.xlu0 %1852
    %v1854 = vrcp.pop %v1850
    %v1855 = vmul.f32 %v1845, %v1854
    %v1856 = vrcp.pop %v1853
    %v1857 = vmul.f32 %v1847, %v1856
    %1860 = vrot.lane.b32.xlu0 %v1537, 112
    %v1861 = vpop.permute.xlu0 %1860
    %1862 = vrot.lane.b32.xlu0 %v1543, 112
    %v1863 = vpop.permute.xlu0 %1862
    %v1867 = vsel %vm211, %v1855, 0
    %v1870 = vsel %vm211, %v1857, 0
    %1872 = vmatprep.subr.mxu0 0.0
    %1873 = vmatpush1.msra.mxu0 %v1861
    %1874 = vmatprep.subr.mxu0 0.0
    %1875 = vmatpush1.msra.mxu0 %v1863
    %1876 = vmatprep.subr.mxu0 0.0
    %1877 = vmatpush1.msra.mxu0 0.0
    %1878 = vmatprep.subr.mxu0 0.0
    %1879 = vmatpush1.msra.mxu0 0.0
    %1880 = vmatprep.subr.mxu0 0.0
    %1881 = vmatpush1.msra.mxu0 0.0
    %1882 = vmatprep.subr.mxu0 0.0
    %1883 = vmatpush1.msra.mxu0 0.0
    %1884 = vmatprep.subr.mxu0 0.0
    %1885 = vmatpush1.msra.mxu0 0.0
    %1886 = vmatprep.subr.mxu0 0.0
    %1887 = vmatpush1.msra.mxu0 0.0
    %1888 = vmatprep.subr.mxu0 0.0
    %1889 = vmatpush1.msra.mxu0 0.0
    %1890 = vmatprep.subr.mxu0 0.0
    %1891 = vmatpush1.msra.mxu0 0.0
    %1892 = vmatprep.subr.mxu0 0.0
    %1893 = vmatpush1.msra.mxu0 0.0
    %1894 = vmatprep.subr.mxu0 0.0
    %1895 = vmatpush1.msra.mxu0 0.0
    %1896 = vmatprep.subr.mxu0 0.0
    %1897 = vmatpush1.msra.mxu0 0.0
    %1898 = vmatprep.subr.mxu0 0.0
    %1899 = vmatpush1.msra.mxu0 0.0
    %1900 = vmatprep.subr.mxu0 0.0
    %1901 = vmatpush1.msra.mxu0 0.0
    %1902 = vmatprep.subr.mxu0 0.0
    %1903 = vmatpush1.msra.mxu0 0.0
    %1904 = vmatprep.subr.mxu0 0.0
    %1905 = vmatpush1.msra.mxu0 0.0
    %1906 = vmatprep.subr.mxu0 0.0
    %1907 = vmatpush1.msra.mxu0 0.0
    %1908 = vmatprep.subr.mxu0 0.0
    %1909 = vmatpush1.msra.mxu0 0.0
    %1910 = vmatprep.subr.mxu0 0.0
    %1911 = vmatpush1.msra.mxu0 0.0
    %1912 = vmatprep.subr.mxu0 0.0
    %1913 = vmatpush1.msra.mxu0 0.0
    %1914 = vmatprep.subr.mxu0 0.0
    %1915 = vmatpush1.msra.mxu0 0.0
    %1916 = vmatprep.subr.mxu0 0.0
    %1917 = vmatpush1.msra.mxu0 0.0
    %1918 = vmatprep.subr.mxu0 0.0
    %1919 = vmatpush1.msra.mxu0 0.0
    %1920 = vmatprep.subr.mxu0 0.0
    %1921 = vmatpush1.msra.mxu0 0.0
    %1922 = vmatprep.subr.mxu0 0.0
    %1923 = vmatpush1.msra.mxu0 0.0
    %1924 = vmatprep.subr.mxu0 0.0
    %1925 = vmatpush1.msra.mxu0 0.0
    %1926 = vmatprep.subr.mxu0 0.0
    %1927 = vmatpush1.msra.mxu0 0.0
    %1928 = vmatprep.subr.mxu0 0.0
    %1929 = vmatpush1.msra.mxu0 0.0
    %1930 = vmatprep.subr.mxu0 0.0
    %1931 = vmatpush1.msra.mxu0 0.0
    %1932 = vmatprep.subr.mxu0 0.0
    %1933 = vmatpush1.msra.mxu0 0.0
    %1934 = vmatprep.subr.mxu0 0.0
    %1935 = vmatpush1.msra.mxu0 0.0
    %1936 = vmatprep.mubr.f32.mxu0 0.0
    %1937 = vmatmul.mubr.f32.gmra.mrb[0].mxu0 %v1867
    %v1938 = vpop.f32.mrb[0].mxu0
    %v1939 = vadd.f32 0.0, %v1938
    %v1940 = vpop.f32.mrb[0].mxu0
    %1941 = vmatprep.mubr.f32.mxu0 0.0
    %1942 = vmatmul.mubr.f32.gmra.mrb[0].mxu0 %v1870
    %v1943 = vpop.f32.mrb[0].mxu0
    %v1944 = vadd.f32 0.0, %v1943
    %v1945 = vpop.f32.mrb[0].mxu0
    %1946 = vdwg.mxu0
    %1947 = vrot.lane.b32.xlu0 %v1535, 96
    %v1948 = vpop.permute.xlu0 %1947
    %1949 = vrot.lane.b32.xlu0 %v1541, 96
    %v1950 = vpop.permute.xlu0 %1949
    %1951 = vrot.lane.b32.xlu0 %v1535, 32
    %v1952 = vpop.permute.xlu0 %1951
    %1953 = vrot.lane.b32.xlu0 %v1541, 32
    %v1954 = vpop.permute.xlu0 %1953
    %v1955 = vsel %vm211, %v1948, 0
    %v1957 = vsel %vm211, %v1950, 0
    %v1959 = vsel %vm211, %v1952, 0
    %v1961 = vsel %vm211, %v1954, 0
    %1963 = vmatprep.subr.mxu0 0.0
    %1964 = vmatpush1.xpose.msra.mxu0 %v1959
    %1965 = vmatprep.subr.mxu0 0.0
    %1966 = vmatpush1.xpose.msra.mxu0 %v1961
    %1967 = vmatprep.subr.mxu0 0.0
    %1968 = vmatpush1.xpose.msra.mxu0 0.0
    %1969 = vmatprep.subr.mxu0 0.0
    %1970 = vmatpush1.xpose.msra.mxu0 0.0
    %1971 = vmatprep.subr.mxu0 0.0
    %1972 = vmatpush1.xpose.msra.mxu0 0.0
    %1973 = vmatprep.subr.mxu0 0.0
    %1974 = vmatpush1.xpose.msra.mxu0 0.0
    %1975 = vmatprep.subr.mxu0 0.0
    %1976 = vmatpush1.xpose.msra.mxu0 0.0
    %1977 = vmatprep.subr.mxu0 0.0
    %1978 = vmatpush1.xpose.msra.mxu0 0.0
    %1979 = vmatprep.subr.mxu0 0.0
    %1980 = vmatpush1.xpose.msra.mxu0 0.0
    %1981 = vmatprep.subr.mxu0 0.0
    %1982 = vmatpush1.xpose.msra.mxu0 0.0
    %1983 = vmatprep.subr.mxu0 0.0
    %1984 = vmatpush1.xpose.msra.mxu0 0.0
    %1985 = vmatprep.subr.mxu0 0.0
    %1986 = vmatpush1.xpose.msra.mxu0 0.0
    %1987 = vmatprep.subr.mxu0 0.0
    %1988 = vmatpush1.xpose.msra.mxu0 0.0
    %1989 = vmatprep.subr.mxu0 0.0
    %1990 = vmatpush1.xpose.msra.mxu0 0.0
    %1991 = vmatprep.subr.mxu0 0.0
    %1992 = vmatpush1.xpose.msra.mxu0 0.0
    %1993 = vmatprep.subr.mxu0 0.0
    %1994 = vmatpush1.xpose.msra.mxu0 0.0
    %1995 = vmatprep.subr.mxu0 0.0
    %1996 = vmatpush1.xpose.msra.mxu0 0.0
    %1997 = vmatprep.subr.mxu0 0.0
    %1998 = vmatpush1.xpose.msra.mxu0 0.0
    %1999 = vmatprep.subr.mxu0 0.0
    %2000 = vmatpush1.xpose.msra.mxu0 0.0
    %2001 = vmatprep.subr.mxu0 0.0
    %2002 = vmatpush1.xpose.msra.mxu0 0.0
    %2003 = vmatprep.subr.mxu0 0.0
    %2004 = vmatpush1.xpose.msra.mxu0 0.0
    %2005 = vmatprep.subr.mxu0 0.0
    %2006 = vmatpush1.xpose.msra.mxu0 0.0
    %2007 = vmatprep.subr.mxu0 0.0
    %2008 = vmatpush1.xpose.msra.mxu0 0.0
    %2009 = vmatprep.subr.mxu0 0.0
    %2010 = vmatpush1.xpose.msra.mxu0 0.0
    %2011 = vmatprep.subr.mxu0 0.0
    %2012 = vmatpush1.xpose.msra.mxu0 0.0
    %2013 = vmatprep.subr.mxu0 0.0
    %2014 = vmatpush1.xpose.msra.mxu0 0.0
    %2015 = vmatprep.subr.mxu0 0.0
    %2016 = vmatpush1.xpose.msra.mxu0 0.0
    %2017 = vmatprep.subr.mxu0 0.0
    %2018 = vmatpush1.xpose.msra.mxu0 0.0
    %2019 = vmatprep.subr.mxu0 0.0
    %2020 = vmatpush1.xpose.msra.mxu0 0.0
    %2021 = vmatprep.subr.mxu0 0.0
    %2022 = vmatpush1.xpose.msra.mxu0 0.0
    %2023 = vmatprep.subr.mxu0 0.0
    %2024 = vmatpush1.xpose.msra.mxu0 0.0
    %2025 = vmatprep.subr.mxu0 0.0
    %2026 = vmatpush1.xpose.msra.mxu0 0.0
    %2027 = vmatprep.mubr.f32.mxu0 0.0
    %2028 = vmatmul.mubr.f32.gmra.mrb[0].mxu0 %v1955
    %v2029 = vpop.f32.mrb[0].mxu0
    %v2030 = vadd.f32 0.0, %v2029
    %v2031 = vpop.f32.mrb[0].mxu0
    %2032 = vmatprep.mubr.f32.mxu0 0.0
    %2033 = vmatmul.mubr.f32.gmra.mrb[0].mxu0 %v1957
    %v2034 = vpop.f32.mrb[0].mxu0
    %v2035 = vadd.f32 0.0, %v2034
    %v2036 = vpop.f32.mrb[0].mxu0
    %2037 = vdwg.mxu0
    %v2038 = vmul.f32 %v2030, 0.25
    %v2039 = vmul.f32 %v2035, 0.25
    %v2040 = vadd.f32 %v2038, %v91
    %v2041 = vadd.f32 %v2039, %v92
    %v2042 = vsel %vm211, %v2040, -inf
    %2043 = vmax.xlane.f32.xlu0 %v2042
    %v2044 = vpop.xlane.xlu0 %2043
    %v2045 = vsel %vm211, %v2041, -inf
    %2046 = vmax.xlane.f32.xlu0 %v2045
    %v2047 = vpop.xlane.xlu0 %2046
    %v2048 = vsub.f32 %v2040, %v2044
    %v2049 = vsub.f32 %v2041, %v2047
    %v2050 = vmul.f32 %v2048, 1.442695
    %v2051 = vpow.pop %v2050
    %v2052 = vmul.f32 %v2049, 1.442695
    %v2053 = vpow.pop %v2052
    %v2054 = vsel %vm211, %v2051, 0.0
    %2055 = vadd.xlane.f32.xlu0 %v2054
    %v2056 = vpop.xlane.xlu0 %2055
    %v2057 = vsel %vm211, %v2053, 0.0
    %2058 = vadd.xlane.f32.xlu0 %v2057
    %v2059 = vpop.xlane.xlu0 %2058
    %v2060 = vrcp.pop %v2056
    %v2061 = vmul.f32 %v2051, %v2060
    %v2062 = vrcp.pop %v2059
    %v2063 = vmul.f32 %v2053, %v2062
    %2064 = vrot.lane.b32.xlu0 %v1537, 96
    %v2065 = vpop.permute.xlu0 %2064
    %2066 = vrot.lane.b32.xlu0 %v1543, 96
    %v2067 = vpop.permute.xlu0 %2066
    %v2071 = vsel %vm211, %v2061, 0
    %v2074 = vsel %vm211, %v2063, 0
    %2076 = vmatprep.subr.mxu0 0.0
    %2077 = vmatpush1.msra.mxu0 %v2065
    %2078 = vmatprep.subr.mxu0 0.0
    %2079 = vmatpush1.msra.mxu0 %v2067
    %2080 = vmatprep.subr.mxu0 0.0
    %2081 = vmatpush1.msra.mxu0 0.0
    %2082 = vmatprep.subr.mxu0 0.0
    %2083 = vmatpush1.msra.mxu0 0.0
    %2084 = vmatprep.subr.mxu0 0.0
    %2085 = vmatpush1.msra.mxu0 0.0
    %2086 = vmatprep.subr.mxu0 0.0
    %2087 = vmatpush1.msra.mxu0 0.0
    %2088 = vmatprep.subr.mxu0 0.0
    %2089 = vmatpush1.msra.mxu0 0.0
    %2090 = vmatprep.subr.mxu0 0.0
    %2091 = vmatpush1.msra.mxu0 0.0
    %2092 = vmatprep.subr.mxu0 0.0
    %2093 = vmatpush1.msra.mxu0 0.0
    %2094 = vmatprep.subr.mxu0 0.0
    %2095 = vmatpush1.msra.mxu0 0.0
    %2096 = vmatprep.subr.mxu0 0.0
    %2097 = vmatpush1.msra.mxu0 0.0
    %2098 = vmatprep.subr.mxu0 0.0
    %2099 = vmatpush1.msra.mxu0 0.0
    %2100 = vmatprep.subr.mxu0 0.0
    %2101 = vmatpush1.msra.mxu0 0.0
    %2102 = vmatprep.subr.mxu0 0.0
    %2103 = vmatpush1.msra.mxu0 0.0
    %2104 = vmatprep.subr.mxu0 0.0
    %2105 = vmatpush1.msra.mxu0 0.0
    %2106 = vmatprep.subr.mxu0 0.0
    %2107 = vmatpush1.msra.mxu0 0.0
    %2108 = vmatprep.subr.mxu0 0.0
    %2109 = vmatpush1.msra.mxu0 0.0
    %2110 = vmatprep.subr.mxu0 0.0
    %2111 = vmatpush1.msra.mxu0 0.0
    %2112 = vmatprep.subr.mxu0 0.0
    %2113 = vmatpush1.msra.mxu0 0.0
    %2114 = vmatprep.subr.mxu0 0.0
    %2115 = vmatpush1.msra.mxu0 0.0
    %2116 = vmatprep.subr.mxu0 0.0
    %2117 = vmatpush1.msra.mxu0 0.0
    %2118 = vmatprep.subr.mxu0 0.0
    %2119 = vmatpush1.msra.mxu0 0.0
    %2120 = vmatprep.subr.mxu0 0.0
    %2121 = vmatpush1.msra.mxu0 0.0
    %2122 = vmatprep.subr.mxu0 0.0
    %2123 = vmatpush1.msra.mxu0 0.0
    %2124 = vmatprep.subr.mxu0 0.0
    %2125 = vmatpush1.msra.mxu0 0.0
    %2126 = vmatprep.subr.mxu0 0.0
    %2127 = vmatpush1.msra.mxu0 0.0
    %2128 = vmatprep.subr.mxu0 0.0
    %2129 = vmatpush1.msra.mxu0 0.0
    %2130 = vmatprep.subr.mxu0 0.0
    %2131 = vmatpush1.msra.mxu0 0.0
    %2132 = vmatprep.subr.mxu0 0.0
    %2133 = vmatpush1.msra.mxu0 0.0
    %2134 = vmatprep.subr.mxu0 0.0
    %2135 = vmatpush1.msra.mxu0 0.0
    %2136 = vmatprep.subr.mxu0 0.0
    %2137 = vmatpush1.msra.mxu0 0.0
    %2138 = vmatprep.subr.mxu0 0.0
    %2139 = vmatpush1.msra.mxu0 0.0
    %2140 = vmatprep.mubr.f32.mxu0 0.0
    %2141 = vmatmul.mubr.f32.gmra.mrb[0].mxu0 %v2071
    %v2142 = vpop.f32.mrb[0].mxu0
    %v2143 = vadd.f32 0.0, %v2142
    %v2144 = vpop.f32.mrb[0].mxu0
    %2145 = vmatprep.mubr.f32.mxu0 0.0
    %2146 = vmatmul.mubr.f32.gmra.mrb[0].mxu0 %v2074
    %v2147 = vpop.f32.mrb[0].mxu0
    %v2148 = vadd.f32 0.0, %v2147
    %v2149 = vpop.f32.mrb[0].mxu0
    %2150 = vdwg.mxu0
    %2151 = vrot.lane.b32.xlu0 %v1535, 80
    %v2152 = vpop.permute.xlu0 %2151
    %2153 = vrot.lane.b32.xlu0 %v1541, 80
    %v2154 = vpop.permute.xlu0 %2153
    %2155 = vrot.lane.b32.xlu0 %v1535, 16
    %v2156 = vpop.permute.xlu0 %2155
    %2157 = vrot.lane.b32.xlu0 %v1541, 16
    %v2158 = vpop.permute.xlu0 %2157
    %v2159 = vsel %vm211, %v2152, 0
    %v2161 = vsel %vm211, %v2154, 0
    %v2163 = vsel %vm211, %v2156, 0
    %v2165 = vsel %vm211, %v2158, 0
    %2167 = vmatprep.subr.mxu0 0.0
    %2168 = vmatpush1.xpose.msra.mxu0 %v2163
    %2169 = vmatprep.subr.mxu0 0.0
    %2170 = vmatpush1.xpose.msra.mxu0 %v2165
    %2171 = vmatprep.subr.mxu0 0.0
    %2172 = vmatpush1.xpose.msra.mxu0 0.0
    %2173 = vmatprep.subr.mxu0 0.0
    %2174 = vmatpush1.xpose.msra.mxu0 0.0
    %2175 = vmatprep.subr.mxu0 0.0
    %2176 = vmatpush1.xpose.msra.mxu0 0.0
    %2177 = vmatprep.subr.mxu0 0.0
    %2178 = vmatpush1.xpose.msra.mxu0 0.0
    %2179 = vmatprep.subr.mxu0 0.0
    %2180 = vmatpush1.xpose.msra.mxu0 0.0
    %2181 = vmatprep.subr.mxu0 0.0
    %2182 = vmatpush1.xpose.msra.mxu0 0.0
    %2183 = vmatprep.subr.mxu0 0.0
    %2184 = vmatpush1.xpose.msra.mxu0 0.0
    %2185 = vmatprep.subr.mxu0 0.0
    %2186 = vmatpush1.xpose.msra.mxu0 0.0
    %2187 = vmatprep.subr.mxu0 0.0
    %2188 = vmatpush1.xpose.msra.mxu0 0.0
    %2189 = vmatprep.subr.mxu0 0.0
    %2190 = vmatpush1.xpose.msra.mxu0 0.0
    %2191 = vmatprep.subr.mxu0 0.0
    %2192 = vmatpush1.xpose.msra.mxu0 0.0
    %2193 = vmatprep.subr.mxu0 0.0
    %2194 = vmatpush1.xpose.msra.mxu0 0.0
    %2195 = vmatprep.subr.mxu0 0.0
    %2196 = vmatpush1.xpose.msra.mxu0 0.0
    %2197 = vmatprep.subr.mxu0 0.0
    %2198 = vmatpush1.xpose.msra.mxu0 0.0
    %2199 = vmatprep.subr.mxu0 0.0
    %2200 = vmatpush1.xpose.msra.mxu0 0.0
    %2201 = vmatprep.subr.mxu0 0.0
    %2202 = vmatpush1.xpose.msra.mxu0 0.0
    %2203 = vmatprep.subr.mxu0 0.0
    %2204 = vmatpush1.xpose.msra.mxu0 0.0
    %2205 = vmatprep.subr.mxu0 0.0
    %2206 = vmatpush1.xpose.msra.mxu0 0.0
    %2207 = vmatprep.subr.mxu0 0.0
    %2208 = vmatpush1.xpose.msra.mxu0 0.0
    %2209 = vmatprep.subr.mxu0 0.0
    %2210 = vmatpush1.xpose.msra.mxu0 0.0
    %2211 = vmatprep.subr.mxu0 0.0
    %2212 = vmatpush1.xpose.msra.mxu0 0.0
    %2213 = vmatprep.subr.mxu0 0.0
    %2214 = vmatpush1.xpose.msra.mxu0 0.0
    %2215 = vmatprep.subr.mxu0 0.0
    %2216 = vmatpush1.xpose.msra.mxu0 0.0
    %2217 = vmatprep.subr.mxu0 0.0
    %2218 = vmatpush1.xpose.msra.mxu0 0.0
    %2219 = vmatprep.subr.mxu0 0.0
    %2220 = vmatpush1.xpose.msra.mxu0 0.0
    %2221 = vmatprep.subr.mxu0 0.0
    %2222 = vmatpush1.xpose.msra.mxu0 0.0
    %2223 = vmatprep.subr.mxu0 0.0
    %2224 = vmatpush1.xpose.msra.mxu0 0.0
    %2225 = vmatprep.subr.mxu0 0.0
    %2226 = vmatpush1.xpose.msra.mxu0 0.0
    %2227 = vmatprep.subr.mxu0 0.0
    %2228 = vmatpush1.xpose.msra.mxu0 0.0
    %2229 = vmatprep.subr.mxu0 0.0
    %2230 = vmatpush1.xpose.msra.mxu0 0.0
    %2231 = vmatprep.mubr.f32.mxu0 0.0
    %2232 = vmatmul.mubr.f32.gmra.mrb[0].mxu0 %v2159
    %v2233 = vpop.f32.mrb[0].mxu0
    %v2234 = vadd.f32 0.0, %v2233
    %v2235 = vpop.f32.mrb[0].mxu0
    %2236 = vmatprep.mubr.f32.mxu0 0.0
    %2237 = vmatmul.mubr.f32.gmra.mrb[0].mxu0 %v2161
    %v2238 = vpop.f32.mrb[0].mxu0
    %v2239 = vadd.f32 0.0, %v2238
    %v2240 = vpop.f32.mrb[0].mxu0
    %2241 = vdwg.mxu0
    %v2242 = vmul.f32 %v2234, 0.25
    %v2243 = vmul.f32 %v2239, 0.25
    %v2244 = vadd.f32 %v2242, %v91
    %v2245 = vadd.f32 %v2243, %v92
    %v2246 = vsel %vm211, %v2244, -inf
    %2247 = vmax.xlane.f32.xlu0 %v2246
    %v2248 = vpop.xlane.xlu0 %2247
    %v2249 = vsel %vm211, %v2245, -inf
    %2250 = vmax.xlane.f32.xlu0 %v2249
    %v2251 = vpop.xlane.xlu0 %2250
    %v2252 = vsub.f32 %v2244, %v2248
    %v2253 = vsub.f32 %v2245, %v2251
    %v2254 = vmul.f32 %v2252, 1.442695
    %v2255 = vpow.pop %v2254
    %v2256 = vmul.f32 %v2253, 1.442695
    %v2257 = vpow.pop %v2256
    %v2258 = vsel %vm211, %v2255, 0.0
    %2259 = vadd.xlane.f32.xlu0 %v2258
    %v2260 = vpop.xlane.xlu0 %2259
    %v2261 = vsel %vm211, %v2257, 0.0
    %2262 = vadd.xlane.f32.xlu0 %v2261
    %v2263 = vpop.xlane.xlu0 %2262
    %v2264 = vrcp.pop %v2260
    %v2265 = vmul.f32 %v2255, %v2264
    %v2266 = vrcp.pop %v2263
    %v2267 = vmul.f32 %v2257, %v2266
    %2268 = vrot.lane.b32.xlu0 %v1537, 80
    %v2269 = vpop.permute.xlu0 %2268
    %2270 = vrot.lane.b32.xlu0 %v1543, 80
    %v2271 = vpop.permute.xlu0 %2270
    %v2275 = vsel %vm211, %v2265, 0
    %v2278 = vsel %vm211, %v2267, 0
    %2280 = vmatprep.subr.mxu0 0.0
    %2281 = vmatpush1.msra.mxu0 %v2269
    %2282 = vmatprep.subr.mxu0 0.0
    %2283 = vmatpush1.msra.mxu0 %v2271
    %2284 = vmatprep.subr.mxu0 0.0
    %2285 = vmatpush1.msra.mxu0 0.0
    %2286 = vmatprep.subr.mxu0 0.0
    %2287 = vmatpush1.msra.mxu0 0.0
    %2288 = vmatprep.subr.mxu0 0.0
    %2289 = vmatpush1.msra.mxu0 0.0
    %2290 = vmatprep.subr.mxu0 0.0
    %2291 = vmatpush1.msra.mxu0 0.0
    %2292 = vmatprep.subr.mxu0 0.0
    %2293 = vmatpush1.msra.mxu0 0.0
    %2294 = vmatprep.subr.mxu0 0.0
    %2295 = vmatpush1.msra.mxu0 0.0
    %2296 = vmatprep.subr.mxu0 0.0
    %2297 = vmatpush1.msra.mxu0 0.0
    %2298 = vmatprep.subr.mxu0 0.0
    %2299 = vmatpush1.msra.mxu0 0.0
    %2300 = vmatprep.subr.mxu0 0.0
    %2301 = vmatpush1.msra.mxu0 0.0
    %2302 = vmatprep.subr.mxu0 0.0
    %2303 = vmatpush1.msra.mxu0 0.0
    %2304 = vmatprep.subr.mxu0 0.0
    %2305 = vmatpush1.msra.mxu0 0.0
    %2306 = vmatprep.subr.mxu0 0.0
    %2307 = vmatpush1.msra.mxu0 0.0
    %2308 = vmatprep.subr.mxu0 0.0
    %2309 = vmatpush1.msra.mxu0 0.0
    %2310 = vmatprep.subr.mxu0 0.0
    %2311 = vmatpush1.msra.mxu0 0.0
    %2312 = vmatprep.subr.mxu0 0.0
    %2313 = vmatpush1.msra.mxu0 0.0
    %2314 = vmatprep.subr.mxu0 0.0
    %2315 = vmatpush1.msra.mxu0 0.0
    %2316 = vmatprep.subr.mxu0 0.0
    %2317 = vmatpush1.msra.mxu0 0.0
    %2318 = vmatprep.subr.mxu0 0.0
    %2319 = vmatpush1.msra.mxu0 0.0
    %2320 = vmatprep.subr.mxu0 0.0
    %2321 = vmatpush1.msra.mxu0 0.0
    %2322 = vmatprep.subr.mxu0 0.0
    %2323 = vmatpush1.msra.mxu0 0.0
    %2324 = vmatprep.subr.mxu0 0.0
    %2325 = vmatpush1.msra.mxu0 0.0
    %2326 = vmatprep.subr.mxu0 0.0
    %2327 = vmatpush1.msra.mxu0 0.0
    %2328 = vmatprep.subr.mxu0 0.0
    %2329 = vmatpush1.msra.mxu0 0.0
    %2330 = vmatprep.subr.mxu0 0.0
    %2331 = vmatpush1.msra.mxu0 0.0
    %2332 = vmatprep.subr.mxu0 0.0
    %2333 = vmatpush1.msra.mxu0 0.0
    %2334 = vmatprep.subr.mxu0 0.0
    %2335 = vmatpush1.msra.mxu0 0.0
    %2336 = vmatprep.subr.mxu0 0.0
    %2337 = vmatpush1.msra.mxu0 0.0
    %2338 = vmatprep.subr.mxu0 0.0
    %2339 = vmatpush1.msra.mxu0 0.0
    %2340 = vmatprep.subr.mxu0 0.0
    %2341 = vmatpush1.msra.mxu0 0.0
    %2342 = vmatprep.subr.mxu0 0.0
    %2343 = vmatpush1.msra.mxu0 0.0
    %2344 = vmatprep.mubr.f32.mxu0 0.0
    %2345 = vmatmul.mubr.f32.gmra.mrb[0].mxu0 %v2275
    %v2346 = vpop.f32.mrb[0].mxu0
    %v2347 = vadd.f32 0.0, %v2346
    %v2348 = vpop.f32.mrb[0].mxu0
    %2349 = vmatprep.mubr.f32.mxu0 0.0
    %2350 = vmatmul.mubr.f32.gmra.mrb[0].mxu0 %v2278
    %v2351 = vpop.f32.mrb[0].mxu0
    %v2352 = vadd.f32 0.0, %v2351
    %v2353 = vpop.f32.mrb[0].mxu0
    %2354 = vdwg.mxu0
    %2357 = vrot.lane.b32.xlu0 %v1939, 16
    %v2358 = vpop.permute.xlu0 %2357
    %2359 = vrot.lane.b32.xlu0 %v1944, 16
    %v2360 = vpop.permute.xlu0 %2359
    %2365 = vrot.lane.b32.xlu0 %v2143, 32
    %v2366 = vpop.permute.xlu0 %2365
    %2367 = vrot.lane.b32.xlu0 %v2148, 32
    %v2368 = vpop.permute.xlu0 %2367
    %2373 = vrot.lane.b32.xlu0 %v2347, 48
    %v2374 = vpop.permute.xlu0 %2373
    %2375 = vrot.lane.b32.xlu0 %v2352, 48
    %v2376 = vpop.permute.xlu0 %2375
    %v2379 = vsel %vm211, %v1733, %v2358
    %v2380 = vsel %vm211, %v1738, %v2360
    %v2381 = vsel %vm1042, %v2379, %v2366
    %v2382 = vsel %vm1042, %v2380, %v2368
    %v2383 = vsel %vm1045, %v2381, %v2374
    %v2384 = vsel %vm1045, %v2382, %v2376
    %s2385 = scalar_lea.vmem %s4, 64
    %v2386 = vld [vmem:[%s2385] sm:$0xff]
    %v2387 = vld [vmem:[%s2385 + $0x8] sm:$0xff]
    %v2388 = vld [vmem:[%s2385 + $0x10] sm:$0xff]
    %v2389 = vld [vmem:[%s2385 + $0x18] sm:$0xff]
    %v2390 = vld [vmem:[%s2385 + $0x20] sm:$0xff]
    %v2391 = vld [vmem:[%s2385 + $0x28] sm:$0xff]
    %v2392 = vld [vmem:[%s2385 + $0x30] sm:$0xff]
    %v2393 = vld [vmem:[%s2385 + $0x38] sm:$0xff]
    %v2394 = vlaneseq
    %v2395 = vshrl.u32 %v2394, 7
    %v2396 = vsub.s32 0, %v2395
    %v2397 = vrot.slane %v1431, %v2396
    %v2399 = vsel %vm51, %v2383, 0
    %v2402 = vsel %vm51, %v2384, 0
    %2404 = vmatprep.subr.mxu0 0.0
    %2405 = vmatpush1.msra.mxu0 %v2386
    %2406 = vmatprep.subr.mxu0 0.0
    %2407 = vmatpush1.msra.mxu0 %v2387
    %2408 = vmatprep.subr.mxu0 0.0
    %2409 = vmatpush1.msra.mxu0 %v2388
    %2410 = vmatprep.subr.mxu0 0.0
    %2411 = vmatpush1.msra.mxu0 %v2389
    %2412 = vmatprep.subr.mxu0 0.0
    %2413 = vmatpush1.msra.mxu0 %v2390
    %2414 = vmatprep.subr.mxu0 0.0
    %2415 = vmatpush1.msra.mxu0 %v2391
    %2416 = vmatprep.subr.mxu0 0.0
    %2417 = vmatpush1.msra.mxu0 %v2392
    %2418 = vmatprep.subr.mxu0 0.0
    %2419 = vmatpush1.msra.mxu0 %v2393
    %2420 = vmatprep.subr.mxu0 0.0
    %2421 = vmatpush1.msra.mxu0 0.0
    %2422 = vmatprep.subr.mxu0 0.0
    %2423 = vmatpush1.msra.mxu0 0.0
    %2424 = vmatprep.subr.mxu0 0.0
    %2425 = vmatpush1.msra.mxu0 0.0
    %2426 = vmatprep.subr.mxu0 0.0
    %2427 = vmatpush1.msra.mxu0 0.0
    %2428 = vmatprep.subr.mxu0 0.0
    %2429 = vmatpush1.msra.mxu0 0.0
    %2430 = vmatprep.subr.mxu0 0.0
    %2431 = vmatpush1.msra.mxu0 0.0
    %2432 = vmatprep.subr.mxu0 0.0
    %2433 = vmatpush1.msra.mxu0 0.0
    %2434 = vmatprep.subr.mxu0 0.0
    %2435 = vmatpush1.msra.mxu0 0.0
    %2436 = vmatprep.subr.mxu0 0.0
    %2437 = vmatpush1.msra.mxu0 0.0
    %2438 = vmatprep.subr.mxu0 0.0
    %2439 = vmatpush1.msra.mxu0 0.0
    %2440 = vmatprep.subr.mxu0 0.0
    %2441 = vmatpush1.msra.mxu0 0.0
    %2442 = vmatprep.subr.mxu0 0.0
    %2443 = vmatpush1.msra.mxu0 0.0
    %2444 = vmatprep.subr.mxu0 0.0
    %2445 = vmatpush1.msra.mxu0 0.0
    %2446 = vmatprep.subr.mxu0 0.0
    %2447 = vmatpush1.msra.mxu0 0.0
    %2448 = vmatprep.subr.mxu0 0.0
    %2449 = vmatpush1.msra.mxu0 0.0
    %2450 = vmatprep.subr.mxu0 0.0
    %2451 = vmatpush1.msra.mxu0 0.0
    %2452 = vmatprep.subr.mxu0 0.0
    %2453 = vmatpush1.msra.mxu0 0.0
    %2454 = vmatprep.subr.mxu0 0.0
    %2455 = vmatpush1.msra.mxu0 0.0
    %2456 = vmatprep.subr.mxu0 0.0
    %2457 = vmatpush1.msra.mxu0 0.0
    %2458 = vmatprep.subr.mxu0 0.0
    %2459 = vmatpush1.msra.mxu0 0.0
    %2460 = vmatprep.subr.mxu0 0.0
    %2461 = vmatpush1.msra.mxu0 0.0
    %2462 = vmatprep.subr.mxu0 0.0
    %2463 = vmatpush1.msra.mxu0 0.0
    %2464 = vmatprep.subr.mxu0 0.0
    %2465 = vmatpush1.msra.mxu0 0.0
    %2466 = vmatprep.subr.mxu0 0.0
    %2467 = vmatpush1.msra.mxu0 0.0
    %2468 = vmatprep.mubr.f32.mxu0 0.0
    %2469 = vmatmul.mubr.f32.gmra.mrb[0].mxu0 %v2399
    %v2470 = vpop.f32.mrb[0].mxu0
    %v2471 = vadd.f32 %v2397, %v2470
    %v2472 = vpop.f32.mrb[0].mxu0
    %2473 = vmatprep.mubr.f32.mxu0 0.0
    %2474 = vmatmul.mubr.f32.gmra.mrb[0].mxu0 %v2402
    %v2475 = vpop.f32.mrb[0].mxu0
    %v2476 = vadd.f32 %v2397, %v2475
    %v2477 = vpop.f32.mrb[0].mxu0
    %2478 = vdwg.mxu0
    %v2479 = vadd.f32 %v1428, %v2471
    %v2480 = vadd.f32 %v1429, %v2476
    %v2481 = vsel %vm51, %v2479, 0.0
    %2482 = vadd.xlane.f32.xlu0 %v2481
    %v2483 = vpop.xlane.xlu0 %2482
    %v2484 = vsel %vm51, %v2480, 0.0
    %2485 = vadd.xlane.f32.xlu0 %v2484
    %v2486 = vpop.xlane.xlu0 %2485
    %v2487 = vmul.f32 %v2483, %v58
    %v2488 = vmul.f32 %v2486, %v58
    %v2489 = vsub.f32 %v2479, %v2487
    %v2490 = vsub.f32 %v2480, %v2488
    %v2491 = vmul.f32 %v2489, %v2489
    %v2492 = vmul.f32 %v2490, %v2490
    %v2493 = vsel %vm51, %v2491, 0.0
    %2494 = vadd.xlane.f32.xlu0 %v2493
    %v2495 = vpop.xlane.xlu0 %2494
    %v2496 = vsel %vm51, %v2492, 0.0
    %2497 = vadd.xlane.f32.xlu0 %v2496
    %v2498 = vpop.xlane.xlu0 %2497
    %v2499 = vmul.f32 %v2495, %v58
    %v2500 = vmul.f32 %v2498, %v58
    %v2501 = vadd.f32 %v2499, 1e-12
    %v2502 = vadd.f32 %v2500, 1e-12
    %v2503 = vrsqrt.pop %v2501
    %v2504 = vrsqrt.pop %v2502
    %v2505 = vmul.f32 %v2489, %v2503
    %v2506 = vmul.f32 %v2490, %v2504
    %v2507 = vlaneseq
    %v2508 = vshrl.u32 %v2507, 7
    %v2509 = vsub.s32 1, %v2508
    %v2510 = vrot.slane %v1431, %v2509
    %v2511 = vmul.f32 %v2505, %v2510
    %v2512 = vmul.f32 %v2506, %v2510
    %v2513 = vlaneseq
    %v2514 = vshrl.u32 %v2513, 7
    %v2515 = vsub.s32 2, %v2514
    %v2516 = vrot.slane %v1431, %v2515
    %v2517 = vadd.f32 %v2511, %v2516
    %v2518 = vadd.f32 %v2512, %v2516
    %s2519 = scalar_lea.vmem %s5, 64
    %v2520 = vld [vmem:[%s2519] sm:$0xff]
    %v2521 = vld [vmem:[%s2519 + $0x8] sm:$0xff]
    %v2522 = vld [vmem:[%s2519 + $0x10] sm:$0xff]
    %v2523 = vld [vmem:[%s2519 + $0x18] sm:$0xff]
    %v2524 = vld [vmem:[%s2519 + $0x20] sm:$0xff]
    %v2525 = vld [vmem:[%s2519 + $0x28] sm:$0xff]
    %v2526 = vld [vmem:[%s2519 + $0x30] sm:$0xff]
    %v2527 = vld [vmem:[%s2519 + $0x38] sm:$0xff]
    %s2528 = scalar_lea.vmem %s6, 1
    %v2529 = vld [vmem:[%s2528] sm:$0x1]
    %v2531 = vlaneseq
    %v2532 = vshrl.u32 %v2531, 7
    %v2533 = vsub.s32 0, %v2532
    %v2534 = vrot.slane %v2529, %v2533
    %v2537 = vsel %vm51, %v2517, 0
    %v2540 = vsel %vm51, %v2518, 0
    %2542 = vmatprep.subr.mxu0 0.0
    %2543 = vmatpush1.msra.mxu0 %v2520
    %2544 = vmatprep.subr.mxu0 0.0
    %2545 = vmatpush1.msra.mxu0 %v2521
    %2546 = vmatprep.subr.mxu0 0.0
    %2547 = vmatpush1.msra.mxu0 %v2522
    %2548 = vmatprep.subr.mxu0 0.0
    %2549 = vmatpush1.msra.mxu0 %v2523
    %2550 = vmatprep.subr.mxu0 0.0
    %2551 = vmatpush1.msra.mxu0 %v2524
    %2552 = vmatprep.subr.mxu0 0.0
    %2553 = vmatpush1.msra.mxu0 %v2525
    %2554 = vmatprep.subr.mxu0 0.0
    %2555 = vmatpush1.msra.mxu0 %v2526
    %2556 = vmatprep.subr.mxu0 0.0
    %2557 = vmatpush1.msra.mxu0 %v2527
    %2558 = vmatprep.subr.mxu0 0.0
    %2559 = vmatpush1.msra.mxu0 0.0
    %2560 = vmatprep.subr.mxu0 0.0
    %2561 = vmatpush1.msra.mxu0 0.0
    %2562 = vmatprep.subr.mxu0 0.0
    %2563 = vmatpush1.msra.mxu0 0.0
    %2564 = vmatprep.subr.mxu0 0.0
    %2565 = vmatpush1.msra.mxu0 0.0
    %2566 = vmatprep.subr.mxu0 0.0
    %2567 = vmatpush1.msra.mxu0 0.0
    %2568 = vmatprep.subr.mxu0 0.0
    %2569 = vmatpush1.msra.mxu0 0.0
    %2570 = vmatprep.subr.mxu0 0.0
    %2571 = vmatpush1.msra.mxu0 0.0
    %2572 = vmatprep.subr.mxu0 0.0
    %2573 = vmatpush1.msra.mxu0 0.0
    %2574 = vmatprep.subr.mxu0 0.0
    %2575 = vmatpush1.msra.mxu0 0.0
    %2576 = vmatprep.subr.mxu0 0.0
    %2577 = vmatpush1.msra.mxu0 0.0
    %2578 = vmatprep.subr.mxu0 0.0
    %2579 = vmatpush1.msra.mxu0 0.0
    %2580 = vmatprep.subr.mxu0 0.0
    %2581 = vmatpush1.msra.mxu0 0.0
    %2582 = vmatprep.subr.mxu0 0.0
    %2583 = vmatpush1.msra.mxu0 0.0
    %2584 = vmatprep.subr.mxu0 0.0
    %2585 = vmatpush1.msra.mxu0 0.0
    %2586 = vmatprep.subr.mxu0 0.0
    %2587 = vmatpush1.msra.mxu0 0.0
    %2588 = vmatprep.subr.mxu0 0.0
    %2589 = vmatpush1.msra.mxu0 0.0
    %2590 = vmatprep.subr.mxu0 0.0
    %2591 = vmatpush1.msra.mxu0 0.0
    %2592 = vmatprep.subr.mxu0 0.0
    %2593 = vmatpush1.msra.mxu0 0.0
    %2594 = vmatprep.subr.mxu0 0.0
    %2595 = vmatpush1.msra.mxu0 0.0
    %2596 = vmatprep.subr.mxu0 0.0
    %2597 = vmatpush1.msra.mxu0 0.0
    %2598 = vmatprep.subr.mxu0 0.0
    %2599 = vmatpush1.msra.mxu0 0.0
    %2600 = vmatprep.subr.mxu0 0.0
    %2601 = vmatpush1.msra.mxu0 0.0
    %2602 = vmatprep.subr.mxu0 0.0
    %2603 = vmatpush1.msra.mxu0 0.0
    %2604 = vmatprep.subr.mxu0 0.0
    %2605 = vmatpush1.msra.mxu0 0.0
    %2606 = vmatprep.mubr.f32.mxu0 0.0
    %2607 = vmatmul.mubr.f32.gmra.mrb[0].mxu0 %v2537
    %v2608 = vpop.f32.mrb[0].mxu0
    %v2609 = vadd.f32 %v2534, %v2608
    %v2610 = vpop.f32.mrb[0].mxu0
    %2611 = vmatprep.mubr.f32.mxu0 0.0
    %2612 = vmatmul.mubr.f32.gmra.mrb[0].mxu0 %v2540
    %v2613 = vpop.f32.mrb[0].mxu0
    %v2614 = vadd.f32 %v2534, %v2613
    %v2615 = vpop.f32.mrb[0].mxu0
    %2616 = vdwg.mxu0
    %v2617 = vmul.f32 %v2609, 0.5
    %v2618 = vmul.f32 %v2614, 0.5
    %v2619 = vmul.f32 %v2609, 0.044715
    %v2620 = vmul.f32 %v2614, 0.044715
    %v2621 = vmul.f32 %v2619, %v2609
    %v2622 = vmul.f32 %v2620, %v2614
    %v2623 = vmul.f32 %v2621, %v2609
    %v2624 = vmul.f32 %v2622, %v2614
    %v2625 = vadd.f32 %v2609, %v2623
    %v2626 = vadd.f32 %v2614, %v2624
    %v2627 = vmul.f32 %v2625, 0.7978846
    %v2628 = vmul.f32 %v2626, 0.7978846
    %v2629 = vtanh.pop %v2627
    %v2630 = vtanh.pop %v2628
    %v2631 = vadd.f32 %v2629, 1.0
    %v2632 = vadd.f32 %v2630, 1.0
    %v2633 = vmul.f32 %v2617, %v2631
    %v2634 = vmul.f32 %v2618, %v2632
    %s2635 = scalar_lea.vmem %s7, 128
    %v2636 = vld [vmem:[%s2635] sm:$0xff]
    %v2637 = vld [vmem:[%s2635 + $0x8] sm:$0xff]
    %v2638 = vld [vmem:[%s2635 + $0x10] sm:$0xff]
    %v2639 = vld [vmem:[%s2635 + $0x18] sm:$0xff]
    %v2640 = vld [vmem:[%s2635 + $0x20] sm:$0xff]
    %v2641 = vld [vmem:[%s2635 + $0x28] sm:$0xff]
    %v2642 = vld [vmem:[%s2635 + $0x30] sm:$0xff]
    %v2643 = vld [vmem:[%s2635 + $0x38] sm:$0xff]
    %v2644 = vld [vmem:[%s2635 + $0x40] sm:$0xff]
    %v2645 = vld [vmem:[%s2635 + $0x48] sm:$0xff]
    %v2646 = vld [vmem:[%s2635 + $0x50] sm:$0xff]
    %v2647 = vld [vmem:[%s2635 + $0x58] sm:$0xff]
    %v2648 = vld [vmem:[%s2635 + $0x60] sm:$0xff]
    %v2649 = vld [vmem:[%s2635 + $0x68] sm:$0xff]
    %v2650 = vld [vmem:[%s2635 + $0x70] sm:$0xff]
    %v2651 = vld [vmem:[%s2635 + $0x78] sm:$0xff]
    %v2652 = vlaneseq
    %v2653 = vshrl.u32 %v2652, 7
    %v2654 = vsub.s32 3, %v2653
    %v2655 = vrot.slane %v1431, %v2654
    %2656 = vmatprep.subr.mxu0 0.0
    %2657 = vmatpush1.msra.mxu0 %v2636
    %2658 = vmatprep.subr.mxu0 0.0
    %2659 = vmatpush1.msra.mxu0 %v2637
    %2660 = vmatprep.subr.mxu0 0.0
    %2661 = vmatpush1.msra.mxu0 %v2638
    %2662 = vmatprep.subr.mxu0 0.0
    %2663 = vmatpush1.msra.mxu0 %v2639
    %2664 = vmatprep.subr.mxu0 0.0
    %2665 = vmatpush1.msra.mxu0 %v2640
    %2666 = vmatprep.subr.mxu0 0.0
    %2667 = vmatpush1.msra.mxu0 %v2641
    %2668 = vmatprep.subr.mxu0 0.0
    %2669 = vmatpush1.msra.mxu0 %v2642
    %2670 = vmatprep.subr.mxu0 0.0
    %2671 = vmatpush1.msra.mxu0 %v2643
    %2672 = vmatprep.subr.mxu0 0.0
    %2673 = vmatpush1.msra.mxu0 %v2644
    %2674 = vmatprep.subr.mxu0 0.0
    %2675 = vmatpush1.msra.mxu0 %v2645
    %2676 = vmatprep.subr.mxu0 0.0
    %2677 = vmatpush1.msra.mxu0 %v2646
    %2678 = vmatprep.subr.mxu0 0.0
    %2679 = vmatpush1.msra.mxu0 %v2647
    %2680 = vmatprep.subr.mxu0 0.0
    %2681 = vmatpush1.msra.mxu0 %v2648
    %2682 = vmatprep.subr.mxu0 0.0
    %2683 = vmatpush1.msra.mxu0 %v2649
    %2684 = vmatprep.subr.mxu0 0.0
    %2685 = vmatpush1.msra.mxu0 %v2650
    %2686 = vmatprep.subr.mxu0 0.0
    %2687 = vmatpush1.msra.mxu0 %v2651
    %2688 = vmatprep.subr.mxu0 0.0
    %2689 = vmatpush1.msra.mxu0 0.0
    %2690 = vmatprep.subr.mxu0 0.0
    %2691 = vmatpush1.msra.mxu0 0.0
    %2692 = vmatprep.subr.mxu0 0.0
    %2693 = vmatpush1.msra.mxu0 0.0
    %2694 = vmatprep.subr.mxu0 0.0
    %2695 = vmatpush1.msra.mxu0 0.0
    %2696 = vmatprep.subr.mxu0 0.0
    %2697 = vmatpush1.msra.mxu0 0.0
    %2698 = vmatprep.subr.mxu0 0.0
    %2699 = vmatpush1.msra.mxu0 0.0
    %2700 = vmatprep.subr.mxu0 0.0
    %2701 = vmatpush1.msra.mxu0 0.0
    %2702 = vmatprep.subr.mxu0 0.0
    %2703 = vmatpush1.msra.mxu0 0.0
    %2704 = vmatprep.subr.mxu0 0.0
    %2705 = vmatpush1.msra.mxu0 0.0
    %2706 = vmatprep.subr.mxu0 0.0
    %2707 = vmatpush1.msra.mxu0 0.0
    %2708 = vmatprep.subr.mxu0 0.0
    %2709 = vmatpush1.msra.mxu0 0.0
    %2710 = vmatprep.subr.mxu0 0.0
    %2711 = vmatpush1.msra.mxu0 0.0
    %2712 = vmatprep.subr.mxu0 0.0
    %2713 = vmatpush1.msra.mxu0 0.0
    %2714 = vmatprep.subr.mxu0 0.0
    %2715 = vmatpush1.msra.mxu0 0.0
    %2716 = vmatprep.subr.mxu0 0.0
    %2717 = vmatpush1.msra.mxu0 0.0
    %2718 = vmatprep.subr.mxu0 0.0
    %2719 = vmatpush1.msra.mxu0 0.0
    %2720 = vmatprep.mubr.f32.mxu0 0.0
    %2721 = vmatmul.mubr.f32.gmra.mrb[0].mxu0 %v2633
    %v2722 = vpop.f32.mrb[0].mxu0
    %v2723 = vadd.f32 %v2655, %v2722
    %v2724 = vpop.f32.mrb[0].mxu0
    %2725 = vmatprep.mubr.f32.mxu0 0.0
    %2726 = vmatmul.mubr.f32.gmra.mrb[0].mxu0 %v2634
    %v2727 = vpop.f32.mrb[0].mxu0
    %v2728 = vadd.f32 %v2655, %v2727
    %v2729 = vpop.f32.mrb[0].mxu0
    %2730 = vdwg.mxu0
    %v2731 = vadd.f32 %v2517, %v2723
    %v2732 = vadd.f32 %v2518, %v2728
    %v2733 = vsel %vm51, %v2731, 0.0
    %2734 = vadd.xlane.f32.xlu0 %v2733
    %v2735 = vpop.xlane.xlu0 %2734
    %v2736 = vsel %vm51, %v2732, 0.0
    %2737 = vadd.xlane.f32.xlu0 %v2736
    %v2738 = vpop.xlane.xlu0 %2737
    %v2739 = vmul.f32 %v2735, %v58
    %v2740 = vmul.f32 %v2738, %v58
    %v2741 = vsub.f32 %v2731, %v2739
    %v2742 = vsub.f32 %v2732, %v2740
    %v2743 = vmul.f32 %v2741, %v2741
    %v2744 = vmul.f32 %v2742, %v2742
    %v2745 = vsel %vm51, %v2743, 0.0
    %2746 = vadd.xlane.f32.xlu0 %v2745
    %v2747 = vpop.xlane.xlu0 %2746
    %v2748 = vsel %vm51, %v2744, 0.0
    %2749 = vadd.xlane.f32.xlu0 %v2748
    %v2750 = vpop.xlane.xlu0 %2749
    %v2751 = vmul.f32 %v2747, %v58
    %v2752 = vmul.f32 %v2750, %v58
    %v2753 = vadd.f32 %v2751, 1e-12
    %v2754 = vadd.f32 %v2752, 1e-12
    %v2755 = vrsqrt.pop %v2753
    %v2756 = vrsqrt.pop %v2754
    %v2757 = vmul.f32 %v2741, %v2755
    %v2758 = vmul.f32 %v2742, %v2756
    %v2759 = vlaneseq
    %v2760 = vshrl.u32 %v2759, 7
    %v2761 = vsub.s32 4, %v2760
    %v2762 = vrot.slane %v1431, %v2761
    %v2763 = vmul.f32 %v2757, %v2762
    %v2764 = vmul.f32 %v2758, %v2762
    %v2765 = vlaneseq
    %v2766 = vshrl.u32 %v2765, 7
    %v2767 = vsub.s32 5, %v2766
    %v2768 = vrot.slane %v1431, %v2767
    %v2769 = vadd.f32 %v2763, %v2768
    %v2770 = vadd.f32 %v2764, %v2768
    %v2772 = vrot.slane %v2770, 7
    %vm2774 = vcmask 1040384
    %v2775 = vsel %vm2774, %v2769, %v2772
    %v2776 = vld [vmem:[%s10] sm:$0xff]
    %v2777 = vld [vmem:[%s10 + $0x8] sm:$0xff]
    %v2778 = vld [vmem:[%s10 + $0x10] sm:$0xff]
    %v2779 = vld [vmem:[%s10 + $0x18] sm:$0xff]
    %v2780 = vld [vmem:[%s10 + $0x20] sm:$0xff]
    %v2781 = vld [vmem:[%s10 + $0x28] sm:$0xff]
    %v2782 = vld [vmem:[%s10 + $0x30] sm:$0xff]
    %v2783 = vld [vmem:[%s10 + $0x38] sm:$0xff]
    %v2784 = vld [vmem:[%s11] sm:$0x1]
    %v2786 = vlaneseq
    %v2787 = vshrl.u32 %v2786, 7
    %v2788 = vsub.s32 0, %v2787
    %v2789 = vrot.slane %v2784, %v2788
    %v2792 = vsel %vm51, %v2775, 0
    %2794 = vmatprep.subr.mxu0 0.0
    %2795 = vmatpush1.msra.mxu0 %v2776
    %2796 = vmatprep.subr.mxu0 0.0
    %2797 = vmatpush1.msra.mxu0 %v2777
    %2798 = vmatprep.subr.mxu0 0.0
    %2799 = vmatpush1.msra.mxu0 %v2778
    %2800 = vmatprep.subr.mxu0 0.0
    %2801 = vmatpush1.msra.mxu0 %v2779
    %2802 = vmatprep.subr.mxu0 0.0
    %2803 = vmatpush1.msra.mxu0 %v2780
    %2804 = vmatprep.subr.mxu0 0.0
    %2805 = vmatpush1.msra.mxu0 %v2781
    %2806 = vmatprep.subr.mxu0 0.0
    %2807 = vmatpush1.msra.mxu0 %v2782
    %2808 = vmatprep.subr.mxu0 0.0
    %2809 = vmatpush1.msra.mxu0 %v2783
    %2810 = vmatprep.subr.mxu0 0.0
    %2811 = vmatpush1.msra.mxu0 0.0
    %2812 = vmatprep.subr.mxu0 0.0
    %2813 = vmatpush1.msra.mxu0 0.0
    %2814 = vmatprep.subr.mxu0 0.0
    %2815 = vmatpush1.msra.mxu0 0.0
    %2816 = vmatprep.subr.mxu0 0.0
    %2817 = vmatpush1.msra.mxu0 0.0
    %2818 = vmatprep.subr.mxu0 0.0
    %2819 = vmatpush1.msra.mxu0 0.0
    %2820 = vmatprep.subr.mxu0 0.0
    %2821 = vmatpush1.msra.mxu0 0.0
    %2822 = vmatprep.subr.mxu0 0.0
    %2823 = vmatpush1.msra.mxu0 0.0
    %2824 = vmatprep.subr.mxu0 0.0
    %2825 = vmatpush1.msra.mxu0 0.0
    %2826 = vmatprep.subr.mxu0 0.0
    %2827 = vmatpush1.msra.mxu0 0.0
    %2828 = vmatprep.subr.mxu0 0.0
    %2829 = vmatpush1.msra.mxu0 0.0
    %2830 = vmatprep.subr.mxu0 0.0
    %2831 = vmatpush1.msra.mxu0 0.0
    %2832 = vmatprep.subr.mxu0 0.0
    %2833 = vmatpush1.msra.mxu0 0.0
    %2834 = vmatprep.subr.mxu0 0.0
    %2835 = vmatpush1.msra.mxu0 0.0
    %2836 = vmatprep.subr.mxu0 0.0
    %2837 = vmatpush1.msra.mxu0 0.0
    %2838 = vmatprep.subr.mxu0 0.0
    %2839 = vmatpush1.msra.mxu0 0.0
    %2840 = vmatprep.subr.mxu0 0.0
    %2841 = vmatpush1.msra.mxu0 0.0
    %2842 = vmatprep.subr.mxu0 0.0
    %2843 = vmatpush1.msra.mxu0 0.0
    %2844 = vmatprep.subr.mxu0 0.0
    %2845 = vmatpush1.msra.mxu0 0.0
    %2846 = vmatprep.subr.mxu0 0.0
    %2847 = vmatpush1.msra.mxu0 0.0
    %2848 = vmatprep.subr.mxu0 0.0
    %2849 = vmatpush1.msra.mxu0 0.0
    %2850 = vmatprep.subr.mxu0 0.0
    %2851 = vmatpush1.msra.mxu0 0.0
    %2852 = vmatprep.subr.mxu0 0.0
    %2853 = vmatpush1.msra.mxu0 0.0
    %2854 = vmatprep.subr.mxu0 0.0
    %2855 = vmatpush1.msra.mxu0 0.0
    %2856 = vmatprep.subr.mxu0 0.0
    %2857 = vmatpush1.msra.mxu0 0.0
    %2858 = vmatprep.mubr.f32.mxu0 0.0
    %2859 = vmatmul.mubr.f32.gmra.mrb[0].mxu0 %v2792
    %v2860 = vpop.f32.mrb[0].mxu0
    %v2861 = vadd.f32 %v2789, %v2860
    %v2862 = vpop.f32.mrb[0].mxu0
    %2863 = vdwg.mxu0
    %v2864 = vmax.f32 %v2861, 0.0
    %v2865 = vld [vmem:[%s12] sm:$0xff]
    %v2866 = vld [vmem:[%s12 + $0x8] sm:$0xff]
    %v2867 = vld [vmem:[%s12 + $0x10] sm:$0xff]
    %v2868 = vld [vmem:[%s12 + $0x18] sm:$0xff]
    %v2869 = vld [vmem:[%s12 + $0x20] sm:$0xff]
    %v2870 = vld [vmem:[%s12 + $0x28] sm:$0xff]
    %v2871 = vld [vmem:[%s12 + $0x30] sm:$0xff]
    %v2872 = vld [vmem:[%s12 + $0x38] sm:$0xff]
    %v2873 = vld [vmem:[%s13] sm:$0x1]
    %v2875 = vlaneseq
    %v2876 = vshrl.u32 %v2875, 7
    %v2877 = vsub.s32 0, %v2876
    %v2878 = vrot.slane %v2873, %v2877
    %v2881 = vsel %vm51, %v2864, 0
    %2883 = vmatprep.subr.mxu0 0.0
    %2884 = vmatpush1.msra.mxu0 %v2865
    %2885 = vmatprep.subr.mxu0 0.0
    %2886 = vmatpush1.msra.mxu0 %v2866
    %2887 = vmatprep.subr.mxu0 0.0
    %2888 = vmatpush1.msra.mxu0 %v2867
    %2889 = vmatprep.subr.mxu0 0.0
    %2890 = vmatpush1.msra.mxu0 %v2868
    %2891 = vmatprep.subr.mxu0 0.0
    %2892 = vmatpush1.msra.mxu0 %v2869
    %2893 = vmatprep.subr.mxu0 0.0
    %2894 = vmatpush1.msra.mxu0 %v2870
    %2895 = vmatprep.subr.mxu0 0.0
    %2896 = vmatpush1.msra.mxu0 %v2871
    %2897 = vmatprep.subr.mxu0 0.0
    %2898 = vmatpush1.msra.mxu0 %v2872
    %2899 = vmatprep.subr.mxu0 0.0
    %2900 = vmatpush1.msra.mxu0 0.0
    %2901 = vmatprep.subr.mxu0 0.0
    %2902 = vmatpush1.msra.mxu0 0.0
    %2903 = vmatprep.subr.mxu0 0.0
    %2904 = vmatpush1.msra.mxu0 0.0
    %2905 = vmatprep.subr.mxu0 0.0
    %2906 = vmatpush1.msra.mxu0 0.0
    %2907 = vmatprep.subr.mxu0 0.0
    %2908 = vmatpush1.msra.mxu0 0.0
    %2909 = vmatprep.subr.mxu0 0.0
    %2910 = vmatpush1.msra.mxu0 0.0
    %2911 = vmatprep.subr.mxu0 0.0
    %2912 = vmatpush1.msra.mxu0 0.0
    %2913 = vmatprep.subr.mxu0 0.0
    %2914 = vmatpush1.msra.mxu0 0.0
    %2915 = vmatprep.subr.mxu0 0.0
    %2916 = vmatpush1.msra.mxu0 0.0
    %2917 = vmatprep.subr.mxu0 0.0
    %2918 = vmatpush1.msra.mxu0 0.0
    %2919 = vmatprep.subr.mxu0 0.0
    %2920 = vmatpush1.msra.mxu0 0.0
    %2921 = vmatprep.subr.mxu0 0.0
    %2922 = vmatpush1.msra.mxu0 0.0
    %2923 = vmatprep.subr.mxu0 0.0
    %2924 = vmatpush1.msra.mxu0 0.0
    %2925 = vmatprep.subr.mxu0 0.0
    %2926 = vmatpush1.msra.mxu0 0.0
    %2927 = vmatprep.subr.mxu0 0.0
    %2928 = vmatpush1.msra.mxu0 0.0
    %2929 = vmatprep.subr.mxu0 0.0
    %2930 = vmatpush1.msra.mxu0 0.0
    %2931 = vmatprep.subr.mxu0 0.0
    %2932 = vmatpush1.msra.mxu0 0.0
    %2933 = vmatprep.subr.mxu0 0.0
    %2934 = vmatpush1.msra.mxu0 0.0
    %2935 = vmatprep.subr.mxu0 0.0
    %2936 = vmatpush1.msra.mxu0 0.0
    %2937 = vmatprep.subr.mxu0 0.0
    %2938 = vmatpush1.msra.mxu0 0.0
    %2939 = vmatprep.subr.mxu0 0.0
    %2940 = vmatpush1.msra.mxu0 0.0
    %2941 = vmatprep.subr.mxu0 0.0
    %2942 = vmatpush1.msra.mxu0 0.0
    %2943 = vmatprep.subr.mxu0 0.0
    %2944 = vmatpush1.msra.mxu0 0.0
    %2945 = vmatprep.subr.mxu0 0.0
    %2946 = vmatpush1.msra.mxu0 0.0
    %2947 = vmatprep.mubr.f32.mxu0 0.0
    %2948 = vmatmul.mubr.f32.gmra.mrb[0].mxu0 %v2881
    %v2949 = vpop.f32.mrb[0].mxu0
    %v2950 = vadd.f32 %v2878, %v2949
    %v2951 = vpop.f32.mrb[0].mxu0
    %2952 = vdwg.mxu0
    %2953 = vst [vmem:[#allocation2] sm:$0x3] %v2950
    // Predicated region
    $region58: #{distilbert_sent_forward.1} parent=1 // pred_check
      _
    $region59: #{distilbert_sent_forward.1} parent=1 // pred_check_branch
      %2955 = sbr.rel (0) target = $region61
    $region60: #{distilbert_sent_forward.1} parent=1 // pred_region
      %s2957 = ssub.s32 32, 32
      %2958 = vsyncadd [#allocation3], %s2957
      %s2960 = sshll.u32 [#allocation2], 4
      %s2961 = int_to_ptr.vmem [resolvable:$true] %s2960
      %2963 = dma.vmem_to_hbm [thread:$0]  %s2961, 32, %s14, [#allocation3]
    $region61: #{distilbert_sent_forward.1} parent=1 // pred_fallthru
      _
    // Predicated region
    $region62: #{distilbert_sent_forward.1} parent=1 // pred_check
      _
    $region63: #{distilbert_sent_forward.1} parent=1 // pred_check_branch
      %2965 = sbr.rel (0) target = $region65
    $region64: #{distilbert_sent_forward.1} parent=1 // pred_region
      %2966 = dma.done [#allocation3], 32
    $region65: #{distilbert_sent_forward.1} parent=1 // pred_fallthru
      _
    %2967 = vsyncpa [#allocation3], 1

</llo_original>
